<compile_context>
chip_gen: v7x
topology: tpu7x:2x2x1
jax: 0.10.0
libtpu: 0.0.40
codegen_flags: <defaults>
</compile_context>

<pallas_src>
import functools

import jax
import jax.numpy as jnp
from jax.experimental import pallas as pl
from jax.experimental.pallas import tpu as pltpu


def _round_up(x, m):
    return (x + m - 1) // m * m


def _vmem_limit_bytes():
    """Scoped-VMEM limit ~= 85% of physical capacity (fallback: 64 MiB / v7x)."""
    cap = 64 * 1024 * 1024
    try:
        info_cap = getattr(pltpu.get_tpu_info(), "vmem_capacity_bytes", None)
        if info_cap:
            cap = int(info_cap)
    except Exception:
        pass
    return max(int(cap * 0.85), 32 * 1024 * 1024)


def _largest_seq_tile(s_pad, cap=512):
    """Largest multiple of 8 that divides s_pad and is <= cap."""
    best, t = 8, 8
    while t <= min(cap, s_pad):
        if s_pad % t == 0:
            best = t
        t += 8
    return best


def _pick_intermediate_tile(inter, hidden, budget_bytes):
    """Largest tI dividing `inter` whose double-buffered bf16 fc1+fc2 chunks fit."""
    fallback = None
    for t in range(inter, 0, -1):
        if inter % t:
            continue
        if t != inter and t % 128:
            continue
        fallback = t
        if 8 * hidden * t <= budget_bytes:   # 2 bufs * (H*tI + tI*H) * 2 bytes
            return t
    return fallback if fallback is not None else inter


# ---------------------------------------------------------------------------
# Kernel A: input LayerNorm + Q/K/V projections (three H-wide dots)
# ---------------------------------------------------------------------------
def ln_qkv_kernel(x_ref, g_ref, b_ref, wq_ref, wk_ref, wv_ref,
                  bq_ref, bk_ref, bv_ref, q_ref, k_ref, v_ref, *, eps):
    x = x_ref[0]                                          # (tS, H) f32
    mean = jnp.mean(x, axis=-1, keepdims=True)
    var = jnp.mean((x - mean) * (x - mean), axis=-1, keepdims=True)
    xn = (x - mean) * jax.lax.rsqrt(var + eps)
    xn = (xn * g_ref[0] + b_ref[0]).astype(jnp.bfloat16)  # LN1 in f32, bf16 operand

    q_ref[0] = (jnp.dot(xn, wq_ref[...], preferred_element_type=jnp.float32)
                + bq_ref[0]).astype(jnp.bfloat16)
    k_ref[0] = (jnp.dot(xn, wk_ref[...], preferred_element_type=jnp.float32)
                + bk_ref[0]).astype(jnp.bfloat16)
    v_ref[0] = (jnp.dot(xn, wv_ref[...], preferred_element_type=jnp.float32)
                + bv_ref[0]).astype(jnp.bfloat16)


# ---------------------------------------------------------------------------
# Kernel B: multi-head attention on head-major (tS, H) slabs, per-head loop,
#           lane-dense (tQ, H) context store.  Padded key rows are masked.
# ---------------------------------------------------------------------------
def attention_kernel(q_ref, k_ref, v_ref, ctx_ref, *,
                     scale, s_valid, s_pad, num_heads, head_dim):
    q = q_ref[0]                                          # (tQ, H)   bf16
    k = k_ref[0]                                          # (S_pad, H) bf16
    v = v_ref[0]

    mask_keys = s_pad != s_valid                          # static
    if mask_keys:
        key_idx = jax.lax.broadcasted_iota(jnp.int32, (q.shape[0], s_pad), 1)

    ctx_parts = []
    for h in range(num_heads):                            # static, unrolled
        sl = slice(h * head_dim, (h + 1) * head_dim)
        qh, kh, vh = q[:, sl], k[:, sl], v[:, sl]
        scores = jax.lax.dot_general(                     # q @ k^T on the MXU
            qh, kh, (((1,), (1,)), ((), ())),
            preferred_element_type=jnp.float32) * scale   # (tQ, S_pad) f32
        if mask_keys:
            scores = jnp.where(key_idx < s_valid, scores, -1e30)
        scores = scores - jnp.max(scores, axis=-1, keepdims=True)
        e = jnp.exp(scores)                               # f32 softmax
        probs = e * pl.reciprocal(jnp.sum(e, axis=-1, keepdims=True), approx=True)
        ctx_parts.append(jnp.dot(probs.astype(jnp.bfloat16), vh,
                                 preferred_element_type=jnp.float32))
    # One lane-dense (tQ, H) store; head concatenation order matches torch's
    # context_layer.reshape(..., hidden_size).
    ctx_ref[0] = jnp.concatenate(ctx_parts, axis=-1).astype(jnp.bfloat16)


# ---------------------------------------------------------------------------
# Kernel C: dense proj + residual + LN2 + MLP (optionally intermediate-tiled)
#           + residual; the f32 output block is the fc2 accumulator.
# ---------------------------------------------------------------------------
def dense_mlp_kernel(ctx_ref, x_ref, wd_ref, bd_ref, g_ref, b_ref,
                     w1_ref, b1_ref, w2_ref, b2_ref, out_ref, hn_ref, *, eps):
    i = pl.program_id(2)

    @pl.when(i == 0)
    def _():
        attn = jnp.dot(ctx_ref[0], wd_ref[...],
                       preferred_element_type=jnp.float32) + bd_ref[0]
        h1 = attn + x_ref[0]                              # first residual (f32)
        mean = jnp.mean(h1, axis=-1, keepdims=True)
        var = jnp.mean((h1 - mean) * (h1 - mean), axis=-1, keepdims=True)
        hn = (h1 - mean) * jax.lax.rsqrt(var + eps)
        hn_ref[...] = (hn * g_ref[0] + b_ref[0]).astype(jnp.bfloat16)
        out_ref[0] = h1 + b2_ref[0]                       # second residual + fc2 bias

    a = jnp.dot(hn_ref[...], w1_ref[...],
                preferred_element_type=jnp.float32) + b1_ref[0]
    a = a * jax.nn.sigmoid(1.702 * a)                     # QuickGELU in f32
    out_ref[0] = out_ref[0] + jnp.dot(a.astype(jnp.bfloat16), w2_ref[...],
                                      preferred_element_type=jnp.float32)


# ---------------------------------------------------------------------------
# Wrapper
# ---------------------------------------------------------------------------
def mplug_owl_vision_encoder_layer(hidden_states, params, *, num_heads, eps=1e-6):
    B, S, H = hidden_states.shape
    head_dim = H // num_heads
    assert head_dim * num_heads == H
    I = params["w1"].shape[1]
    scale = head_dim ** (-0.5)

    vmem_limit = _vmem_limit_bytes()

    # Attention q-tile (multiple of 8, capped at 128) defines the seq padding.
    tQ = min(128, _round_up(S, 8))
    S_pad = _round_up(S, tQ)
    nQ = S_pad // tQ
    # Larger seq tile for LN/QKV and dense/MLP kernels (amortizes per-step
    # pipeline overhead and weight fetches); must divide S_pad.
    tS = _largest_seq_tile(S_pad, cap=512)
    nS = S_pad // tS

    x = hidden_states.astype(jnp.float32)
    if S_pad != S:
        x = jnp.pad(x, ((0, 0), (0, S_pad - S), (0, 0)))

    # MLP intermediate tiling: fully VMEM-resident (tI == I) when the weights
    # fit a slice of the VMEM budget; otherwise chunked (multiple of 128).
    tI = _pick_intermediate_tile(I, H, int(0.45 * vmem_limit))
    nI = I // tI

    cp2 = pltpu.CompilerParams(dimension_semantics=("parallel", "parallel"),
                               vmem_limit_bytes=vmem_limit)
    cp3 = pltpu.CompilerParams(dimension_semantics=("parallel", "parallel", "arbitrary"),
                               vmem_limit_bytes=vmem_limit)

    bcast2 = lambda shape: pl.BlockSpec(shape, lambda b, s: tuple(0 for _ in shape))
    bcast3 = lambda shape: pl.BlockSpec(shape, lambda b, s, i: tuple(0 for _ in shape))

    # ---- Kernel A: LN1 + Q/K/V projections ------------------------------------
    seq_spec2 = pl.BlockSpec((1, tS, H), lambda b, s: (b, s, 0))
    q, k, v = pl.pallas_call(
        functools.partial(ln_qkv_kernel, eps=eps),
        out_shape=(jax.ShapeDtypeStruct((B, S_pad, H), jnp.bfloat16),
                   jax.ShapeDtypeStruct((B, S_pad, H), jnp.bfloat16),
                   jax.ShapeDtypeStruct((B, S_pad, H), jnp.bfloat16)),
        grid=(B, nS),
        in_specs=[
            seq_spec2,
            bcast2((1, H)), bcast2((1, H)),
            bcast2((H, H)), bcast2((H, H)), bcast2((H, H)),
            bcast2((1, H)), bcast2((1, H)), bcast2((1, H)),
        ],
        out_specs=(seq_spec2, seq_spec2, seq_spec2),
        compiler_params=cp2,
    )(x, params["ln1_g"], params["ln1_b"],
      params["wq"], params["wk"], params["wv"],
      params["bq"], params["bk"], params["bv"])

    # ---- Kernel B: attention core (no XLA head split/merge around it) ---------
    ctx = pl.pallas_call(
        functools.partial(attention_kernel, scale=scale, s_valid=S, s_pad=S_pad,
                          num_heads=num_heads, head_dim=head_dim),
        out_shape=jax.ShapeDtypeStruct((B, S_pad, H), jnp.bfloat16),
        grid=(B, nQ),
        in_specs=[
            pl.BlockSpec((1, tQ, H), lambda b, qi: (b, qi, 0)),     # Q tile
            pl.BlockSpec((1, S_pad, H), lambda b, qi: (b, 0, 0)),   # K full (per b)
            pl.BlockSpec((1, S_pad, H), lambda b, qi: (b, 0, 0)),   # V full (per b)
        ],
        out_specs=pl.BlockSpec((1, tQ, H), lambda b, qi: (b, qi, 0)),
        compiler_params=cp2,
    )(q, k, v)

    # ---- Kernel C: dense + residual + LN2 + MLP + residual --------------------
    out = pl.pallas_call(
        functools.partial(dense_mlp_kernel, eps=eps),
        out_shape=jax.ShapeDtypeStruct((B, S_pad, H), jnp.float32),
        grid=(B, nS, nI),
        in_specs=[
            pl.BlockSpec((1, tS, H), lambda b, s, i: (b, s, 0)),   # ctx
            pl.BlockSpec((1, tS, H), lambda b, s, i: (b, s, 0)),   # residual x
            bcast3((H, H)), bcast3((1, H)),                        # dense W, b
            bcast3((1, H)), bcast3((1, H)),                        # LN2 gamma, beta
            pl.BlockSpec((H, tI), lambda b, s, i: (0, i)),         # fc1 W (chunk)
            pl.BlockSpec((1, tI), lambda b, s, i: (0, i)),         # fc1 b (chunk)
            pl.BlockSpec((tI, H), lambda b, s, i: (i, 0)),         # fc2 W (chunk)
            bcast3((1, H)),                                        # fc2 b
        ],
        out_specs=pl.BlockSpec((1, tS, H), lambda b, s, i: (b, s, 0)),
        scratch_shapes=[pltpu.VMEM((tS, H), jnp.bfloat16)],        # LN2 output
        compiler_params=cp3,
    )(ctx, x, params["wd"], params["bd"], params["ln2_g"], params["ln2_b"],
      params["w1"], params["b1"], params["w2"], params["b2"])

    if S_pad != S:
        out = out[:, :S, :]
    return out


# ---------------------------------------------------------------------------
# Parameter construction (PyTorch layouts -> kernel layouts)
# ---------------------------------------------------------------------------
def init_params(key, hidden_size, intermediate_size, num_heads):
    H, I = hidden_size, intermediate_size
    hd = H // num_heads
    ks = jax.random.split(key, 8)
    s = 0.02
    f32, bf16 = jnp.float32, jnp.bfloat16

    # PyTorch-layout weights: (out_features, in_features).
    wqkv_pt = s * jax.random.normal(ks[0], (3 * H, H), f32)  # rows per-head [q|k|v]
    bqkv_pt = s * jax.random.normal(ks[1], (3 * H,), f32)
    wd_pt = s * jax.random.normal(ks[2], (H, H), f32)
    bd_pt = s * jax.random.normal(ks[3], (H,), f32)
    w1_pt = s * jax.random.normal(ks[4], (I, H), f32)
    b1_pt = s * jax.random.normal(ks[5], (I,), f32)
    w2_pt = s * jax.random.normal(ks[6], (H, I), f32)
    b2_pt = s * jax.random.normal(ks[7], (H,), f32)

    # QKV rows are per-head interleaved [h0: q,k,v | h1: q,k,v | ...]; split into
    # head-major Q / K / V slabs so that the kernel's per-head column slices and
    # the context concatenation order match the PyTorch reshape feeding `dense`.
    w_split = wqkv_pt.reshape(num_heads, 3, hd, H)            # (nh, 3, hd, H)
    b_split = bqkv_pt.reshape(num_heads, 3, hd)

    def slab_w(which):        # (H_in, H_out), out columns ordered (head, dim)
        return w_split[:, which].reshape(H, H).T.astype(bf16)

    def slab_b(which):
        return b_split[:, which].reshape(1, H)

    return {
        "ln1_g": jnp.ones((1, H), f32),
        "ln1_b": jnp.zeros((1, H), f32),
        "ln2_g": jnp.ones((1, H), f32),
        "ln2_b": jnp.zeros((1, H), f32),
        "wq": slab_w(0), "wk": slab_w(1), "wv": slab_w(2),
        "bq": slab_b(0), "bk": slab_b(1), "bv": slab_b(2),
        "wd": wd_pt.T.astype(bf16),             # (H, H): out = x @ W + b
        "bd": bd_pt.reshape(1, H),
        "w1": w1_pt.T.astype(bf16),             # (H, I)
        "b1": b1_pt.reshape(1, I),
        "w2": w2_pt.T.astype(bf16),             # (I, H)
        "b2": b2_pt.reshape(1, H),
    }


# ---------------------------------------------------------------------------
# Pure-JAX reference (f32, weights cast back from bf16) for a sanity check.
# ---------------------------------------------------------------------------
def _reference_layer(x, params, *, num_heads, eps):
    B, S, H = x.shape
    hd = H // num_heads
    f32 = jnp.float32

    def ln(v, g, b):
        m = jnp.mean(v, axis=-1, keepdims=True)
        var = jnp.mean((v - m) ** 2, axis=-1, keepdims=True)
        return (v - m) * jax.lax.rsqrt(var + eps) * g.reshape(-1) + b.reshape(-1)

    x = x.astype(f32)
    xn = ln(x, params["ln1_g"], params["ln1_b"])
    q = xn @ params["wq"].astype(f32) + params["bq"].reshape(-1)
    k = xn @ params["wk"].astype(f32) + params["bk"].reshape(-1)
    v = xn @ params["wv"].astype(f32) + params["bv"].reshape(-1)
    qh = q.reshape(B, S, num_heads, hd).transpose(0, 2, 1, 3)
    kh = k.reshape(B, S, num_heads, hd).transpose(0, 2, 1, 3)
    vh = v.reshape(B, S, num_heads, hd).transpose(0, 2, 1, 3)
    scores = jnp.einsum('bhqd,bhkd->bhqk', qh, kh) * (hd ** -0.5)
    probs = jax.nn.softmax(scores, axis=-1)
    ctx = jnp.einsum('bhqk,bhkd->bhqd', probs, vh)
    ctx = ctx.transpose(0, 2, 1, 3).reshape(B, S, H)
    attn = ctx @ params["wd"].astype(f32) + params["bd"].reshape(-1)
    h1 = attn + x
    hn = ln(h1, params["ln2_g"], params["ln2_b"])
    a = hn @ params["w1"].astype(f32) + params["b1"].reshape(-1)
    a = a * jax.nn.sigmoid(1.702 * a)
    return h1 + a @ params["w2"].astype(f32) + params["b2"].reshape(-1)


if __name__ == "__main__":
    # Small config consistent with the module: batch=2, seq=12 (exercises seq
    # padding + key masking), hidden=32, num_heads=4 (head_dim=8), intermediate=64.
    B, S, H, NH, I = 2, 12, 32, 4, 64

    root = jax.random.PRNGKey(0)
    k_x, k_p = jax.random.split(root)
    hidden_states = jax.random.normal(k_x, (B, S, H), jnp.float32)
    params = init_params(k_p, H, I, NH)

    layer = jax.jit(functools.partial(mplug_owl_vision_encoder_layer,
                                      num_heads=NH, eps=1e-6))
    out = jax.block_until_ready(layer(hidden_states, params))

    assert out.shape == (B, S, H) and out.dtype == jnp.float32
    assert bool(jnp.all(jnp.isfinite(out)))

    ref = _reference_layer(hidden_states, params, num_heads=NH, eps=1e-6)
    max_err = float(jnp.max(jnp.abs(out - ref)))
    assert max_err < 5e-2, f"max abs error vs reference: {max_err}"
    print("KERNEL_OK")
</pallas_src>

<mosaic_0001>
module attributes {stable_mosaic.version = 11 : i64} {
  func.func @attention_kernel(%arg0: i32, %arg1: i32, %arg2: memref<1x16x32xbf16, #tpu.memory_space<vmem>>, %arg3: memref<1x16x32xbf16, #tpu.memory_space<vmem>>, %arg4: memref<1x16x32xbf16, #tpu.memory_space<vmem>>, %arg5: memref<1x16x32xbf16, #tpu.memory_space<vmem>>) attributes {dimension_semantics = [#tpu.dimension_semantics<parallel>, #tpu.dimension_semantics<parallel>], iteration_bounds = array<i64: 2, 1>, scalar_prefetch = 0 : i64, scratch_operands = 0 : i64, tpu.core_type = #tpu.core_type<tc>, window_params = [{transform_indices = @transform_0, window_bounds = array<i64: 1, 16, 32>}, {transform_indices = @transform_1, window_bounds = array<i64: 1, 16, 32>}, {transform_indices = @transform_2, window_bounds = array<i64: 1, 16, 32>}, {transform_indices = @transform_3, window_bounds = array<i64: 1, 16, 32>}]} {
    %c0 = arith.constant 0 : index
    %c0_0 = arith.constant 0 : index
    %c0_1 = arith.constant 0 : index
    %0 = vector.load %arg2[%c0, %c0_0, %c0_1] : memref<1x16x32xbf16, #tpu.memory_space<vmem>>, vector<1x16x32xbf16>
    %1 = vector.shape_cast %0 : vector<1x16x32xbf16> to vector<16x32xbf16>
    %c0_2 = arith.constant 0 : index
    %c0_3 = arith.constant 0 : index
    %c0_4 = arith.constant 0 : index
    %2 = vector.load %arg3[%c0_2, %c0_3, %c0_4] : memref<1x16x32xbf16, #tpu.memory_space<vmem>>, vector<1x16x32xbf16>
    %3 = vector.shape_cast %2 : vector<1x16x32xbf16> to vector<16x32xbf16>
    %c0_5 = arith.constant 0 : index
    %c0_6 = arith.constant 0 : index
    %c0_7 = arith.constant 0 : index
    %4 = vector.load %arg4[%c0_5, %c0_6, %c0_7] : memref<1x16x32xbf16, #tpu.memory_space<vmem>>, vector<1x16x32xbf16>
    %5 = vector.shape_cast %4 : vector<1x16x32xbf16> to vector<16x32xbf16>
    %6 = tpu.iota {dimensions = array<i32: 1>} : vector<16x16xi32>
    %7 = vector.extract_strided_slice %1 {offsets = [0, 0], sizes = [16, 8], strides = [1, 1]} : vector<16x32xbf16> to vector<16x8xbf16>
    %8 = vector.extract_strided_slice %3 {offsets = [0, 0], sizes = [16, 8], strides = [1, 1]} : vector<16x32xbf16> to vector<16x8xbf16>
    %9 = vector.extract_strided_slice %5 {offsets = [0, 0], sizes = [16, 8], strides = [1, 1]} : vector<16x32xbf16> to vector<16x8xbf16>
    %cst = arith.constant dense<0.000000e+00> : vector<16x16xf32>
    %10 = tpu.matmul %7, %8, %cst {dimension_numbers = #tpu.dot_dimension_numbers<[1], [1], [0], [0], [0, 0, 1, 0], [], []>} : vector<16x8xbf16>, vector<16x8xbf16>, vector<16x16xf32> -> vector<16x16xf32>
    %cst_8 = arith.constant 0.353553385 : f32
    %11 = vector.broadcast %cst_8 : f32 to vector<16x16xf32>
    %12 = arith.mulf %10, %11 : vector<16x16xf32>
    %c12_i32 = arith.constant 12 : i32
    %13 = vector.broadcast %c12_i32 : i32 to vector<16x16xi32>
    %14 = arith.cmpi slt, %6, %13 : vector<16x16xi32>
    %cst_9 = arith.constant -1.000000e+30 : f32
    %15 = vector.broadcast %cst_9 : f32 to vector<16x16xf32>
    %16 = arith.select %14, %12, %15 : vector<16x16xi1>, vector<16x16xf32>
    %cst_10 = arith.constant dense<0xFF800000> : vector<16xf32>
    %17 = vector.multi_reduction <maximumf>, %16, %cst_10 [1] : vector<16x16xf32> to vector<16xf32>
    %18 = vector.shape_cast %17 : vector<16xf32> to vector<16x1xf32>
    %19 = vector.broadcast %18 : vector<16x1xf32> to vector<16x16xf32>
    %20 = arith.subf %16, %19 : vector<16x16xf32>
    %21 = math.exp %20 : vector<16x16xf32>
    %cst_11 = arith.constant dense<0.000000e+00> : vector<16xf32>
    %22 = vector.multi_reduction <add>, %21, %cst_11 [1] : vector<16x16xf32> to vector<16xf32>
    %23 = vector.shape_cast %22 : vector<16xf32> to vector<16x1xf32>
    %24 = tpu.reciprocal %23 {approx = true} : vector<16x1xf32> -> vector<16x1xf32>
    %25 = vector.broadcast %24 : vector<16x1xf32> to vector<16x16xf32>
    %26 = arith.mulf %21, %25 : vector<16x16xf32>
    %27 = arith.truncf %26 : vector<16x16xf32> to vector<16x16xbf16>
    %cst_12 = arith.constant dense<0.000000e+00> : vector<16x8xf32>
    %28 = tpu.matmul %27, %9, %cst_12 {dimension_numbers = #tpu.dot_dimension_numbers<[1], [0], [0], [1], [0, 0, 1, 1], [], []>} : vector<16x16xbf16>, vector<16x8xbf16>, vector<16x8xf32> -> vector<16x8xf32>
    %29 = vector.extract_strided_slice %1 {offsets = [0, 8], sizes = [16, 8], strides = [1, 1]} : vector<16x32xbf16> to vector<16x8xbf16>
    %30 = vector.extract_strided_slice %3 {offsets = [0, 8], sizes = [16, 8], strides = [1, 1]} : vector<16x32xbf16> to vector<16x8xbf16>
    %31 = vector.extract_strided_slice %5 {offsets = [0, 8], sizes = [16, 8], strides = [1, 1]} : vector<16x32xbf16> to vector<16x8xbf16>
    %cst_13 = arith.constant dense<0.000000e+00> : vector<16x16xf32>
    %32 = tpu.matmul %29, %30, %cst_13 {dimension_numbers = #tpu.dot_dimension_numbers<[1], [1], [0], [0], [0, 0, 1, 0], [], []>} : vector<16x8xbf16>, vector<16x8xbf16>, vector<16x16xf32> -> vector<16x16xf32>
    %cst_14 = arith.constant 0.353553385 : f32
    %33 = vector.broadcast %cst_14 : f32 to vector<16x16xf32>
    %34 = arith.mulf %32, %33 : vector<16x16xf32>
    %c12_i32_15 = arith.constant 12 : i32
    %35 = vector.broadcast %c12_i32_15 : i32 to vector<16x16xi32>
    %36 = arith.cmpi slt, %6, %35 : vector<16x16xi32>
    %cst_16 = arith.constant -1.000000e+30 : f32
    %37 = vector.broadcast %cst_16 : f32 to vector<16x16xf32>
    %38 = arith.select %36, %34, %37 : vector<16x16xi1>, vector<16x16xf32>
    %cst_17 = arith.constant dense<0xFF800000> : vector<16xf32>
    %39 = vector.multi_reduction <maximumf>, %38, %cst_17 [1] : vector<16x16xf32> to vector<16xf32>
    %40 = vector.shape_cast %39 : vector<16xf32> to vector<16x1xf32>
    %41 = vector.broadcast %40 : vector<16x1xf32> to vector<16x16xf32>
    %42 = arith.subf %38, %41 : vector<16x16xf32>
    %43 = math.exp %42 : vector<16x16xf32>
    %cst_18 = arith.constant dense<0.000000e+00> : vector<16xf32>
    %44 = vector.multi_reduction <add>, %43, %cst_18 [1] : vector<16x16xf32> to vector<16xf32>
    %45 = vector.shape_cast %44 : vector<16xf32> to vector<16x1xf32>
    %46 = tpu.reciprocal %45 {approx = true} : vector<16x1xf32> -> vector<16x1xf32>
    %47 = vector.broadcast %46 : vector<16x1xf32> to vector<16x16xf32>
    %48 = arith.mulf %43, %47 : vector<16x16xf32>
    %49 = arith.truncf %48 : vector<16x16xf32> to vector<16x16xbf16>
    %cst_19 = arith.constant dense<0.000000e+00> : vector<16x8xf32>
    %50 = tpu.matmul %49, %31, %cst_19 {dimension_numbers = #tpu.dot_dimension_numbers<[1], [0], [0], [1], [0, 0, 1, 1], [], []>} : vector<16x16xbf16>, vector<16x8xbf16>, vector<16x8xf32> -> vector<16x8xf32>
    %51 = vector.extract_strided_slice %1 {offsets = [0, 16], sizes = [16, 8], strides = [1, 1]} : vector<16x32xbf16> to vector<16x8xbf16>
    %52 = vector.extract_strided_slice %3 {offsets = [0, 16], sizes = [16, 8], strides = [1, 1]} : vector<16x32xbf16> to vector<16x8xbf16>
    %53 = vector.extract_strided_slice %5 {offsets = [0, 16], sizes = [16, 8], strides = [1, 1]} : vector<16x32xbf16> to vector<16x8xbf16>
    %cst_20 = arith.constant dense<0.000000e+00> : vector<16x16xf32>
    %54 = tpu.matmul %51, %52, %cst_20 {dimension_numbers = #tpu.dot_dimension_numbers<[1], [1], [0], [0], [0, 0, 1, 0], [], []>} : vector<16x8xbf16>, vector<16x8xbf16>, vector<16x16xf32> -> vector<16x16xf32>
    %cst_21 = arith.constant 0.353553385 : f32
    %55 = vector.broadcast %cst_21 : f32 to vector<16x16xf32>
    %56 = arith.mulf %54, %55 : vector<16x16xf32>
    %c12_i32_22 = arith.constant 12 : i32
    %57 = vector.broadcast %c12_i32_22 : i32 to vector<16x16xi32>
    %58 = arith.cmpi slt, %6, %57 : vector<16x16xi32>
    %cst_23 = arith.constant -1.000000e+30 : f32
    %59 = vector.broadcast %cst_23 : f32 to vector<16x16xf32>
    %60 = arith.select %58, %56, %59 : vector<16x16xi1>, vector<16x16xf32>
    %cst_24 = arith.constant dense<0xFF800000> : vector<16xf32>
    %61 = vector.multi_reduction <maximumf>, %60, %cst_24 [1] : vector<16x16xf32> to vector<16xf32>
    %62 = vector.shape_cast %61 : vector<16xf32> to vector<16x1xf32>
    %63 = vector.broadcast %62 : vector<16x1xf32> to vector<16x16xf32>
    %64 = arith.subf %60, %63 : vector<16x16xf32>
    %65 = math.exp %64 : vector<16x16xf32>
    %cst_25 = arith.constant dense<0.000000e+00> : vector<16xf32>
    %66 = vector.multi_reduction <add>, %65, %cst_25 [1] : vector<16x16xf32> to vector<16xf32>
    %67 = vector.shape_cast %66 : vector<16xf32> to vector<16x1xf32>
    %68 = tpu.reciprocal %67 {approx = true} : vector<16x1xf32> -> vector<16x1xf32>
    %69 = vector.broadcast %68 : vector<16x1xf32> to vector<16x16xf32>
    %70 = arith.mulf %65, %69 : vector<16x16xf32>
    %71 = arith.truncf %70 : vector<16x16xf32> to vector<16x16xbf16>
    %cst_26 = arith.constant dense<0.000000e+00> : vector<16x8xf32>
    %72 = tpu.matmul %71, %53, %cst_26 {dimension_numbers = #tpu.dot_dimension_numbers<[1], [0], [0], [1], [0, 0, 1, 1], [], []>} : vector<16x16xbf16>, vector<16x8xbf16>, vector<16x8xf32> -> vector<16x8xf32>
    %73 = vector.extract_strided_slice %1 {offsets = [0, 24], sizes = [16, 8], strides = [1, 1]} : vector<16x32xbf16> to vector<16x8xbf16>
    %74 = vector.extract_strided_slice %3 {offsets = [0, 24], sizes = [16, 8], strides = [1, 1]} : vector<16x32xbf16> to vector<16x8xbf16>
    %75 = vector.extract_strided_slice %5 {offsets = [0, 24], sizes = [16, 8], strides = [1, 1]} : vector<16x32xbf16> to vector<16x8xbf16>
    %cst_27 = arith.constant dense<0.000000e+00> : vector<16x16xf32>
    %76 = tpu.matmul %73, %74, %cst_27 {dimension_numbers = #tpu.dot_dimension_numbers<[1], [1], [0], [0], [0, 0, 1, 0], [], []>} : vector<16x8xbf16>, vector<16x8xbf16>, vector<16x16xf32> -> vector<16x16xf32>
    %cst_28 = arith.constant 0.353553385 : f32
    %77 = vector.broadcast %cst_28 : f32 to vector<16x16xf32>
    %78 = arith.mulf %76, %77 : vector<16x16xf32>
    %c12_i32_29 = arith.constant 12 : i32
    %79 = vector.broadcast %c12_i32_29 : i32 to vector<16x16xi32>
    %80 = arith.cmpi slt, %6, %79 : vector<16x16xi32>
    %cst_30 = arith.constant -1.000000e+30 : f32
    %81 = vector.broadcast %cst_30 : f32 to vector<16x16xf32>
    %82 = arith.select %80, %78, %81 : vector<16x16xi1>, vector<16x16xf32>
    %cst_31 = arith.constant dense<0xFF800000> : vector<16xf32>
    %83 = vector.multi_reduction <maximumf>, %82, %cst_31 [1] : vector<16x16xf32> to vector<16xf32>
    %84 = vector.shape_cast %83 : vector<16xf32> to vector<16x1xf32>
    %85 = vector.broadcast %84 : vector<16x1xf32> to vector<16x16xf32>
    %86 = arith.subf %82, %85 : vector<16x16xf32>
    %87 = math.exp %86 : vector<16x16xf32>
    %cst_32 = arith.constant dense<0.000000e+00> : vector<16xf32>
    %88 = vector.multi_reduction <add>, %87, %cst_32 [1] : vector<16x16xf32> to vector<16xf32>
    %89 = vector.shape_cast %88 : vector<16xf32> to vector<16x1xf32>
    %90 = tpu.reciprocal %89 {approx = true} : vector<16x1xf32> -> vector<16x1xf32>
    %91 = vector.broadcast %90 : vector<16x1xf32> to vector<16x16xf32>
    %92 = arith.mulf %87, %91 : vector<16x16xf32>
    %93 = arith.truncf %92 : vector<16x16xf32> to vector<16x16xbf16>
    %cst_33 = arith.constant dense<0.000000e+00> : vector<16x8xf32>
    %94 = tpu.matmul %93, %75, %cst_33 {dimension_numbers = #tpu.dot_dimension_numbers<[1], [0], [0], [1], [0, 0, 1, 1], [], []>} : vector<16x16xbf16>, vector<16x8xbf16>, vector<16x8xf32> -> vector<16x8xf32>
    %95 = tpu.concatenate %28, %50, %72, %94 in 1 : vector<16x8xf32>, vector<16x8xf32>, vector<16x8xf32>, vector<16x8xf32> -> vector<16x32xf32>
    %96 = arith.truncf %95 : vector<16x32xf32> to vector<16x32xbf16>
    %c0_34 = arith.constant 0 : index
    %c0_35 = arith.constant 0 : index
    %c0_36 = arith.constant 0 : index
    %97 = vector.load %arg5[%c0_34, %c0_35, %c0_36] : memref<1x16x32xbf16, #tpu.memory_space<vmem>>, vector<1x16x32xbf16>
    %98 = vector.shape_cast %97 : vector<1x16x32xbf16> to vector<16x32xbf16>
    %99 = vector.shape_cast %96 : vector<16x32xbf16> to vector<1x16x32xbf16>
    tpu.vector_store %arg5[%c0_34, %c0_35, %c0_36], %99 {strides = array<i32>} : memref<1x16x32xbf16, #tpu.memory_space<vmem>>, vector<1x16x32xbf16>,
    return
  }
  func.func @transform_0(%arg0: i32, %arg1: i32) -> (i32, i32, i32) {
    %c0_i32 = arith.constant 0 : i32
    %c0_i32_0 = arith.constant 0 : i32
    return %arg0, %arg1, %c0_i32 : i32, i32, i32
  }
  func.func @transform_1(%arg0: i32, %arg1: i32) -> (i32, i32, i32) {
    %c0_i32 = arith.constant 0 : i32
    %c0_i32_0 = arith.constant 0 : i32
    %c0_i32_1 = arith.constant 0 : i32
    return %arg0, %c0_i32, %c0_i32_0 : i32, i32, i32
  }
  func.func @transform_2(%arg0: i32, %arg1: i32) -> (i32, i32, i32) {
    %c0_i32 = arith.constant 0 : i32
    %c0_i32_0 = arith.constant 0 : i32
    %c0_i32_1 = arith.constant 0 : i32
    return %arg0, %c0_i32, %c0_i32_0 : i32, i32, i32
  }
  func.func @transform_3(%arg0: i32, %arg1: i32) -> (i32, i32, i32) {
    %c0_i32 = arith.constant 0 : i32
    %c0_i32_0 = arith.constant 0 : i32
    return %arg0, %arg1, %c0_i32 : i32, i32, i32
  }
}

module attributes {stable_mosaic.version = 11 : i64} {
  func.func @ln_qkv_kernel(%arg0: i32, %arg1: i32, %arg2: memref<1x16x32xf32, #tpu.memory_space<vmem>>, %arg3: memref<1x32xf32, #tpu.memory_space<vmem>>, %arg4: memref<1x32xf32, #tpu.memory_space<vmem>>, %arg5: memref<32x32xbf16, #tpu.memory_space<vmem>>, %arg6: memref<32x32xbf16, #tpu.memory_space<vmem>>, %arg7: memref<32x32xbf16, #tpu.memory_space<vmem>>, %arg8: memref<1x32xf32, #tpu.memory_space<vmem>>, %arg9: memref<1x32xf32, #tpu.memory_space<vmem>>, %arg10: memref<1x32xf32, #tpu.memory_space<vmem>>, %arg11: memref<1x16x32xbf16, #tpu.memory_space<vmem>>, %arg12: memref<1x16x32xbf16, #tpu.memory_space<vmem>>, %arg13: memref<1x16x32xbf16, #tpu.memory_space<vmem>>) attributes {dimension_semantics = [#tpu.dimension_semantics<parallel>, #tpu.dimension_semantics<parallel>], iteration_bounds = array<i64: 2, 1>, scalar_prefetch = 0 : i64, scratch_operands = 0 : i64, tpu.core_type = #tpu.core_type<tc>, window_params = [{transform_indices = @transform_0, window_bounds = array<i64: 1, 16, 32>}, {pipeline_mode = #tpu.pipeline_mode<synchronous>, transform_indices = @transform_1, window_bounds = array<i64: 1, 32>}, {pipeline_mode = #tpu.pipeline_mode<synchronous>, transform_indices = @transform_2, window_bounds = array<i64: 1, 32>}, {pipeline_mode = #tpu.pipeline_mode<synchronous>, transform_indices = @transform_3, window_bounds = array<i64: 32, 32>}, {pipeline_mode = #tpu.pipeline_mode<synchronous>, transform_indices = @transform_4, window_bounds = array<i64: 32, 32>}, {pipeline_mode = #tpu.pipeline_mode<synchronous>, transform_indices = @transform_5, window_bounds = array<i64: 32, 32>}, {pipeline_mode = #tpu.pipeline_mode<synchronous>, transform_indices = @transform_6, window_bounds = array<i64: 1, 32>}, {pipeline_mode = #tpu.pipeline_mode<synchronous>, transform_indices = @transform_7, window_bounds = array<i64: 1, 32>}, {pipeline_mode = #tpu.pipeline_mode<synchronous>, transform_indices = @transform_8, window_bounds = array<i64: 1, 32>}, {transform_indices = @transform_9, window_bounds = array<i64: 1, 16, 32>}, {transform_indices = @transform_10, window_bounds = array<i64: 1, 16, 32>}, {transform_indices = @transform_11, window_bounds = array<i64: 1, 16, 32>}]} {
    %c0 = arith.constant 0 : index
    %c0_0 = arith.constant 0 : index
    %c0_1 = arith.constant 0 : index
    %0 = vector.load %arg2[%c0, %c0_0, %c0_1] : memref<1x16x32xf32, #tpu.memory_space<vmem>>, vector<1x16x32xf32>
    %1 = vector.shape_cast %0 : vector<1x16x32xf32> to vector<16x32xf32>
    %cst = arith.constant dense<0.000000e+00> : vector<16xf32>
    %2 = vector.multi_reduction <add>, %1, %cst [1] : vector<16x32xf32> to vector<16xf32>
    %3 = vector.shape_cast %2 : vector<16xf32> to vector<16x1xf32>
    %cst_2 = arith.constant 3.200000e+01 : f32
    %4 = vector.broadcast %cst_2 : f32 to vector<16x1xf32>
    %5 = arith.divf %3, %4 : vector<16x1xf32>
    %6 = vector.broadcast %5 : vector<16x1xf32> to vector<16x32xf32>
    %7 = arith.subf %1, %6 : vector<16x32xf32>
    %8 = vector.broadcast %5 : vector<16x1xf32> to vector<16x32xf32>
    %9 = arith.subf %1, %8 : vector<16x32xf32>
    %10 = arith.mulf %7, %9 : vector<16x32xf32>
    %cst_3 = arith.constant dense<0.000000e+00> : vector<16xf32>
    %11 = vector.multi_reduction <add>, %10, %cst_3 [1] : vector<16x32xf32> to vector<16xf32>
    %12 = vector.shape_cast %11 : vector<16xf32> to vector<16x1xf32>
    %cst_4 = arith.constant 3.200000e+01 : f32
    %13 = vector.broadcast %cst_4 : f32 to vector<16x1xf32>
    %14 = arith.divf %12, %13 : vector<16x1xf32>
    %15 = vector.broadcast %5 : vector<16x1xf32> to vector<16x32xf32>
    %16 = arith.subf %1, %15 : vector<16x32xf32>
    %cst_5 = arith.constant 9.99999997E-7 : f32
    %17 = vector.broadcast %cst_5 : f32 to vector<16x1xf32>
    %18 = arith.addf %14, %17 : vector<16x1xf32>
    %19 = math.rsqrt %18 : vector<16x1xf32>
    %20 = vector.broadcast %19 : vector<16x1xf32> to vector<16x32xf32>
    %21 = arith.mulf %16, %20 : vector<16x32xf32>
    %c0_6 = arith.constant 0 : index
    %c0_7 = arith.constant 0 : index
    %22 = vector.load %arg3[%c0_6, %c0_7] : memref<1x32xf32, #tpu.memory_space<vmem>>, vector<1x32xf32>
    %23 = vector.shape_cast %22 : vector<1x32xf32> to vector<32xf32>
    %24 = vector.shape_cast %23 : vector<32xf32> to vector<1x32xf32>
    %25 = vector.broadcast %24 : vector<1x32xf32> to vector<16x32xf32>
    %26 = arith.mulf %21, %25 : vector<16x32xf32>
    %c0_8 = arith.constant 0 : index
    %c0_9 = arith.constant 0 : index
    %27 = vector.load %arg4[%c0_8, %c0_9] : memref<1x32xf32, #tpu.memory_space<vmem>>, vector<1x32xf32>
    %28 = vector.shape_cast %27 : vector<1x32xf32> to vector<32xf32>
    %29 = vector.shape_cast %28 : vector<32xf32> to vector<1x32xf32>
    %30 = vector.broadcast %29 : vector<1x32xf32> to vector<16x32xf32>
    %31 = arith.addf %26, %30 : vector<16x32xf32>
    %32 = arith.truncf %31 : vector<16x32xf32> to vector<16x32xbf16>
    %c0_10 = arith.constant 0 : index
    %c0_11 = arith.constant 0 : index
    %33 = vector.load %arg5[%c0_10, %c0_11] : memref<32x32xbf16, #tpu.memory_space<vmem>>, vector<32x32xbf16>
    %cst_12 = arith.constant dense<0.000000e+00> : vector<16x32xf32>
    %34 = tpu.matmul %32, %33, %cst_12 {dimension_numbers = #tpu.dot_dimension_numbers<[1], [0], [0], [1], [0, 0, 1, 1], [], []>} : vector<16x32xbf16>, vector<32x32xbf16>, vector<16x32xf32> -> vector<16x32xf32>
    %c0_13 = arith.constant 0 : index
    %c0_14 = arith.constant 0 : index
    %35 = vector.load %arg8[%c0_13, %c0_14] : memref<1x32xf32, #tpu.memory_space<vmem>>, vector<1x32xf32>
    %36 = vector.shape_cast %35 : vector<1x32xf32> to vector<32xf32>
    %37 = vector.shape_cast %36 : vector<32xf32> to vector<1x32xf32>
    %38 = vector.broadcast %37 : vector<1x32xf32> to vector<16x32xf32>
    %39 = arith.addf %34, %38 : vector<16x32xf32>
    %40 = arith.truncf %39 : vector<16x32xf32> to vector<16x32xbf16>
    %c0_15 = arith.constant 0 : index
    %c0_16 = arith.constant 0 : index
    %c0_17 = arith.constant 0 : index
    %41 = vector.load %arg11[%c0_15, %c0_16, %c0_17] : memref<1x16x32xbf16, #tpu.memory_space<vmem>>, vector<1x16x32xbf16>
    %42 = vector.shape_cast %41 : vector<1x16x32xbf16> to vector<16x32xbf16>
    %43 = vector.shape_cast %40 : vector<16x32xbf16> to vector<1x16x32xbf16>
    tpu.vector_store %arg11[%c0_15, %c0_16, %c0_17], %43 {strides = array<i32>} : memref<1x16x32xbf16, #tpu.memory_space<vmem>>, vector<1x16x32xbf16>,
    %c0_18 = arith.constant 0 : index
    %c0_19 = arith.constant 0 : index
    %44 = vector.load %arg6[%c0_18, %c0_19] : memref<32x32xbf16, #tpu.memory_space<vmem>>, vector<32x32xbf16>
    %cst_20 = arith.constant dense<0.000000e+00> : vector<16x32xf32>
    %45 = tpu.matmul %32, %44, %cst_20 {dimension_numbers = #tpu.dot_dimension_numbers<[1], [0], [0], [1], [0, 0, 1, 1], [], []>} : vector<16x32xbf16>, vector<32x32xbf16>, vector<16x32xf32> -> vector<16x32xf32>
    %c0_21 = arith.constant 0 : index
    %c0_22 = arith.constant 0 : index
    %46 = vector.load %arg9[%c0_21, %c0_22] : memref<1x32xf32, #tpu.memory_space<vmem>>, vector<1x32xf32>
    %47 = vector.shape_cast %46 : vector<1x32xf32> to vector<32xf32>
    %48 = vector.shape_cast %47 : vector<32xf32> to vector<1x32xf32>
    %49 = vector.broadcast %48 : vector<1x32xf32> to vector<16x32xf32>
    %50 = arith.addf %45, %49 : vector<16x32xf32>
    %51 = arith.truncf %50 : vector<16x32xf32> to vector<16x32xbf16>
    %c0_23 = arith.constant 0 : index
    %c0_24 = arith.constant 0 : index
    %c0_25 = arith.constant 0 : index
    %52 = vector.load %arg12[%c0_23, %c0_24, %c0_25] : memref<1x16x32xbf16, #tpu.memory_space<vmem>>, vector<1x16x32xbf16>
    %53 = vector.shape_cast %52 : vector<1x16x32xbf16> to vector<16x32xbf16>
    %54 = vector.shape_cast %51 : vector<16x32xbf16> to vector<1x16x32xbf16>
    tpu.vector_store %arg12[%c0_23, %c0_24, %c0_25], %54 {strides = array<i32>} : memref<1x16x32xbf16, #tpu.memory_space<vmem>>, vector<1x16x32xbf16>,
    %c0_26 = arith.constant 0 : index
    %c0_27 = arith.constant 0 : index
    %55 = vector.load %arg7[%c0_26, %c0_27] : memref<32x32xbf16, #tpu.memory_space<vmem>>, vector<32x32xbf16>
    %cst_28 = arith.constant dense<0.000000e+00> : vector<16x32xf32>
    %56 = tpu.matmul %32, %55, %cst_28 {dimension_numbers = #tpu.dot_dimension_numbers<[1], [0], [0], [1], [0, 0, 1, 1], [], []>} : vector<16x32xbf16>, vector<32x32xbf16>, vector<16x32xf32> -> vector<16x32xf32>
    %c0_29 = arith.constant 0 : index
    %c0_30 = arith.constant 0 : index
    %57 = vector.load %arg10[%c0_29, %c0_30] : memref<1x32xf32, #tpu.memory_space<vmem>>, vector<1x32xf32>
    %58 = vector.shape_cast %57 : vector<1x32xf32> to vector<32xf32>
    %59 = vector.shape_cast %58 : vector<32xf32> to vector<1x32xf32>
    %60 = vector.broadcast %59 : vector<1x32xf32> to vector<16x32xf32>
    %61 = arith.addf %56, %60 : vector<16x32xf32>
    %62 = arith.truncf %61 : vector<16x32xf32> to vector<16x32xbf16>
    %c0_31 = arith.constant 0 : index
    %c0_32 = arith.constant 0 : index
    %c0_33 = arith.constant 0 : index
    %63 = vector.load %arg13[%c0_31, %c0_32, %c0_33] : memref<1x16x32xbf16, #tpu.memory_space<vmem>>, vector<1x16x32xbf16>
    %64 = vector.shape_cast %63 : vector<1x16x32xbf16> to vector<16x32xbf16>
    %65 = vector.shape_cast %62 : vector<16x32xbf16> to vector<1x16x32xbf16>
    tpu.vector_store %arg13[%c0_31, %c0_32, %c0_33], %65 {strides = array<i32>} : memref<1x16x32xbf16, #tpu.memory_space<vmem>>, vector<1x16x32xbf16>,
    return
  }
  func.func @transform_0(%arg0: i32, %arg1: i32) -> (i32, i32, i32) {
    %c0_i32 = arith.constant 0 : i32
    %c0_i32_0 = arith.constant 0 : i32
    return %arg0, %arg1, %c0_i32 : i32, i32, i32
  }
  func.func @transform_1(%arg0: i32, %arg1: i32) -> (i32, i32) {
    %c0_i32 = arith.constant 0 : i32
    %c0_i32_0 = arith.constant 0 : i32
    %c0_i32_1 = arith.constant 0 : i32
    return %c0_i32, %c0_i32_0 : i32, i32
  }
  func.func @transform_2(%arg0: i32, %arg1: i32) -> (i32, i32) {
    %c0_i32 = arith.constant 0 : i32
    %c0_i32_0 = arith.constant 0 : i32
    %c0_i32_1 = arith.constant 0 : i32
    return %c0_i32, %c0_i32_0 : i32, i32
  }
  func.func @transform_3(%arg0: i32, %arg1: i32) -> (i32, i32) {
    %c0_i32 = arith.constant 0 : i32
    %c0_i32_0 = arith.constant 0 : i32
    %c0_i32_1 = arith.constant 0 : i32
    return %c0_i32, %c0_i32_0 : i32, i32
  }
  func.func @transform_4(%arg0: i32, %arg1: i32) -> (i32, i32) {
    %c0_i32 = arith.constant 0 : i32
    %c0_i32_0 = arith.constant 0 : i32
    %c0_i32_1 = arith.constant 0 : i32
    return %c0_i32, %c0_i32_0 : i32, i32
  }
  func.func @transform_5(%arg0: i32, %arg1: i32) -> (i32, i32) {
    %c0_i32 = arith.constant 0 : i32
    %c0_i32_0 = arith.constant 0 : i32
    %c0_i32_1 = arith.constant 0 : i32
    return %c0_i32, %c0_i32_0 : i32, i32
  }
  func.func @transform_6(%arg0: i32, %arg1: i32) -> (i32, i32) {
    %c0_i32 = arith.constant 0 : i32
    %c0_i32_0 = arith.constant 0 : i32
    %c0_i32_1 = arith.constant 0 : i32
    return %c0_i32, %c0_i32_0 : i32, i32
  }
  func.func @transform_7(%arg0: i32, %arg1: i32) -> (i32, i32) {
    %c0_i32 = arith.constant 0 : i32
    %c0_i32_0 = arith.constant 0 : i32
    %c0_i32_1 = arith.constant 0 : i32
    return %c0_i32, %c0_i32_0 : i32, i32
  }
  func.func @transform_8(%arg0: i32, %arg1: i32) -> (i32, i32) {
    %c0_i32 = arith.constant 0 : i32
    %c0_i32_0 = arith.constant 0 : i32
    %c0_i32_1 = arith.constant 0 : i32
    return %c0_i32, %c0_i32_0 : i32, i32
  }
  func.func @transform_9(%arg0: i32, %arg1: i32) -> (i32, i32, i32) {
    %c0_i32 = arith.constant 0 : i32
    %c0_i32_0 = arith.constant 0 : i32
    return %arg0, %arg1, %c0_i32 : i32, i32, i32
  }
  func.func @transform_10(%arg0: i32, %arg1: i32) -> (i32, i32, i32) {
    %c0_i32 = arith.constant 0 : i32
    %c0_i32_0 = arith.constant 0 : i32
    return %arg0, %arg1, %c0_i32 : i32, i32, i32
  }
  func.func @transform_11(%arg0: i32, %arg1: i32) -> (i32, i32, i32) {
    %c0_i32 = arith.constant 0 : i32
    %c0_i32_0 = arith.constant 0 : i32
    return %arg0, %arg1, %c0_i32 : i32, i32, i32
  }
}

module attributes {stable_mosaic.version = 11 : i64} {
  func.func @dense_mlp_kernel(%arg0: i32, %arg1: i32, %arg2: i32, %arg3: memref<1x16x32xbf16, #tpu.memory_space<vmem>>, %arg4: memref<1x16x32xf32, #tpu.memory_space<vmem>>, %arg5: memref<32x32xbf16, #tpu.memory_space<vmem>>, %arg6: memref<1x32xf32, #tpu.memory_space<vmem>>, %arg7: memref<1x32xf32, #tpu.memory_space<vmem>>, %arg8: memref<1x32xf32, #tpu.memory_space<vmem>>, %arg9: memref<32x64xbf16, #tpu.memory_space<vmem>>, %arg10: memref<1x64xf32, #tpu.memory_space<vmem>>, %arg11: memref<64x32xbf16, #tpu.memory_space<vmem>>, %arg12: memref<1x32xf32, #tpu.memory_space<vmem>>, %arg13: memref<1x16x32xf32, #tpu.memory_space<vmem>>, %arg14: memref<16x32xbf16, #tpu.memory_space<vmem>>) attributes {dimension_semantics = [#tpu.dimension_semantics<parallel>, #tpu.dimension_semantics<parallel>, #tpu.dimension_semantics<arbitrary>], iteration_bounds = array<i64: 2, 1, 1>, scalar_prefetch = 0 : i64, scratch_operands = 1 : i64, tpu.core_type = #tpu.core_type<tc>, window_params = [{transform_indices = @transform_0, window_bounds = array<i64: 1, 16, 32>}, {transform_indices = @transform_1, window_bounds = array<i64: 1, 16, 32>}, {pipeline_mode = #tpu.pipeline_mode<synchronous>, transform_indices = @transform_2, window_bounds = array<i64: 32, 32>}, {pipeline_mode = #tpu.pipeline_mode<synchronous>, transform_indices = @transform_3, window_bounds = array<i64: 1, 32>}, {pipeline_mode = #tpu.pipeline_mode<synchronous>, transform_indices = @transform_4, window_bounds = array<i64: 1, 32>}, {pipeline_mode = #tpu.pipeline_mode<synchronous>, transform_indices = @transform_5, window_bounds = array<i64: 1, 32>}, {transform_indices = @transform_6, window_bounds = array<i64: 32, 64>}, {transform_indices = @transform_7, window_bounds = array<i64: 1, 64>}, {transform_indices = @transform_8, window_bounds = array<i64: 64, 32>}, {pipeline_mode = #tpu.pipeline_mode<synchronous>, transform_indices = @transform_9, window_bounds = array<i64: 1, 32>}, {transform_indices = @transform_10, window_bounds = array<i64: 1, 16, 32>}]} {
    %c0_i32 = arith.constant 0 : i32
    %0 = arith.cmpi eq, %arg2, %c0_i32 : i32
    %1 = arith.extui %0 : i1 to i32
    %c0_i32_0 = arith.constant 0 : i32
    %2 = arith.cmpi ne, %1, %c0_i32_0 : i32
    scf.if %2 {
      %c0_17 = arith.constant 0 : index
      %c0_18 = arith.constant 0 : index
      %c0_19 = arith.constant 0 : index
      %28 = vector.load %arg3[%c0_17, %c0_18, %c0_19] : memref<1x16x32xbf16, #tpu.memory_space<vmem>>, vector<1x16x32xbf16>
      %29 = vector.shape_cast %28 : vector<1x16x32xbf16> to vector<16x32xbf16>
      %c0_20 = arith.constant 0 : index
      %c0_21 = arith.constant 0 : index
      %30 = vector.load %arg5[%c0_20, %c0_21] : memref<32x32xbf16, #tpu.memory_space<vmem>>, vector<32x32xbf16>
      %cst_22 = arith.constant dense<0.000000e+00> : vector<16x32xf32>
      %31 = tpu.matmul %29, %30, %cst_22 {dimension_numbers = #tpu.dot_dimension_numbers<[1], [0], [0], [1], [0, 0, 1, 1], [], []>} : vector<16x32xbf16>, vector<32x32xbf16>, vector<16x32xf32> -> vector<16x32xf32>
      %c0_23 = arith.constant 0 : index
      %c0_24 = arith.constant 0 : index
      %32 = vector.load %arg6[%c0_23, %c0_24] : memref<1x32xf32, #tpu.memory_space<vmem>>, vector<1x32xf32>
      %33 = vector.shape_cast %32 : vector<1x32xf32> to vector<32xf32>
      %34 = vector.shape_cast %33 : vector<32xf32> to vector<1x32xf32>
      %35 = vector.broadcast %34 : vector<1x32xf32> to vector<16x32xf32>
      %36 = arith.addf %31, %35 : vector<16x32xf32>
      %c0_25 = arith.constant 0 : index
      %c0_26 = arith.constant 0 : index
      %c0_27 = arith.constant 0 : index
      %37 = vector.load %arg4[%c0_25, %c0_26, %c0_27] : memref<1x16x32xf32, #tpu.memory_space<vmem>>, vector<1x16x32xf32>
      %38 = vector.shape_cast %37 : vector<1x16x32xf32> to vector<16x32xf32>
      %39 = arith.addf %36, %38 : vector<16x32xf32>
      %cst_28 = arith.constant dense<0.000000e+00> : vector<16xf32>
      %40 = vector.multi_reduction <add>, %39, %cst_28 [1] : vector<16x32xf32> to vector<16xf32>
      %41 = vector.shape_cast %40 : vector<16xf32> to vector<16x1xf32>
      %cst_29 = arith.constant 3.200000e+01 : f32
      %42 = vector.broadcast %cst_29 : f32 to vector<16x1xf32>
      %43 = arith.divf %41, %42 : vector<16x1xf32>
      %44 = vector.broadcast %43 : vector<16x1xf32> to vector<16x32xf32>
      %45 = arith.subf %39, %44 : vector<16x32xf32>
      %46 = vector.broadcast %43 : vector<16x1xf32> to vector<16x32xf32>
      %47 = arith.subf %39, %46 : vector<16x32xf32>
      %48 = arith.mulf %45, %47 : vector<16x32xf32>
      %cst_30 = arith.constant dense<0.000000e+00> : vector<16xf32>
      %49 = vector.multi_reduction <add>, %48, %cst_30 [1] : vector<16x32xf32> to vector<16xf32>
      %50 = vector.shape_cast %49 : vector<16xf32> to vector<16x1xf32>
      %cst_31 = arith.constant 3.200000e+01 : f32
      %51 = vector.broadcast %cst_31 : f32 to vector<16x1xf32>
      %52 = arith.divf %50, %51 : vector<16x1xf32>
      %53 = vector.broadcast %43 : vector<16x1xf32> to vector<16x32xf32>
      %54 = arith.subf %39, %53 : vector<16x32xf32>
      %cst_32 = arith.constant 9.99999997E-7 : f32
      %55 = vector.broadcast %cst_32 : f32 to vector<16x1xf32>
      %56 = arith.addf %52, %55 : vector<16x1xf32>
      %57 = math.rsqrt %56 : vector<16x1xf32>
      %58 = vector.broadcast %57 : vector<16x1xf32> to vector<16x32xf32>
      %59 = arith.mulf %54, %58 : vector<16x32xf32>
      %c0_33 = arith.constant 0 : index
      %c0_34 = arith.constant 0 : index
      %60 = vector.load %arg7[%c0_33, %c0_34] : memref<1x32xf32, #tpu.memory_space<vmem>>, vector<1x32xf32>
      %61 = vector.shape_cast %60 : vector<1x32xf32> to vector<32xf32>
      %62 = vector.shape_cast %61 : vector<32xf32> to vector<1x32xf32>
      %63 = vector.broadcast %62 : vector<1x32xf32> to vector<16x32xf32>
      %64 = arith.mulf %59, %63 : vector<16x32xf32>
      %c0_35 = arith.constant 0 : index
      %c0_36 = arith.constant 0 : index
      %65 = vector.load %arg8[%c0_35, %c0_36] : memref<1x32xf32, #tpu.memory_space<vmem>>, vector<1x32xf32>
      %66 = vector.shape_cast %65 : vector<1x32xf32> to vector<32xf32>
      %67 = vector.shape_cast %66 : vector<32xf32> to vector<1x32xf32>
      %68 = vector.broadcast %67 : vector<1x32xf32> to vector<16x32xf32>
      %69 = arith.addf %64, %68 : vector<16x32xf32>
      %70 = arith.truncf %69 : vector<16x32xf32> to vector<16x32xbf16>
      %c0_37 = arith.constant 0 : index
      %c0_38 = arith.constant 0 : index
      %71 = vector.load %arg14[%c0_37, %c0_38] : memref<16x32xbf16, #tpu.memory_space<vmem>>, vector<16x32xbf16>
      tpu.vector_store %arg14[%c0_37, %c0_38], %70 {strides = array<i32>} : memref<16x32xbf16, #tpu.memory_space<vmem>>, vector<16x32xbf16>,
      %c0_39 = arith.constant 0 : index
      %c0_40 = arith.constant 0 : index
      %72 = vector.load %arg12[%c0_39, %c0_40] : memref<1x32xf32, #tpu.memory_space<vmem>>, vector<1x32xf32>
      %73 = vector.shape_cast %72 : vector<1x32xf32> to vector<32xf32>
      %74 = vector.shape_cast %73 : vector<32xf32> to vector<1x32xf32>
      %75 = vector.broadcast %74 : vector<1x32xf32> to vector<16x32xf32>
      %76 = arith.addf %39, %75 : vector<16x32xf32>
      %c0_41 = arith.constant 0 : index
      %c0_42 = arith.constant 0 : index
      %c0_43 = arith.constant 0 : index
      %77 = vector.load %arg13[%c0_41, %c0_42, %c0_43] : memref<1x16x32xf32, #tpu.memory_space<vmem>>, vector<1x16x32xf32>
      %78 = vector.shape_cast %77 : vector<1x16x32xf32> to vector<16x32xf32>
      %79 = vector.shape_cast %76 : vector<16x32xf32> to vector<1x16x32xf32>
      tpu.vector_store %arg13[%c0_41, %c0_42, %c0_43], %79 {strides = array<i32>} : memref<1x16x32xf32, #tpu.memory_space<vmem>>, vector<1x16x32xf32>,
    } else {
    }
    %c0 = arith.constant 0 : index
    %c0_1 = arith.constant 0 : index
    %3 = vector.load %arg14[%c0, %c0_1] : memref<16x32xbf16, #tpu.memory_space<vmem>>, vector<16x32xbf16>
    %c0_2 = arith.constant 0 : index
    %c0_3 = arith.constant 0 : index
    %4 = vector.load %arg9[%c0_2, %c0_3] : memref<32x64xbf16, #tpu.memory_space<vmem>>, vector<32x64xbf16>
    %cst = arith.constant dense<0.000000e+00> : vector<16x64xf32>
    %5 = tpu.matmul %3, %4, %cst {dimension_numbers = #tpu.dot_dimension_numbers<[1], [0], [0], [1], [0, 0, 1, 1], [], []>} : vector<16x32xbf16>, vector<32x64xbf16>, vector<16x64xf32> -> vector<16x64xf32>
    %c0_4 = arith.constant 0 : index
    %c0_5 = arith.constant 0 : index
    %6 = vector.load %arg10[%c0_4, %c0_5] : memref<1x64xf32, #tpu.memory_space<vmem>>, vector<1x64xf32>
    %7 = vector.shape_cast %6 : vector<1x64xf32> to vector<64xf32>
    %8 = vector.shape_cast %7 : vector<64xf32> to vector<1x64xf32>
    %9 = vector.broadcast %8 : vector<1x64xf32> to vector<16x64xf32>
    %10 = arith.addf %5, %9 : vector<16x64xf32>
    %cst_6 = arith.constant 1.702000e+00 : f32
    %11 = vector.broadcast %cst_6 : f32 to vector<16x64xf32>
    %12 = arith.mulf %11, %10 : vector<16x64xf32>
    %13 = arith.negf %12 : vector<16x64xf32>
    %14 = math.exp %13 : vector<16x64xf32>
    %cst_7 = arith.constant 1.000000e+00 : f32
    %15 = vector.broadcast %cst_7 : f32 to vector<16x64xf32>
    %16 = arith.addf %15, %14 : vector<16x64xf32>
    %17 = arith.divf %15, %16 : vector<16x64xf32>
    %18 = arith.mulf %10, %17 : vector<16x64xf32>
    %c0_8 = arith.constant 0 : index
    %c0_9 = arith.constant 0 : index
    %c0_10 = arith.constant 0 : index
    %19 = vector.load %arg13[%c0_8, %c0_9, %c0_10] : memref<1x16x32xf32, #tpu.memory_space<vmem>>, vector<1x16x32xf32>
    %20 = vector.shape_cast %19 : vector<1x16x32xf32> to vector<16x32xf32>
    %21 = arith.truncf %18 : vector<16x64xf32> to vector<16x64xbf16>
    %c0_11 = arith.constant 0 : index
    %c0_12 = arith.constant 0 : index
    %22 = vector.load %arg11[%c0_11, %c0_12] : memref<64x32xbf16, #tpu.memory_space<vmem>>, vector<64x32xbf16>
    %cst_13 = arith.constant dense<0.000000e+00> : vector<16x32xf32>
    %23 = tpu.matmul %21, %22, %cst_13 {dimension_numbers = #tpu.dot_dimension_numbers<[1], [0], [0], [1], [0, 0, 1, 1], [], []>} : vector<16x64xbf16>, vector<64x32xbf16>, vector<16x32xf32> -> vector<16x32xf32>
    %24 = arith.addf %20, %23 : vector<16x32xf32>
    %c0_14 = arith.constant 0 : index
    %c0_15 = arith.constant 0 : index
    %c0_16 = arith.constant 0 : index
    %25 = vector.load %arg13[%c0_14, %c0_15, %c0_16] : memref<1x16x32xf32, #tpu.memory_space<vmem>>, vector<1x16x32xf32>
    %26 = vector.shape_cast %25 : vector<1x16x32xf32> to vector<16x32xf32>
    %27 = vector.shape_cast %24 : vector<16x32xf32> to vector<1x16x32xf32>
    tpu.vector_store %arg13[%c0_14, %c0_15, %c0_16], %27 {strides = array<i32>} : memref<1x16x32xf32, #tpu.memory_space<vmem>>, vector<1x16x32xf32>,
    return
  }
  func.func @transform_0(%arg0: i32, %arg1: i32, %arg2: i32) -> (i32, i32, i32) {
    %c0_i32 = arith.constant 0 : i32
    %c0_i32_0 = arith.constant 0 : i32
    return %arg0, %arg1, %c0_i32 : i32, i32, i32
  }
  func.func @transform_1(%arg0: i32, %arg1: i32, %arg2: i32) -> (i32, i32, i32) {
    %c0_i32 = arith.constant 0 : i32
    %c0_i32_0 = arith.constant 0 : i32
    return %arg0, %arg1, %c0_i32 : i32, i32, i32
  }
  func.func @transform_2(%arg0: i32, %arg1: i32, %arg2: i32) -> (i32, i32) {
    %c0_i32 = arith.constant 0 : i32
    %c0_i32_0 = arith.constant 0 : i32
    %c0_i32_1 = arith.constant 0 : i32
    return %c0_i32, %c0_i32_0 : i32, i32
  }
  func.func @transform_3(%arg0: i32, %arg1: i32, %arg2: i32) -> (i32, i32) {
    %c0_i32 = arith.constant 0 : i32
    %c0_i32_0 = arith.constant 0 : i32
    %c0_i32_1 = arith.constant 0 : i32
    return %c0_i32, %c0_i32_0 : i32, i32
  }
  func.func @transform_4(%arg0: i32, %arg1: i32, %arg2: i32) -> (i32, i32) {
    %c0_i32 = arith.constant 0 : i32
    %c0_i32_0 = arith.constant 0 : i32
    %c0_i32_1 = arith.constant 0 : i32
    return %c0_i32, %c0_i32_0 : i32, i32
  }
  func.func @transform_5(%arg0: i32, %arg1: i32, %arg2: i32) -> (i32, i32) {
    %c0_i32 = arith.constant 0 : i32
    %c0_i32_0 = arith.constant 0 : i32
    %c0_i32_1 = arith.constant 0 : i32
    return %c0_i32, %c0_i32_0 : i32, i32
  }
  func.func @transform_6(%arg0: i32, %arg1: i32, %arg2: i32) -> (i32, i32) {
    %c0_i32 = arith.constant 0 : i32
    %c0_i32_0 = arith.constant 0 : i32
    return %c0_i32, %arg2 : i32, i32
  }
  func.func @transform_7(%arg0: i32, %arg1: i32, %arg2: i32) -> (i32, i32) {
    %c0_i32 = arith.constant 0 : i32
    %c0_i32_0 = arith.constant 0 : i32
    return %c0_i32, %arg2 : i32, i32
  }
  func.func @transform_8(%arg0: i32, %arg1: i32, %arg2: i32) -> (i32, i32) {
    %c0_i32 = arith.constant 0 : i32
    %c0_i32_0 = arith.constant 0 : i32
    return %arg2, %c0_i32 : i32, i32
  }
  func.func @transform_9(%arg0: i32, %arg1: i32, %arg2: i32) -> (i32, i32) {
    %c0_i32 = arith.constant 0 : i32
    %c0_i32_0 = arith.constant 0 : i32
    %c0_i32_1 = arith.constant 0 : i32
    return %c0_i32, %c0_i32_0 : i32, i32
  }
  func.func @transform_10(%arg0: i32, %arg1: i32, %arg2: i32) -> (i32, i32, i32) {
    %c0_i32 = arith.constant 0 : i32
    %c0_i32_0 = arith.constant 0 : i32
    return %arg0, %arg1, %c0_i32 : i32, i32, i32
  }
}

</mosaic_0001>

<llo_original>
// kernel: mplug_owl_vision_encoder_layer.3
$region0: #{mplug_owl_vision_encoder_layer.3}
  #allocation0 [shape = 'u32[]', space=smem, size = 0x4, offset = 0x4, fixed_abs, tag = 'smem constant byte address 0x4 - core index']
  #allocation1 [shape = 'u32[144,128]{1,0:T(1,128)}', space=vmem, size = 0x12000, scoped, tag = 'internal scratch']
  %s0 = inlined_call_operand.vmem [shape: f32[2,16,32], index: 0, kind: input, shape index: {}]
  %s1 = inlined_call_operand.vmem [shape: f32[1,32], index: 1, kind: input, shape index: {}]
  %s2 = inlined_call_operand.vmem [shape: f32[1,32], index: 2, kind: input, shape index: {}]
  %s3 = inlined_call_operand.vmem [shape: bf16[32,32], index: 3, kind: input, shape index: {}]
  %s4 = inlined_call_operand.vmem [shape: bf16[32,32], index: 4, kind: input, shape index: {}]
  %s5 = inlined_call_operand.vmem [shape: bf16[32,32], index: 5, kind: input, shape index: {}]
  %s6 = inlined_call_operand.vmem [shape: f32[1,32], index: 6, kind: input, shape index: {}]
  %s7 = inlined_call_operand.vmem [shape: f32[1,32], index: 7, kind: input, shape index: {}]
  %s8 = inlined_call_operand.vmem [shape: f32[1,32], index: 8, kind: input, shape index: {}]
  %s9 = inlined_call_operand.vmem [shape: bf16[2,16,32], index: 9, kind: output, shape index: {0}]
  %s10 = inlined_call_operand.vmem [shape: bf16[2,16,32], index: 10, kind: output, shape index: {1}]
  %s11 = inlined_call_operand.vmem [shape: bf16[2,16,32], index: 11, kind: output, shape index: {2}]
  %12 = xla_tuple %s9, %s10, %s11
  %s13 = sld [smem:[#allocation0]]
  $region85: #{mplug_owl_vision_encoder_layer.3} parent=0
    _
  %s15 = ssub.s32 1, %s13
  %s16 = scalar_select 0, %s15, %s13
  loop: start=0, step=1, limit=4
  $region2: #{mplug_owl_vision_encoder_layer.3} parent=0 // loop_pre_header
    _
  $region3: #{mplug_owl_vision_encoder_layer.3} parent=0 // loop_header
    %s18 = sphi 0, %s22
    %p19 = scmp.ge.s32.totalorder %s18, 4
    %s25 = sphi 0, %s37
    %s26 = sphi 0, %s33
    %s27 = sphi 0, %s25
    %s28 = sphi 0, %s26
    %s29 = sphi 0, %s27
    %s30 = sphi 0, %s28
    %s42 = sphi 0, %s44
    %s45 = sphi 0, %s42
    %s46 = sphi 0, %s45
    %s62 = sphi 0, %s46
    %s66 = sphi 0, %s66
    %s68 = sphi 0, %s66
    %s69 = sphi 0, %s68
    %s83 = sphi 0, %s69
    %s87 = sphi 0, %s87
    %s89 = sphi 0, %s87
    %s90 = sphi 0, %s89
    %s104 = sphi 0, %s90
    %s108 = sphi 0, %s108
    %s110 = sphi 0, %s108
    %s111 = sphi 0, %s110
    %s125 = sphi 0, %s111
    %s129 = sphi 0, %s129
    %s131 = sphi 0, %s129
    %s132 = sphi 0, %s131
    %s146 = sphi 0, %s132
    %s150 = sphi 0, %s150
    %s152 = sphi 0, %s150
    %s153 = sphi 0, %s152
    %s167 = sphi 0, %s153
    %s171 = sphi 0, %s171
    %s173 = sphi 0, %s171
    %s174 = sphi 0, %s173
    %s188 = sphi 0, %s174
    %s192 = sphi 0, %s192
    %s194 = sphi 0, %s192
    %s195 = sphi 0, %s194
    %s209 = sphi 0, %s195
    %s213 = sphi 0, %s213
    %s215 = sphi 0, %s213
    %s216 = sphi 0, %s215
    %s230 = sphi 0, %s216
    %s238 = sphi 0, %s240
    %s241 = sphi 0, %s238
    %s242 = sphi 0, %s241
    %s258 = sphi 0, %s242
    %s266 = sphi 0, %s268
    %s269 = sphi 0, %s266
    %s270 = sphi 0, %s269
    %s286 = sphi 0, %s270
    %s294 = sphi 0, %s296
    %s297 = sphi 0, %s294
    %s298 = sphi 0, %s297
    %s314 = sphi 0, %s298
  $region4: #{mplug_owl_vision_encoder_layer.3} parent=0 // loop_header_branch
    %21 = sbr.rel (%p19) target = $region8
  $region5: #{mplug_owl_vision_encoder_layer.3} parent=0 // loop_body
    %s23 = ssub.s32 %s18, 1
    %s24 = ssub.s32 %s18, 2
    %s31 = sadd.s32 1, %s26
    %p32 = scmp.ge.s32.totalorder %s31, 1
    %s33 = scalar_select %p32, 0, %s31
    %s34 = sadd.s32 1, %s25
    %s35 = scalar_select %p32, %s34, %s25
    %p36 = scmp.ge.s32.totalorder %s35, 2
    %s37 = scalar_select %p36, 0, %s35
    %s38 = ssub.s32 %s25, %s37
    %s39 = ssub.s32 %s26, %s33
    %s40 = sor.u32 %s38, %s39
    %p41 = scmp.eq.s32.totalorder %s40, 0
    %s43 = sadd.s32 %s42, 1
    %s44 = scalar_select %p41, %s42, %s43
    %p47 = pneg %p41
    %p48 = scmp.eq.s32.totalorder %s18, 1
    %p49 = por %p47, %p48
    %p50 = scmp.ne.s32.totalorder %s42, %s45
    %p51 = scmp.eq.s32.totalorder %s18, 0
    %p52 = por %p50, %p51
    %p53 = scmp.ne.s32.totalorder %s42, %s45
    %p54 = scmp.eq.s32.totalorder %s23, 1
    %p55 = por %p53, %p54
    %p56 = scmp.ne.s32.totalorder %s45, %s46
    %p57 = scmp.eq.s32.totalorder %s23, 0
    %p58 = por %p56, %p57
    %p59 = scmp.ne.s32.totalorder %s45, %s46
    %p60 = scmp.eq.s32.totalorder %s24, 1
    %p61 = por %p59, %p60
    %p63 = scmp.ne.s32.totalorder %s46, %s62
    %p64 = scmp.eq.s32.totalorder %s24, 0
    %p65 = por %p63, %p64
    %s67 = sadd.s32 %s66, 1
    %p70 = scmp.eq.s32.totalorder %s18, 1
    %p71 = scmp.ne.s32.totalorder %s66, %s68
    %p72 = scmp.eq.s32.totalorder %s18, 0
    %p73 = por %p71, %p72
    %p74 = scmp.ne.s32.totalorder %s66, %s68
    %p75 = scmp.eq.s32.totalorder %s23, 1
    %p76 = por %p74, %p75
    %p77 = scmp.ne.s32.totalorder %s68, %s69
    %p78 = scmp.eq.s32.totalorder %s23, 0
    %p79 = por %p77, %p78
    %p80 = scmp.ne.s32.totalorder %s68, %s69
    %p81 = scmp.eq.s32.totalorder %s24, 1
    %p82 = por %p80, %p81
    %p84 = scmp.ne.s32.totalorder %s69, %s83
    %p85 = scmp.eq.s32.totalorder %s24, 0
    %p86 = por %p84, %p85
    %s88 = sadd.s32 %s87, 1
    %p91 = scmp.eq.s32.totalorder %s18, 1
    %p92 = scmp.ne.s32.totalorder %s87, %s89
    %p93 = scmp.eq.s32.totalorder %s18, 0
    %p94 = por %p92, %p93
    %p95 = scmp.ne.s32.totalorder %s87, %s89
    %p96 = scmp.eq.s32.totalorder %s23, 1
    %p97 = por %p95, %p96
    %p98 = scmp.ne.s32.totalorder %s89, %s90
    %p99 = scmp.eq.s32.totalorder %s23, 0
    %p100 = por %p98, %p99
    %p101 = scmp.ne.s32.totalorder %s89, %s90
    %p102 = scmp.eq.s32.totalorder %s24, 1
    %p103 = por %p101, %p102
    %p105 = scmp.ne.s32.totalorder %s90, %s104
    %p106 = scmp.eq.s32.totalorder %s24, 0
    %p107 = por %p105, %p106
    %s109 = sadd.s32 %s108, 1
    %p112 = scmp.eq.s32.totalorder %s18, 1
    %p113 = scmp.ne.s32.totalorder %s108, %s110
    %p114 = scmp.eq.s32.totalorder %s18, 0
    %p115 = por %p113, %p114
    %p116 = scmp.ne.s32.totalorder %s108, %s110
    %p117 = scmp.eq.s32.totalorder %s23, 1
    %p118 = por %p116, %p117
    %p119 = scmp.ne.s32.totalorder %s110, %s111
    %p120 = scmp.eq.s32.totalorder %s23, 0
    %p121 = por %p119, %p120
    %p122 = scmp.ne.s32.totalorder %s110, %s111
    %p123 = scmp.eq.s32.totalorder %s24, 1
    %p124 = por %p122, %p123
    %p126 = scmp.ne.s32.totalorder %s111, %s125
    %p127 = scmp.eq.s32.totalorder %s24, 0
    %p128 = por %p126, %p127
    %s130 = sadd.s32 %s129, 1
    %p133 = scmp.eq.s32.totalorder %s18, 1
    %p134 = scmp.ne.s32.totalorder %s129, %s131
    %p135 = scmp.eq.s32.totalorder %s18, 0
    %p136 = por %p134, %p135
    %p137 = scmp.ne.s32.totalorder %s129, %s131
    %p138 = scmp.eq.s32.totalorder %s23, 1
    %p139 = por %p137, %p138
    %p140 = scmp.ne.s32.totalorder %s131, %s132
    %p141 = scmp.eq.s32.totalorder %s23, 0
    %p142 = por %p140, %p141
    %p143 = scmp.ne.s32.totalorder %s131, %s132
    %p144 = scmp.eq.s32.totalorder %s24, 1
    %p145 = por %p143, %p144
    %p147 = scmp.ne.s32.totalorder %s132, %s146
    %p148 = scmp.eq.s32.totalorder %s24, 0
    %p149 = por %p147, %p148
    %s151 = sadd.s32 %s150, 1
    %p154 = scmp.eq.s32.totalorder %s18, 1
    %p155 = scmp.ne.s32.totalorder %s150, %s152
    %p156 = scmp.eq.s32.totalorder %s18, 0
    %p157 = por %p155, %p156
    %p158 = scmp.ne.s32.totalorder %s150, %s152
    %p159 = scmp.eq.s32.totalorder %s23, 1
    %p160 = por %p158, %p159
    %p161 = scmp.ne.s32.totalorder %s152, %s153
    %p162 = scmp.eq.s32.totalorder %s23, 0
    %p163 = por %p161, %p162
    %p164 = scmp.ne.s32.totalorder %s152, %s153
    %p165 = scmp.eq.s32.totalorder %s24, 1
    %p166 = por %p164, %p165
    %p168 = scmp.ne.s32.totalorder %s153, %s167
    %p169 = scmp.eq.s32.totalorder %s24, 0
    %p170 = por %p168, %p169
    %s172 = sadd.s32 %s171, 1
    %p175 = scmp.eq.s32.totalorder %s18, 1
    %p176 = scmp.ne.s32.totalorder %s171, %s173
    %p177 = scmp.eq.s32.totalorder %s18, 0
    %p178 = por %p176, %p177
    %p179 = scmp.ne.s32.totalorder %s171, %s173
    %p180 = scmp.eq.s32.totalorder %s23, 1
    %p181 = por %p179, %p180
    %p182 = scmp.ne.s32.totalorder %s173, %s174
    %p183 = scmp.eq.s32.totalorder %s23, 0
    %p184 = por %p182, %p183
    %p185 = scmp.ne.s32.totalorder %s173, %s174
    %p186 = scmp.eq.s32.totalorder %s24, 1
    %p187 = por %p185, %p186
    %p189 = scmp.ne.s32.totalorder %s174, %s188
    %p190 = scmp.eq.s32.totalorder %s24, 0
    %p191 = por %p189, %p190
    %s193 = sadd.s32 %s192, 1
    %p196 = scmp.eq.s32.totalorder %s18, 1
    %p197 = scmp.ne.s32.totalorder %s192, %s194
    %p198 = scmp.eq.s32.totalorder %s18, 0
    %p199 = por %p197, %p198
    %p200 = scmp.ne.s32.totalorder %s192, %s194
    %p201 = scmp.eq.s32.totalorder %s23, 1
    %p202 = por %p200, %p201
    %p203 = scmp.ne.s32.totalorder %s194, %s195
    %p204 = scmp.eq.s32.totalorder %s23, 0
    %p205 = por %p203, %p204
    %p206 = scmp.ne.s32.totalorder %s194, %s195
    %p207 = scmp.eq.s32.totalorder %s24, 1
    %p208 = por %p206, %p207
    %p210 = scmp.ne.s32.totalorder %s195, %s209
    %p211 = scmp.eq.s32.totalorder %s24, 0
    %p212 = por %p210, %p211
    %s214 = sadd.s32 %s213, 1
    %p217 = scmp.eq.s32.totalorder %s18, 1
    %p218 = scmp.ne.s32.totalorder %s213, %s215
    %p219 = scmp.eq.s32.totalorder %s18, 0
    %p220 = por %p218, %p219
    %p221 = scmp.ne.s32.totalorder %s213, %s215
    %p222 = scmp.eq.s32.totalorder %s23, 1
    %p223 = por %p221, %p222
    %p224 = scmp.ne.s32.totalorder %s215, %s216
    %p225 = scmp.eq.s32.totalorder %s23, 0
    %p226 = por %p224, %p225
    %p227 = scmp.ne.s32.totalorder %s215, %s216
    %p228 = scmp.eq.s32.totalorder %s24, 1
    %p229 = por %p227, %p228
    %p231 = scmp.ne.s32.totalorder %s216, %s230
    %p232 = scmp.eq.s32.totalorder %s24, 0
    %p233 = por %p231, %p232
    %s234 = ssub.s32 %s25, %s37
    %s235 = ssub.s32 %s26, %s33
    %s236 = sor.u32 %s234, %s235
    %p237 = scmp.eq.s32.totalorder %s236, 0
    %s239 = sadd.s32 %s238, 1
    %s240 = scalar_select %p237, %s238, %s239
    %p243 = pneg %p237
    %p244 = scmp.eq.s32.totalorder %s18, 1
    %p245 = por %p243, %p244
    %p246 = scmp.ne.s32.totalorder %s238, %s241
    %p247 = scmp.eq.s32.totalorder %s18, 0
    %p248 = por %p246, %p247
    %p249 = scmp.ne.s32.totalorder %s238, %s241
    %p250 = scmp.eq.s32.totalorder %s23, 1
    %p251 = por %p249, %p250
    %p252 = scmp.ne.s32.totalorder %s241, %s242
    %p253 = scmp.eq.s32.totalorder %s23, 0
    %p254 = por %p252, %p253
    %p255 = scmp.ne.s32.totalorder %s241, %s242
    %p256 = scmp.eq.s32.totalorder %s24, 1
    %p257 = por %p255, %p256
    %p259 = scmp.ne.s32.totalorder %s242, %s258
    %p260 = scmp.eq.s32.totalorder %s24, 0
    %p261 = por %p259, %p260
    %s262 = ssub.s32 %s25, %s37
    %s263 = ssub.s32 %s26, %s33
    %s264 = sor.u32 %s262, %s263
    %p265 = scmp.eq.s32.totalorder %s264, 0
    %s267 = sadd.s32 %s266, 1
    %s268 = scalar_select %p265, %s266, %s267
    %p271 = pneg %p265
    %p272 = scmp.eq.s32.totalorder %s18, 1
    %p273 = por %p271, %p272
    %p274 = scmp.ne.s32.totalorder %s266, %s269
    %p275 = scmp.eq.s32.totalorder %s18, 0
    %p276 = por %p274, %p275
    %p277 = scmp.ne.s32.totalorder %s266, %s269
    %p278 = scmp.eq.s32.totalorder %s23, 1
    %p279 = por %p277, %p278
    %p280 = scmp.ne.s32.totalorder %s269, %s270
    %p281 = scmp.eq.s32.totalorder %s23, 0
    %p282 = por %p280, %p281
    %p283 = scmp.ne.s32.totalorder %s269, %s270
    %p284 = scmp.eq.s32.totalorder %s24, 1
    %p285 = por %p283, %p284
    %p287 = scmp.ne.s32.totalorder %s270, %s286
    %p288 = scmp.eq.s32.totalorder %s24, 0
    %p289 = por %p287, %p288
    %s290 = ssub.s32 %s25, %s37
    %s291 = ssub.s32 %s26, %s33
    %s292 = sor.u32 %s290, %s291
    %p293 = scmp.eq.s32.totalorder %s292, 0
    %s295 = sadd.s32 %s294, 1
    %s296 = scalar_select %p293, %s294, %s295
    %p299 = pneg %p293
    %p300 = scmp.eq.s32.totalorder %s18, 1
    %p301 = por %p299, %p300
    %p302 = scmp.ne.s32.totalorder %s294, %s297
    %p303 = scmp.eq.s32.totalorder %s18, 0
    %p304 = por %p302, %p303
    %p305 = scmp.ne.s32.totalorder %s294, %s297
    %p306 = scmp.eq.s32.totalorder %s23, 1
    %p307 = por %p305, %p306
    %p308 = scmp.ne.s32.totalorder %s297, %s298
    %p309 = scmp.eq.s32.totalorder %s23, 0
    %p310 = por %p308, %p309
    %p311 = scmp.ne.s32.totalorder %s297, %s298
    %p312 = scmp.eq.s32.totalorder %s24, 1
    %p313 = por %p311, %p312
    %p315 = scmp.ne.s32.totalorder %s298, %s314
    %p316 = scmp.eq.s32.totalorder %s24, 0
    %p317 = por %p315, %p316
    %p318 = scmp.le.s32.totalorder 1, %s18
    %p319 = scmp.lt.s32.totalorder %s18, 3
    %p320 = pnand %p318, %p319
    %p321 = pneg %p320
    // Predicated region
    $region9: #{mplug_owl_vision_encoder_layer.3} parent=5 // pred_check
      _
    $region10: #{mplug_owl_vision_encoder_layer.3} parent=5 // pred_check_branch
      %323 = sbr.rel (%p320) target = $region12
    $region11: #{mplug_owl_vision_encoder_layer.3} parent=5 // pred_region
      %s324 = ssub.s32 %s18, 1
      // Predicated region
      $region13: #{mplug_owl_vision_encoder_layer.3} parent=11 // pred_check
        %p325 = pneg %p79
      $region14: #{mplug_owl_vision_encoder_layer.3} parent=11 // pred_check_branch
        %327 = sbr.rel (%p325) target = $region16
      $region15: #{mplug_owl_vision_encoder_layer.3} parent=11 // pred_region
        _
      $region16: #{mplug_owl_vision_encoder_layer.3} parent=11 // pred_fallthru
        _
      // Predicated region
      $region17: #{mplug_owl_vision_encoder_layer.3} parent=11 // pred_check
        %p328 = pneg %p100
      $region18: #{mplug_owl_vision_encoder_layer.3} parent=11 // pred_check_branch
        %330 = sbr.rel (%p328) target = $region20
      $region19: #{mplug_owl_vision_encoder_layer.3} parent=11 // pred_region
        _
      $region20: #{mplug_owl_vision_encoder_layer.3} parent=11 // pred_fallthru
        _
      // Predicated region
      $region21: #{mplug_owl_vision_encoder_layer.3} parent=11 // pred_check
        %p331 = pneg %p121
      $region22: #{mplug_owl_vision_encoder_layer.3} parent=11 // pred_check_branch
        %333 = sbr.rel (%p331) target = $region24
      $region23: #{mplug_owl_vision_encoder_layer.3} parent=11 // pred_region
        _
      $region24: #{mplug_owl_vision_encoder_layer.3} parent=11 // pred_fallthru
        _
      // Predicated region
      $region25: #{mplug_owl_vision_encoder_layer.3} parent=11 // pred_check
        %p334 = pneg %p142
      $region26: #{mplug_owl_vision_encoder_layer.3} parent=11 // pred_check_branch
        %336 = sbr.rel (%p334) target = $region28
      $region27: #{mplug_owl_vision_encoder_layer.3} parent=11 // pred_region
        _
      $region28: #{mplug_owl_vision_encoder_layer.3} parent=11 // pred_fallthru
        _
      // Predicated region
      $region29: #{mplug_owl_vision_encoder_layer.3} parent=11 // pred_check
        %p337 = pneg %p163
      $region30: #{mplug_owl_vision_encoder_layer.3} parent=11 // pred_check_branch
        %339 = sbr.rel (%p337) target = $region32
      $region31: #{mplug_owl_vision_encoder_layer.3} parent=11 // pred_region
        _
      $region32: #{mplug_owl_vision_encoder_layer.3} parent=11 // pred_fallthru
        _
      // Predicated region
      $region33: #{mplug_owl_vision_encoder_layer.3} parent=11 // pred_check
        %p340 = pneg %p184
      $region34: #{mplug_owl_vision_encoder_layer.3} parent=11 // pred_check_branch
        %342 = sbr.rel (%p340) target = $region36
      $region35: #{mplug_owl_vision_encoder_layer.3} parent=11 // pred_region
        _
      $region36: #{mplug_owl_vision_encoder_layer.3} parent=11 // pred_fallthru
        _
      // Predicated region
      $region37: #{mplug_owl_vision_encoder_layer.3} parent=11 // pred_check
        %p343 = pneg %p205
      $region38: #{mplug_owl_vision_encoder_layer.3} parent=11 // pred_check_branch
        %345 = sbr.rel (%p343) target = $region40
      $region39: #{mplug_owl_vision_encoder_layer.3} parent=11 // pred_region
        _
      $region40: #{mplug_owl_vision_encoder_layer.3} parent=11 // pred_fallthru
        _
      // Predicated region
      $region41: #{mplug_owl_vision_encoder_layer.3} parent=11 // pred_check
        %p346 = pneg %p226
      $region42: #{mplug_owl_vision_encoder_layer.3} parent=11 // pred_check_branch
        %348 = sbr.rel (%p346) target = $region44
      $region43: #{mplug_owl_vision_encoder_layer.3} parent=11 // pred_region
        _
      $region44: #{mplug_owl_vision_encoder_layer.3} parent=11 // pred_fallthru
        _
    $region12: #{mplug_owl_vision_encoder_layer.3} parent=5 // pred_fallthru
      _
    %p349 = scmp.lt.s32.totalorder %s18, 2
    // Predicated region
    $region45: #{mplug_owl_vision_encoder_layer.3} parent=5 // pred_check
      %p350 = pneg %p349
    $region46: #{mplug_owl_vision_encoder_layer.3} parent=5 // pred_check_branch
      %352 = sbr.rel (%p350) target = $region48
    $region47: #{mplug_owl_vision_encoder_layer.3} parent=5 // pred_region
      // Predicated region
      $region49: #{mplug_owl_vision_encoder_layer.3} parent=47 // pred_check
        %p353 = pneg %p52
      $region50: #{mplug_owl_vision_encoder_layer.3} parent=47 // pred_check_branch
        %355 = sbr.rel (%p353) target = $region52
      $region51: #{mplug_owl_vision_encoder_layer.3} parent=47 // pred_region
        %s356 = smul.u32 2, %s26
        %p357 = scmp.lt.s32.totalorder %s25, 1
        %s358 = scalar_select %p357, %s25, 1
        %p359 = scmp.lt.s32.totalorder %s356, 1
        %s360 = scalar_select %p359, %s356, 1
        %s361 = smul.addr %s358, 2
        %s362 = sadd.s32 %s360, %s361
        %s363 = smul.addr %s362, 8
        %s364 = scalar_lea.vmem %s0, %s363
        %s365 = smul.u32 2, %s26
      $region52: #{mplug_owl_vision_encoder_layer.3} parent=47 // pred_fallthru
        _
    $region48: #{mplug_owl_vision_encoder_layer.3} parent=5 // pred_fallthru
      _
    %p366 = scmp.le.s32.totalorder 1, %s18
    %p367 = scmp.lt.s32.totalorder %s18, 3
    %p368 = pnand %p366, %p367
    %p369 = pneg %p368
    // Predicated region
    $region53: #{mplug_owl_vision_encoder_layer.3} parent=5 // pred_check
      _
    $region54: #{mplug_owl_vision_encoder_layer.3} parent=5 // pred_check_branch
      %371 = sbr.rel (%p368) target = $region56
    $region55: #{mplug_owl_vision_encoder_layer.3} parent=5 // pred_region
      %s372 = ssub.s32 %s18, 1
      %s373 = smul.u32 2, %s28
      %p374 = scmp.lt.s32.totalorder %s27, 1
      %s375 = scalar_select %p374, %s27, 1
      %p376 = scmp.lt.s32.totalorder %s373, 1
      %s377 = scalar_select %p376, %s373, 1
      %s378 = smul.addr %s375, 2
      %s379 = sadd.s32 %s377, %s378
      %s380 = smul.addr %s379, 8
      %s381 = scalar_lea.vmem %s0, %s380
      %p382 = pneg %p58
      %p383 = pneg %p55
      %p384 = pneg %p79
      %p385 = pneg %p76
      %p386 = pneg %p100
      %p387 = pneg %p97
      %p388 = pneg %p121
      %p389 = pneg %p118
      %p390 = pneg %p142
      %p391 = pneg %p139
      %p392 = pneg %p163
      %p393 = pneg %p160
      %p394 = pneg %p184
      %p395 = pneg %p181
      %p396 = pneg %p205
      %p397 = pneg %p202
      %p398 = pneg %p226
      %p399 = pneg %p223
      %p400 = pneg %p254
      %p401 = pneg %p251
      %s402 = smul.u32 2, %s28
      %p403 = scmp.lt.s32.totalorder %s27, 1
      %s404 = scalar_select %p403, %s27, 1
      %p405 = scmp.lt.s32.totalorder %s402, 1
      %s406 = scalar_select %p405, %s402, 1
      %s407 = smul.addr %s404, 2
      %s408 = sadd.s32 %s406, %s407
      %s409 = smul.addr %s408, 4
      %s410 = scalar_lea.vmem %s9, %s409
      %p411 = pneg %p282
      %p412 = pneg %p279
      %s413 = smul.u32 2, %s28
      %p414 = scmp.lt.s32.totalorder %s27, 1
      %s415 = scalar_select %p414, %s27, 1
      %p416 = scmp.lt.s32.totalorder %s413, 1
      %s417 = scalar_select %p416, %s413, 1
      %s418 = smul.addr %s415, 2
      %s419 = sadd.s32 %s417, %s418
      %s420 = smul.addr %s419, 4
      %s421 = scalar_lea.vmem %s10, %s420
      %p422 = pneg %p310
      %p423 = pneg %p307
      %s424 = smul.u32 2, %s28
      %p425 = scmp.lt.s32.totalorder %s27, 1
      %s426 = scalar_select %p425, %s27, 1
      %p427 = scmp.lt.s32.totalorder %s424, 1
      %s428 = scalar_select %p427, %s424, 1
      %s429 = smul.addr %s426, 2
      %s430 = sadd.s32 %s428, %s429
      %s431 = smul.addr %s430, 4
      %s432 = scalar_lea.vmem %s11, %s431
      %s433 = smul.u32 2, %s28
      %p434 = scmp.lt.s32.totalorder %s27, 1
      %s435 = scalar_select %p434, %s27, 1
      %p436 = scmp.lt.s32.totalorder %s433, 1
      %s437 = scalar_select %p436, %s433, 1
      %s438 = smul.addr %s435, 2
      %s439 = sadd.s32 %s437, %s438
      %s440 = smul.addr %s439, 8
      %s441 = scalar_lea.vmem %s0, %s440
      %s442 = smul.u32 2, %s28
      %s443 = smul.u32 2, %s28
      %p444 = scmp.lt.s32.totalorder %s27, 1
      %s445 = scalar_select %p444, %s27, 1
      %p446 = scmp.lt.s32.totalorder %s443, 1
      %s447 = scalar_select %p446, %s443, 1
      %s448 = smul.addr %s445, 2
      %s449 = sadd.s32 %s447, %s448
      %s450 = smul.addr %s449, 4
      %s451 = scalar_lea.vmem %s9, %s450
      %s452 = smul.u32 2, %s28
      %s453 = smul.u32 2, %s28
      %p454 = scmp.lt.s32.totalorder %s27, 1
      %s455 = scalar_select %p454, %s27, 1
      %p456 = scmp.lt.s32.totalorder %s453, 1
      %s457 = scalar_select %p456, %s453, 1
      %s458 = smul.addr %s455, 2
      %s459 = sadd.s32 %s457, %s458
      %s460 = smul.addr %s459, 4
      %s461 = scalar_lea.vmem %s10, %s460
      %s462 = smul.u32 2, %s28
      %s463 = smul.u32 2, %s28
      %p464 = scmp.lt.s32.totalorder %s27, 1
      %s465 = scalar_select %p464, %s27, 1
      %p466 = scmp.lt.s32.totalorder %s463, 1
      %s467 = scalar_select %p466, %s463, 1
      %s468 = smul.addr %s465, 2
      %s469 = sadd.s32 %s467, %s468
      %s470 = smul.addr %s469, 4
      %s471 = scalar_lea.vmem %s11, %s470
      %s472 = smul.u32 2, %s28
      %v474 = vld [vmem:[%s441] sm:$0xff]
      %v475 = vld [vmem:[%s441 + $0x8] sm:$0xff]
      %vm476 = vcmask 261120
      %v477 = vsel %vm476, %v474, 0.0
      %478 = vadd.xlane.f32.xlu0 %v477
      %v479 = vpop.xlane.xlu0 %478
      %v480 = vsel %vm476, %v475, 0.0
      %481 = vadd.xlane.f32.xlu0 %v480
      %v482 = vpop.xlane.xlu0 %481
      %v483 = vrcp.pop 32.0
      %v484 = vmul.f32 %v479, %v483
      %v485 = vmul.f32 %v482, %v483
      %v486 = vsub.f32 %v474, %v484
      %v487 = vsub.f32 %v475, %v485
      %v488 = vmul.f32 %v486, %v486
      %v489 = vmul.f32 %v487, %v487
      %v490 = vsel %vm476, %v488, 0.0
      %491 = vadd.xlane.f32.xlu0 %v490
      %v492 = vpop.xlane.xlu0 %491
      %v493 = vsel %vm476, %v489, 0.0
      %494 = vadd.xlane.f32.xlu0 %v493
      %v495 = vpop.xlane.xlu0 %494
      %v496 = vmul.f32 %v492, %v483
      %v497 = vmul.f32 %v495, %v483
      %v498 = vadd.f32 %v496, 1e-06
      %v499 = vadd.f32 %v497, 1e-06
      %v500 = vrsqrt.pop %v498
      %v501 = vrsqrt.pop %v499
      %v502 = vmul.f32 %v486, %v500
      %v503 = vmul.f32 %v487, %v501
      %v504 = vld [vmem:[%s1] sm:$0x1]
      %v506 = vlaneseq
      %v507 = vshrl.u32 %v506, 7
      %v508 = vsub.s32 0, %v507
      %v509 = vrot.slane %v504, %v508
      %v511 = vmul.f32 %v502, %v509
      %v512 = vmul.f32 %v503, %v509
      %v513 = vld [vmem:[%s2] sm:$0x1]
      %v515 = vlaneseq
      %v516 = vshrl.u32 %v515, 7
      %v517 = vsub.s32 0, %v516
      %v518 = vrot.slane %v513, %v517
      %v520 = vadd.f32 %v511, %v518
      %v521 = vadd.f32 %v512, %v518
      %v522 = vpack.c.bf16 %v521, %v520
      %v523 = vld [vmem:[%s3] sm:$0xf]
      %v524 = vld [vmem:[%s3 + $0x4] sm:$0xf]
      %v525 = vld [vmem:[%s3 + $0x8] sm:$0xf]
      %v526 = vld [vmem:[%s3 + $0xc] sm:$0xf]
      %v527 = vld [vmem:[%s6] sm:$0x1]
      %v529 = vlaneseq
      %v530 = vshrl.u32 %v529, 7
      %v531 = vsub.s32 0, %v530
      %v532 = vrot.slane %v527, %v531
      %v538 = vunpack.c.l.b16 %v523
      %v539 = vunpack.c.l.b16 %v524
      %v540 = vunpack.c.l.b16 %v525
      %v541 = vunpack.c.l.b16 %v526
      %v542 = vpack.c.b16 %v539, %v538
      %v543 = vpack.c.b16 %v541, %v540
      %v547 = vsel %vm476, %v522, 0
      %549 = vmatprep.subr.bf16.mxu0 0
      %550 = vmatpush1.bf16.msra.mxu0 %v542
      %551 = vmatprep.subr.bf16.mxu0 0
      %552 = vmatpush1.bf16.msra.mxu0 %v543
      %553 = vmatprep.subr.bf16.mxu0 0
      %554 = vmatpush1.bf16.msra.mxu0 0
      %555 = vmatprep.subr.bf16.mxu0 0
      %556 = vmatpush1.bf16.msra.mxu0 0
      %557 = vmatprep.subr.bf16.mxu0 0
      %558 = vmatpush1.bf16.msra.mxu0 0
      %559 = vmatprep.subr.bf16.mxu0 0
      %560 = vmatpush1.bf16.msra.mxu0 0
      %561 = vmatprep.subr.bf16.mxu0 0
      %562 = vmatpush1.bf16.msra.mxu0 0
      %563 = vmatprep.subr.bf16.mxu0 0
      %564 = vmatpush1.bf16.msra.mxu0 0
      %565 = vmatprep.subr.bf16.mxu0 0
      %566 = vmatpush1.bf16.msra.mxu0 0
      %567 = vmatprep.subr.bf16.mxu0 0
      %568 = vmatpush1.bf16.msra.mxu0 0
      %569 = vmatprep.subr.bf16.mxu0 0
      %570 = vmatpush1.bf16.msra.mxu0 0
      %571 = vmatprep.subr.bf16.mxu0 0
      %572 = vmatpush1.bf16.msra.mxu0 0
      %573 = vmatprep.subr.bf16.mxu0 0
      %574 = vmatpush1.bf16.msra.mxu0 0
      %575 = vmatprep.subr.bf16.mxu0 0
      %576 = vmatpush1.bf16.msra.mxu0 0
      %577 = vmatprep.subr.bf16.mxu0 0
      %578 = vmatpush1.bf16.msra.mxu0 0
      %579 = vmatprep.subr.bf16.mxu0 0
      %580 = vmatpush1.bf16.msra.mxu0 0
      %581 = vmatprep.mubr.bf16.mxu0 0
      %582 = vmatmul.mubr.bf16.gmra.mrb[0].mxu0 %v547
      %v583 = vpop.f32.mrb[0].mxu0
      %v584 = vadd.f32 %v532, %v583
      %v585 = vpop.f32.mrb[0].mxu0
      %v586 = vpop.f32.mrb[0].mxu0
      %v587 = vadd.f32 %v532, %v586
      %v588 = vpop.f32.mrb[0].mxu0
      %589 = vdwg.mxu0
      %v590 = vpack.c.bf16 %v587, %v584
      %v592 = vunpack.c.l.b16 %v590
      %v593 = vunpack.c.h.b16 %v590
      %v594 = vpack.c.b16 %v592, %v592
      %v595 = vpack.c.b16 %v593, %v593
      %vm598 = vcmask 257024
      %599 = vst.msk [vmem:[%s451] sm:$0xf] %vm598, %v594
      %600 = vst.msk [vmem:[%s451 + $0x4] sm:$0xf] %vm598, %v595
      %v601 = vld [vmem:[%s4] sm:$0xf]
      %v602 = vld [vmem:[%s4 + $0x4] sm:$0xf]
      %v603 = vld [vmem:[%s4 + $0x8] sm:$0xf]
      %v604 = vld [vmem:[%s4 + $0xc] sm:$0xf]
      %v605 = vld [vmem:[%s7] sm:$0x1]
      %v607 = vlaneseq
      %v608 = vshrl.u32 %v607, 7
      %v609 = vsub.s32 0, %v608
      %v610 = vrot.slane %v605, %v609
      %v616 = vunpack.c.l.b16 %v601
      %v617 = vunpack.c.l.b16 %v602
      %v618 = vunpack.c.l.b16 %v603
      %v619 = vunpack.c.l.b16 %v604
      %v620 = vpack.c.b16 %v617, %v616
      %v621 = vpack.c.b16 %v619, %v618
      %624 = vmatprep.subr.bf16.mxu0 0
      %625 = vmatpush1.bf16.msra.mxu0 %v620
      %626 = vmatprep.subr.bf16.mxu0 0
      %627 = vmatpush1.bf16.msra.mxu0 %v621
      %628 = vmatprep.subr.bf16.mxu0 0
      %629 = vmatpush1.bf16.msra.mxu0 0
      %630 = vmatprep.subr.bf16.mxu0 0
      %631 = vmatpush1.bf16.msra.mxu0 0
      %632 = vmatprep.subr.bf16.mxu0 0
      %633 = vmatpush1.bf16.msra.mxu0 0
      %634 = vmatprep.subr.bf16.mxu0 0
      %635 = vmatpush1.bf16.msra.mxu0 0
      %636 = vmatprep.subr.bf16.mxu0 0
      %637 = vmatpush1.bf16.msra.mxu0 0
      %638 = vmatprep.subr.bf16.mxu0 0
      %639 = vmatpush1.bf16.msra.mxu0 0
      %640 = vmatprep.subr.bf16.mxu0 0
      %641 = vmatpush1.bf16.msra.mxu0 0
      %642 = vmatprep.subr.bf16.mxu0 0
      %643 = vmatpush1.bf16.msra.mxu0 0
      %644 = vmatprep.subr.bf16.mxu0 0
      %645 = vmatpush1.bf16.msra.mxu0 0
      %646 = vmatprep.subr.bf16.mxu0 0
      %647 = vmatpush1.bf16.msra.mxu0 0
      %648 = vmatprep.subr.bf16.mxu0 0
      %649 = vmatpush1.bf16.msra.mxu0 0
      %650 = vmatprep.subr.bf16.mxu0 0
      %651 = vmatpush1.bf16.msra.mxu0 0
      %652 = vmatprep.subr.bf16.mxu0 0
      %653 = vmatpush1.bf16.msra.mxu0 0
      %654 = vmatprep.subr.bf16.mxu0 0
      %655 = vmatpush1.bf16.msra.mxu0 0
      %656 = vmatprep.mubr.bf16.mxu0 0
      %657 = vmatmul.mubr.bf16.gmra.mrb[0].mxu0 %v547
      %v658 = vpop.f32.mrb[0].mxu0
      %v659 = vadd.f32 %v610, %v658
      %v660 = vpop.f32.mrb[0].mxu0
      %v661 = vpop.f32.mrb[0].mxu0
      %v662 = vadd.f32 %v610, %v661
      %v663 = vpop.f32.mrb[0].mxu0
      %664 = vdwg.mxu0
      %v665 = vpack.c.bf16 %v662, %v659
      %v667 = vunpack.c.l.b16 %v665
      %v668 = vunpack.c.h.b16 %v665
      %v669 = vpack.c.b16 %v667, %v667
      %v670 = vpack.c.b16 %v668, %v668
      %673 = vst.msk [vmem:[%s461] sm:$0xf] %vm598, %v669
      %674 = vst.msk [vmem:[%s461 + $0x4] sm:$0xf] %vm598, %v670
      %v675 = vld [vmem:[%s5] sm:$0xf]
      %v676 = vld [vmem:[%s5 + $0x4] sm:$0xf]
      %v677 = vld [vmem:[%s5 + $0x8] sm:$0xf]
      %v678 = vld [vmem:[%s5 + $0xc] sm:$0xf]
      %v679 = vld [vmem:[%s8] sm:$0x1]
      %v681 = vlaneseq
      %v682 = vshrl.u32 %v681, 7
      %v683 = vsub.s32 0, %v682
      %v684 = vrot.slane %v679, %v683
      %v690 = vunpack.c.l.b16 %v675
      %v691 = vunpack.c.l.b16 %v676
      %v692 = vunpack.c.l.b16 %v677
      %v693 = vunpack.c.l.b16 %v678
      %v694 = vpack.c.b16 %v691, %v690
      %v695 = vpack.c.b16 %v693, %v692
      %698 = vmatprep.subr.bf16.mxu0 0
      %699 = vmatpush1.bf16.msra.mxu0 %v694
      %700 = vmatprep.subr.bf16.mxu0 0
      %701 = vmatpush1.bf16.msra.mxu0 %v695
      %702 = vmatprep.subr.bf16.mxu0 0
      %703 = vmatpush1.bf16.msra.mxu0 0
      %704 = vmatprep.subr.bf16.mxu0 0
      %705 = vmatpush1.bf16.msra.mxu0 0
      %706 = vmatprep.subr.bf16.mxu0 0
      %707 = vmatpush1.bf16.msra.mxu0 0
      %708 = vmatprep.subr.bf16.mxu0 0
      %709 = vmatpush1.bf16.msra.mxu0 0
      %710 = vmatprep.subr.bf16.mxu0 0
      %711 = vmatpush1.bf16.msra.mxu0 0
      %712 = vmatprep.subr.bf16.mxu0 0
      %713 = vmatpush1.bf16.msra.mxu0 0
      %714 = vmatprep.subr.bf16.mxu0 0
      %715 = vmatpush1.bf16.msra.mxu0 0
      %716 = vmatprep.subr.bf16.mxu0 0
      %717 = vmatpush1.bf16.msra.mxu0 0
      %718 = vmatprep.subr.bf16.mxu0 0
      %719 = vmatpush1.bf16.msra.mxu0 0
      %720 = vmatprep.subr.bf16.mxu0 0
      %721 = vmatpush1.bf16.msra.mxu0 0
      %722 = vmatprep.subr.bf16.mxu0 0
      %723 = vmatpush1.bf16.msra.mxu0 0
      %724 = vmatprep.subr.bf16.mxu0 0
      %725 = vmatpush1.bf16.msra.mxu0 0
      %726 = vmatprep.subr.bf16.mxu0 0
      %727 = vmatpush1.bf16.msra.mxu0 0
      %728 = vmatprep.subr.bf16.mxu0 0
      %729 = vmatpush1.bf16.msra.mxu0 0
      %730 = vmatprep.mubr.bf16.mxu0 0
      %731 = vmatmul.mubr.bf16.gmra.mrb[0].mxu0 %v547
      %v732 = vpop.f32.mrb[0].mxu0
      %v733 = vadd.f32 %v684, %v732
      %v734 = vpop.f32.mrb[0].mxu0
      %v735 = vpop.f32.mrb[0].mxu0
      %v736 = vadd.f32 %v684, %v735
      %v737 = vpop.f32.mrb[0].mxu0
      %738 = vdwg.mxu0
      %v739 = vpack.c.bf16 %v736, %v733
      %v741 = vunpack.c.l.b16 %v739
      %v742 = vunpack.c.h.b16 %v739
      %v743 = vpack.c.b16 %v741, %v741
      %v744 = vpack.c.b16 %v742, %v742
      %747 = vst.msk [vmem:[%s471] sm:$0xf] %vm598, %v743
      %748 = vst.msk [vmem:[%s471 + $0x4] sm:$0xf] %vm598, %v744
      %s749 = smul.u32 2, %s28
      %p750 = scmp.lt.s32.totalorder %s27, 1
      %s751 = scalar_select %p750, %s27, 1
      %p752 = scmp.lt.s32.totalorder %s749, 1
      %s753 = scalar_select %p752, %s749, 1
      %s754 = smul.addr %s751, 2
      %s755 = sadd.s32 %s753, %s754
      %s756 = smul.addr %s755, 4
      %s757 = scalar_lea.vmem %s9, %s756
      %s758 = smul.u32 2, %s28
      %p759 = scmp.lt.s32.totalorder %s27, 1
      %s760 = scalar_select %p759, %s27, 1
      %p761 = scmp.lt.s32.totalorder %s758, 1
      %s762 = scalar_select %p761, %s758, 1
      %s763 = smul.addr %s760, 2
      %s764 = sadd.s32 %s762, %s763
      %s765 = smul.addr %s764, 4
      %s766 = scalar_lea.vmem %s10, %s765
      %s767 = smul.u32 2, %s28
      %p768 = scmp.lt.s32.totalorder %s27, 1
      %s769 = scalar_select %p768, %s27, 1
      %p770 = scmp.lt.s32.totalorder %s767, 1
      %s771 = scalar_select %p770, %s767, 1
      %s772 = smul.addr %s769, 2
      %s773 = sadd.s32 %s771, %s772
      %s774 = smul.addr %s773, 4
      %s775 = scalar_lea.vmem %s11, %s774
      // Predicated region
      $region57: #{mplug_owl_vision_encoder_layer.3} parent=55 // pred_check
        %p776 = pneg %p251
      $region58: #{mplug_owl_vision_encoder_layer.3} parent=55 // pred_check_branch
        %778 = sbr.rel (%p776) target = $region60
      $region59: #{mplug_owl_vision_encoder_layer.3} parent=55 // pred_region
        %s779 = smul.u32 2, %s28
      $region60: #{mplug_owl_vision_encoder_layer.3} parent=55 // pred_fallthru
        _
      // Predicated region
      $region61: #{mplug_owl_vision_encoder_layer.3} parent=55 // pred_check
        %p780 = pneg %p279
      $region62: #{mplug_owl_vision_encoder_layer.3} parent=55 // pred_check_branch
        %782 = sbr.rel (%p780) target = $region64
      $region63: #{mplug_owl_vision_encoder_layer.3} parent=55 // pred_region
        %s783 = smul.u32 2, %s28
      $region64: #{mplug_owl_vision_encoder_layer.3} parent=55 // pred_fallthru
        _
      // Predicated region
      $region65: #{mplug_owl_vision_encoder_layer.3} parent=55 // pred_check
        %p784 = pneg %p307
      $region66: #{mplug_owl_vision_encoder_layer.3} parent=55 // pred_check_branch
        %786 = sbr.rel (%p784) target = $region68
      $region67: #{mplug_owl_vision_encoder_layer.3} parent=55 // pred_region
        %s787 = smul.u32 2, %s28
      $region68: #{mplug_owl_vision_encoder_layer.3} parent=55 // pred_fallthru
        _
    $region56: #{mplug_owl_vision_encoder_layer.3} parent=5 // pred_fallthru
      _
    %p788 = scmp.le.s32.totalorder 2, %s18
    // Predicated region
    $region69: #{mplug_owl_vision_encoder_layer.3} parent=5 // pred_check
      %p789 = pneg %p788
    $region70: #{mplug_owl_vision_encoder_layer.3} parent=5 // pred_check_branch
      %791 = sbr.rel (%p789) target = $region72
    $region71: #{mplug_owl_vision_encoder_layer.3} parent=5 // pred_region
      %s792 = ssub.s32 %s18, 2
      // Predicated region
      $region73: #{mplug_owl_vision_encoder_layer.3} parent=71 // pred_check
        %p793 = pneg %p257
      $region74: #{mplug_owl_vision_encoder_layer.3} parent=71 // pred_check_branch
        %795 = sbr.rel (%p793) target = $region76
      $region75: #{mplug_owl_vision_encoder_layer.3} parent=71 // pred_region
        %s796 = smul.u32 2, %s30
        %p797 = scmp.lt.s32.totalorder %s29, 1
        %s798 = scalar_select %p797, %s29, 1
        %p799 = scmp.lt.s32.totalorder %s796, 1
        %s800 = scalar_select %p799, %s796, 1
        %s801 = smul.addr %s798, 2
        %s802 = sadd.s32 %s800, %s801
        %s803 = smul.addr %s802, 4
        %s804 = scalar_lea.vmem %s9, %s803
      $region76: #{mplug_owl_vision_encoder_layer.3} parent=71 // pred_fallthru
        _
      // Predicated region
      $region77: #{mplug_owl_vision_encoder_layer.3} parent=71 // pred_check
        %p805 = pneg %p285
      $region78: #{mplug_owl_vision_encoder_layer.3} parent=71 // pred_check_branch
        %807 = sbr.rel (%p805) target = $region80
      $region79: #{mplug_owl_vision_encoder_layer.3} parent=71 // pred_region
        %s808 = smul.u32 2, %s30
        %p809 = scmp.lt.s32.totalorder %s29, 1
        %s810 = scalar_select %p809, %s29, 1
        %p811 = scmp.lt.s32.totalorder %s808, 1
        %s812 = scalar_select %p811, %s808, 1
        %s813 = smul.addr %s810, 2
        %s814 = sadd.s32 %s812, %s813
        %s815 = smul.addr %s814, 4
        %s816 = scalar_lea.vmem %s10, %s815
      $region80: #{mplug_owl_vision_encoder_layer.3} parent=71 // pred_fallthru
        _
      // Predicated region
      $region81: #{mplug_owl_vision_encoder_layer.3} parent=71 // pred_check
        %p817 = pneg %p313
      $region82: #{mplug_owl_vision_encoder_layer.3} parent=71 // pred_check_branch
        %819 = sbr.rel (%p817) target = $region84
      $region83: #{mplug_owl_vision_encoder_layer.3} parent=71 // pred_region
        %s820 = smul.u32 2, %s30
        %p821 = scmp.lt.s32.totalorder %s29, 1
        %s822 = scalar_select %p821, %s29, 1
        %p823 = scmp.lt.s32.totalorder %s820, 1
        %s824 = scalar_select %p823, %s820, 1
        %s825 = smul.addr %s822, 2
        %s826 = sadd.s32 %s824, %s825
        %s827 = smul.addr %s826, 4
        %s828 = scalar_lea.vmem %s11, %s827
      $region84: #{mplug_owl_vision_encoder_layer.3} parent=71 // pred_fallthru
        _
    $region72: #{mplug_owl_vision_encoder_layer.3} parent=5 // pred_fallthru
      _
  $region6: #{mplug_owl_vision_encoder_layer.3} parent=0 // loop_footer
    %s22 = sadd.s32 1, %s18
  $region7: #{mplug_owl_vision_encoder_layer.3} parent=0 // loop_footer_branch
    %17 = sbr.rel target = $region3
  $region8: #{mplug_owl_vision_encoder_layer.3} parent=0 // loop_exit
    _

// kernel: mplug_owl_vision_encoder_layer.4
$region0: #{mplug_owl_vision_encoder_layer.4}
  #allocation0 [shape = 'u32[]', space=smem, size = 0x4, offset = 0x4, fixed_abs, tag = 'smem constant byte address 0x4 - core index']
  #allocation1 [shape = 'u32[144,128]{1,0:T(1,128)}', space=vmem, size = 0x12000, scoped, tag = 'internal scratch']
  %s0 = inlined_call_operand.vmem [shape: bf16[2,16,32], index: 0, kind: input, shape index: {}]
  %s1 = inlined_call_operand.vmem [shape: bf16[2,16,32], index: 1, kind: input, shape index: {}]
  %s2 = inlined_call_operand.vmem [shape: bf16[2,16,32], index: 2, kind: input, shape index: {}]
  %s3 = inlined_call_operand.vmem [shape: bf16[2,16,32], index: 3, kind: output, shape index: {}]
  %s4 = sld [smem:[#allocation0]]
  $region45: #{mplug_owl_vision_encoder_layer.4} parent=0
    _
  %s6 = ssub.s32 1, %s4
  %s7 = scalar_select 0, %s6, %s4
  loop: start=0, step=1, limit=4
  $region2: #{mplug_owl_vision_encoder_layer.4} parent=0 // loop_pre_header
    _
  $region3: #{mplug_owl_vision_encoder_layer.4} parent=0 // loop_header
    %s9 = sphi 0, %s13
    %p10 = scmp.ge.s32.totalorder %s9, 4
    %s16 = sphi 0, %s28
    %s17 = sphi 0, %s24
    %s18 = sphi 0, %s16
    %s19 = sphi 0, %s17
    %s20 = sphi 0, %s18
    %s21 = sphi 0, %s19
    %s33 = sphi 0, %s35
    %s36 = sphi 0, %s33
    %s37 = sphi 0, %s36
    %s53 = sphi 0, %s37
    %s59 = sphi 0, %s61
    %s62 = sphi 0, %s59
    %s63 = sphi 0, %s62
    %s79 = sphi 0, %s63
    %s85 = sphi 0, %s87
    %s88 = sphi 0, %s85
    %s89 = sphi 0, %s88
    %s105 = sphi 0, %s89
    %s113 = sphi 0, %s115
    %s116 = sphi 0, %s113
    %s117 = sphi 0, %s116
    %s133 = sphi 0, %s117
  $region4: #{mplug_owl_vision_encoder_layer.4} parent=0 // loop_header_branch
    %12 = sbr.rel (%p10) target = $region8
  $region5: #{mplug_owl_vision_encoder_layer.4} parent=0 // loop_body
    %s14 = ssub.s32 %s9, 1
    %s15 = ssub.s32 %s9, 2
    %s22 = sadd.s32 1, %s17
    %p23 = scmp.ge.s32.totalorder %s22, 1
    %s24 = scalar_select %p23, 0, %s22
    %s25 = sadd.s32 1, %s16
    %s26 = scalar_select %p23, %s25, %s16
    %p27 = scmp.ge.s32.totalorder %s26, 2
    %s28 = scalar_select %p27, 0, %s26
    %s29 = ssub.s32 %s16, %s28
    %s30 = ssub.s32 %s17, %s24
    %s31 = sor.u32 %s29, %s30
    %p32 = scmp.eq.s32.totalorder %s31, 0
    %s34 = sadd.s32 %s33, 1
    %s35 = scalar_select %p32, %s33, %s34
    %p38 = pneg %p32
    %p39 = scmp.eq.s32.totalorder %s9, 1
    %p40 = por %p38, %p39
    %p41 = scmp.ne.s32.totalorder %s33, %s36
    %p42 = scmp.eq.s32.totalorder %s9, 0
    %p43 = por %p41, %p42
    %p44 = scmp.ne.s32.totalorder %s33, %s36
    %p45 = scmp.eq.s32.totalorder %s14, 1
    %p46 = por %p44, %p45
    %p47 = scmp.ne.s32.totalorder %s36, %s37
    %p48 = scmp.eq.s32.totalorder %s14, 0
    %p49 = por %p47, %p48
    %p50 = scmp.ne.s32.totalorder %s36, %s37
    %p51 = scmp.eq.s32.totalorder %s15, 1
    %p52 = por %p50, %p51
    %p54 = scmp.ne.s32.totalorder %s37, %s53
    %p55 = scmp.eq.s32.totalorder %s15, 0
    %p56 = por %p54, %p55
    %s57 = ssub.s32 %s16, %s28
    %p58 = scmp.eq.s32.totalorder %s57, 0
    %s60 = sadd.s32 %s59, 1
    %s61 = scalar_select %p58, %s59, %s60
    %p64 = pneg %p58
    %p65 = scmp.eq.s32.totalorder %s9, 1
    %p66 = por %p64, %p65
    %p67 = scmp.ne.s32.totalorder %s59, %s62
    %p68 = scmp.eq.s32.totalorder %s9, 0
    %p69 = por %p67, %p68
    %p70 = scmp.ne.s32.totalorder %s59, %s62
    %p71 = scmp.eq.s32.totalorder %s14, 1
    %p72 = por %p70, %p71
    %p73 = scmp.ne.s32.totalorder %s62, %s63
    %p74 = scmp.eq.s32.totalorder %s14, 0
    %p75 = por %p73, %p74
    %p76 = scmp.ne.s32.totalorder %s62, %s63
    %p77 = scmp.eq.s32.totalorder %s15, 1
    %p78 = por %p76, %p77
    %p80 = scmp.ne.s32.totalorder %s63, %s79
    %p81 = scmp.eq.s32.totalorder %s15, 0
    %p82 = por %p80, %p81
    %s83 = ssub.s32 %s16, %s28
    %p84 = scmp.eq.s32.totalorder %s83, 0
    %s86 = sadd.s32 %s85, 1
    %s87 = scalar_select %p84, %s85, %s86
    %p90 = pneg %p84
    %p91 = scmp.eq.s32.totalorder %s9, 1
    %p92 = por %p90, %p91
    %p93 = scmp.ne.s32.totalorder %s85, %s88
    %p94 = scmp.eq.s32.totalorder %s9, 0
    %p95 = por %p93, %p94
    %p96 = scmp.ne.s32.totalorder %s85, %s88
    %p97 = scmp.eq.s32.totalorder %s14, 1
    %p98 = por %p96, %p97
    %p99 = scmp.ne.s32.totalorder %s88, %s89
    %p100 = scmp.eq.s32.totalorder %s14, 0
    %p101 = por %p99, %p100
    %p102 = scmp.ne.s32.totalorder %s88, %s89
    %p103 = scmp.eq.s32.totalorder %s15, 1
    %p104 = por %p102, %p103
    %p106 = scmp.ne.s32.totalorder %s89, %s105
    %p107 = scmp.eq.s32.totalorder %s15, 0
    %p108 = por %p106, %p107
    %s109 = ssub.s32 %s16, %s28
    %s110 = ssub.s32 %s17, %s24
    %s111 = sor.u32 %s109, %s110
    %p112 = scmp.eq.s32.totalorder %s111, 0
    %s114 = sadd.s32 %s113, 1
    %s115 = scalar_select %p112, %s113, %s114
    %p118 = pneg %p112
    %p119 = scmp.eq.s32.totalorder %s9, 1
    %p120 = por %p118, %p119
    %p121 = scmp.ne.s32.totalorder %s113, %s116
    %p122 = scmp.eq.s32.totalorder %s9, 0
    %p123 = por %p121, %p122
    %p124 = scmp.ne.s32.totalorder %s113, %s116
    %p125 = scmp.eq.s32.totalorder %s14, 1
    %p126 = por %p124, %p125
    %p127 = scmp.ne.s32.totalorder %s116, %s117
    %p128 = scmp.eq.s32.totalorder %s14, 0
    %p129 = por %p127, %p128
    %p130 = scmp.ne.s32.totalorder %s116, %s117
    %p131 = scmp.eq.s32.totalorder %s15, 1
    %p132 = por %p130, %p131
    %p134 = scmp.ne.s32.totalorder %s117, %s133
    %p135 = scmp.eq.s32.totalorder %s15, 0
    %p136 = por %p134, %p135
    %p137 = scmp.le.s32.totalorder 1, %s9
    %p138 = scmp.lt.s32.totalorder %s9, 3
    %p139 = pnand %p137, %p138
    %p140 = pneg %p139
    // Predicated region
    $region9: #{mplug_owl_vision_encoder_layer.4} parent=5 // pred_check
      _
    $region10: #{mplug_owl_vision_encoder_layer.4} parent=5 // pred_check_branch
      %142 = sbr.rel (%p139) target = $region12
    $region11: #{mplug_owl_vision_encoder_layer.4} parent=5 // pred_region
      %s143 = ssub.s32 %s9, 1
    $region12: #{mplug_owl_vision_encoder_layer.4} parent=5 // pred_fallthru
      _
    %p144 = scmp.lt.s32.totalorder %s9, 2
    // Predicated region
    $region13: #{mplug_owl_vision_encoder_layer.4} parent=5 // pred_check
      %p145 = pneg %p144
    $region14: #{mplug_owl_vision_encoder_layer.4} parent=5 // pred_check_branch
      %147 = sbr.rel (%p145) target = $region16
    $region15: #{mplug_owl_vision_encoder_layer.4} parent=5 // pred_region
      // Predicated region
      $region17: #{mplug_owl_vision_encoder_layer.4} parent=15 // pred_check
        %p148 = pneg %p43
      $region18: #{mplug_owl_vision_encoder_layer.4} parent=15 // pred_check_branch
        %150 = sbr.rel (%p148) target = $region20
      $region19: #{mplug_owl_vision_encoder_layer.4} parent=15 // pred_region
        %s151 = smul.u32 2, %s17
        %p152 = scmp.lt.s32.totalorder %s16, 1
        %s153 = scalar_select %p152, %s16, 1
        %p154 = scmp.lt.s32.totalorder %s151, 1
        %s155 = scalar_select %p154, %s151, 1
        %s156 = smul.addr %s153, 2
        %s157 = sadd.s32 %s155, %s156
        %s158 = smul.addr %s157, 4
        %s159 = scalar_lea.vmem %s0, %s158
        %s160 = smul.u32 2, %s17
      $region20: #{mplug_owl_vision_encoder_layer.4} parent=15 // pred_fallthru
        _
      // Predicated region
      $region21: #{mplug_owl_vision_encoder_layer.4} parent=15 // pred_check
        %p161 = pneg %p69
      $region22: #{mplug_owl_vision_encoder_layer.4} parent=15 // pred_check_branch
        %163 = sbr.rel (%p161) target = $region24
      $region23: #{mplug_owl_vision_encoder_layer.4} parent=15 // pred_region
        %p164 = scmp.lt.s32.totalorder %s16, 1
        %s165 = scalar_select %p164, %s16, 1
        %s166 = smul.addr %s165, 2
        %s167 = smul.addr %s166, 4
        %s168 = scalar_lea.vmem %s1, %s167
      $region24: #{mplug_owl_vision_encoder_layer.4} parent=15 // pred_fallthru
        _
      // Predicated region
      $region25: #{mplug_owl_vision_encoder_layer.4} parent=15 // pred_check
        %p169 = pneg %p95
      $region26: #{mplug_owl_vision_encoder_layer.4} parent=15 // pred_check_branch
        %171 = sbr.rel (%p169) target = $region28
      $region27: #{mplug_owl_vision_encoder_layer.4} parent=15 // pred_region
        %p172 = scmp.lt.s32.totalorder %s16, 1
        %s173 = scalar_select %p172, %s16, 1
        %s174 = smul.addr %s173, 2
        %s175 = smul.addr %s174, 4
        %s176 = scalar_lea.vmem %s2, %s175
      $region28: #{mplug_owl_vision_encoder_layer.4} parent=15 // pred_fallthru
        _
    $region16: #{mplug_owl_vision_encoder_layer.4} parent=5 // pred_fallthru
      _
    %p177 = scmp.le.s32.totalorder 1, %s9
    %p178 = scmp.lt.s32.totalorder %s9, 3
    %p179 = pnand %p177, %p178
    %p180 = pneg %p179
    // Predicated region
    $region29: #{mplug_owl_vision_encoder_layer.4} parent=5 // pred_check
      _
    $region30: #{mplug_owl_vision_encoder_layer.4} parent=5 // pred_check_branch
      %182 = sbr.rel (%p179) target = $region32
    $region31: #{mplug_owl_vision_encoder_layer.4} parent=5 // pred_region
      %s183 = ssub.s32 %s9, 1
      %s184 = smul.u32 2, %s19
      %p185 = scmp.lt.s32.totalorder %s18, 1
      %s186 = scalar_select %p185, %s18, 1
      %p187 = scmp.lt.s32.totalorder %s184, 1
      %s188 = scalar_select %p187, %s184, 1
      %s189 = smul.addr %s186, 2
      %s190 = sadd.s32 %s188, %s189
      %s191 = smul.addr %s190, 4
      %s192 = scalar_lea.vmem %s0, %s191
      %p193 = pneg %p49
      %p194 = pneg %p46
      %p195 = scmp.lt.s32.totalorder %s18, 1
      %s196 = scalar_select %p195, %s18, 1
      %s197 = smul.addr %s196, 2
      %s198 = smul.addr %s197, 4
      %s199 = scalar_lea.vmem %s1, %s198
      %p200 = pneg %p75
      %p201 = pneg %p72
      %p202 = scmp.lt.s32.totalorder %s18, 1
      %s203 = scalar_select %p202, %s18, 1
      %s204 = smul.addr %s203, 2
      %s205 = smul.addr %s204, 4
      %s206 = scalar_lea.vmem %s2, %s205
      %p207 = pneg %p101
      %p208 = pneg %p98
      %p209 = pneg %p129
      %p210 = pneg %p126
      %s211 = smul.u32 2, %s19
      %p212 = scmp.lt.s32.totalorder %s18, 1
      %s213 = scalar_select %p212, %s18, 1
      %p214 = scmp.lt.s32.totalorder %s211, 1
      %s215 = scalar_select %p214, %s211, 1
      %s216 = smul.addr %s213, 2
      %s217 = sadd.s32 %s215, %s216
      %s218 = smul.addr %s217, 4
      %s219 = scalar_lea.vmem %s3, %s218
      %s220 = smul.u32 2, %s19
      %p221 = scmp.lt.s32.totalorder %s18, 1
      %s222 = scalar_select %p221, %s18, 1
      %p223 = scmp.lt.s32.totalorder %s220, 1
      %s224 = scalar_select %p223, %s220, 1
      %s225 = smul.addr %s222, 2
      %s226 = sadd.s32 %s224, %s225
      %s227 = smul.addr %s226, 4
      %s228 = scalar_lea.vmem %s0, %s227
      %s229 = smul.u32 2, %s19
      %p230 = scmp.lt.s32.totalorder %s18, 1
      %s231 = scalar_select %p230, %s18, 1
      %s232 = smul.addr %s231, 2
      %s233 = smul.addr %s232, 4
      %s234 = scalar_lea.vmem %s1, %s233
      %p235 = scmp.lt.s32.totalorder %s18, 1
      %s236 = scalar_select %p235, %s18, 1
      %s237 = smul.addr %s236, 2
      %s238 = smul.addr %s237, 4
      %s239 = scalar_lea.vmem %s2, %s238
      %s240 = smul.u32 2, %s19
      %p241 = scmp.lt.s32.totalorder %s18, 1
      %s242 = scalar_select %p241, %s18, 1
      %p243 = scmp.lt.s32.totalorder %s240, 1
      %s244 = scalar_select %p243, %s240, 1
      %s245 = smul.addr %s242, 2
      %s246 = sadd.s32 %s244, %s245
      %s247 = smul.addr %s246, 4
      %s248 = scalar_lea.vmem %s3, %s247
      %s249 = smul.u32 2, %s19
      %v251 = vld [vmem:[%s228] sm:$0xf]
      %v252 = vld [vmem:[%s228 + $0x4] sm:$0xf]
      %v253 = vld [vmem:[%s234] sm:$0xf]
      %v254 = vld [vmem:[%s234 + $0x4] sm:$0xf]
      %v255 = vld [vmem:[%s239] sm:$0xf]
      %v256 = vld [vmem:[%s239 + $0x4] sm:$0xf]
      %v257 = vlaneseq
      %v258 = vand.u32 %v257, 127
      %v261 = vunpack.c.l.b16 %v251
      %v262 = vunpack.c.l.b16 %v252
      %v263 = vpack.c.b16 %v262, %v261
      %v266 = vunpack.c.l.b16 %v253
      %v267 = vunpack.c.l.b16 %v254
      %v268 = vpack.c.b16 %v267, %v266
      %vm269 = vcmask 64512
      %v271 = vsel %vm269, %v263, 0
      %v274 = vsel %vm269, %v268, 0
      %276 = vmatprep.subr.bf16.mxu0 0
      %277 = vmatpush1.bf16.xpose.msra.mxu0 %v274
      %278 = vmatprep.subr.bf16.mxu0 0
      %279 = vmatpush1.bf16.xpose.msra.mxu0 0
      %280 = vmatprep.subr.bf16.mxu0 0
      %281 = vmatpush1.bf16.xpose.msra.mxu0 0
      %282 = vmatprep.subr.bf16.mxu0 0
      %283 = vmatpush1.bf16.xpose.msra.mxu0 0
      %284 = vmatprep.subr.bf16.mxu0 0
      %285 = vmatpush1.bf16.xpose.msra.mxu0 0
      %286 = vmatprep.subr.bf16.mxu0 0
      %287 = vmatpush1.bf16.xpose.msra.mxu0 0
      %288 = vmatprep.subr.bf16.mxu0 0
      %289 = vmatpush1.bf16.xpose.msra.mxu0 0
      %290 = vmatprep.subr.bf16.mxu0 0
      %291 = vmatpush1.bf16.xpose.msra.mxu0 0
      %292 = vmatprep.subr.bf16.mxu0 0
      %293 = vmatpush1.bf16.xpose.msra.mxu0 0
      %294 = vmatprep.subr.bf16.mxu0 0
      %295 = vmatpush1.bf16.xpose.msra.mxu0 0
      %296 = vmatprep.subr.bf16.mxu0 0
      %297 = vmatpush1.bf16.xpose.msra.mxu0 0
      %298 = vmatprep.subr.bf16.mxu0 0
      %299 = vmatpush1.bf16.xpose.msra.mxu0 0
      %300 = vmatprep.subr.bf16.mxu0 0
      %301 = vmatpush1.bf16.xpose.msra.mxu0 0
      %302 = vmatprep.subr.bf16.mxu0 0
      %303 = vmatpush1.bf16.xpose.msra.mxu0 0
      %304 = vmatprep.subr.bf16.mxu0 0
      %305 = vmatpush1.bf16.xpose.msra.mxu0 0
      %306 = vmatprep.subr.bf16.mxu0 0
      %307 = vmatpush1.bf16.xpose.msra.mxu0 0
      %308 = vmatprep.mubr.bf16.mxu0 0
      %309 = vmatmul.mubr.bf16.gmra.mrb[0].mxu0 %v271
      %v310 = vpop.f32.mrb[0].mxu0
      %v311 = vadd.f32 0.0, %v310
      %v312 = vpop.f32.mrb[0].mxu0
      %v313 = vpop.f32.mrb[0].mxu0
      %v314 = vadd.f32 0.0, %v313
      %v315 = vpop.f32.mrb[0].mxu0
      %316 = vdwg.mxu0
      %v317 = vmul.f32 %v311, 0.35355338
      %v318 = vmul.f32 %v314, 0.35355338
      %vm319 = vcmp.lt.s32.totalorder %v258, 12
      %v320 = vsel %vm319, %v317, -1e+30
      %v321 = vsel %vm319, %v318, -1e+30
      %vm322 = vcmask 130048
      %v323 = vsel %vm322, %v320, -inf
      %324 = vmax.xlane.f32.xlu0 %v323
      %v325 = vpop.xlane.xlu0 %324
      %v326 = vsel %vm322, %v321, -inf
      %327 = vmax.xlane.f32.xlu0 %v326
      %v328 = vpop.xlane.xlu0 %327
      %v329 = vsub.f32 %v320, %v325
      %v330 = vsub.f32 %v321, %v328
      %v331 = vmul.f32 %v329, 1.442695
      %v332 = vpow.pop %v331
      %v333 = vmul.f32 %v330, 1.442695
      %v334 = vpow.pop %v333
      %v335 = vsel %vm322, %v332, 0.0
      %336 = vadd.xlane.f32.xlu0 %v335
      %v337 = vpop.xlane.xlu0 %336
      %v338 = vsel %vm322, %v334, 0.0
      %339 = vadd.xlane.f32.xlu0 %v338
      %v340 = vpop.xlane.xlu0 %339
      %v341 = vrcp.pop %v337
      %v342 = vrcp.pop %v340
      %v343 = vmul.f32 %v332, %v341
      %v344 = vmul.f32 %v334, %v342
      %v345 = vpack.c.bf16 %v344, %v343
      %v348 = vunpack.c.l.b16 %v255
      %v349 = vunpack.c.l.b16 %v256
      %v350 = vpack.c.b16 %v349, %v348
      %v353 = vsel %vm322, %v345, 0
      %355 = vmatprep.subr.bf16.mxu0 0
      %356 = vmatpush1.bf16.msra.mxu0 %v350
      %357 = vmatprep.subr.bf16.mxu0 0
      %358 = vmatpush1.bf16.msra.mxu0 0
      %359 = vmatprep.subr.bf16.mxu0 0
      %360 = vmatpush1.bf16.msra.mxu0 0
      %361 = vmatprep.subr.bf16.mxu0 0
      %362 = vmatpush1.bf16.msra.mxu0 0
      %363 = vmatprep.subr.bf16.mxu0 0
      %364 = vmatpush1.bf16.msra.mxu0 0
      %365 = vmatprep.subr.bf16.mxu0 0
      %366 = vmatpush1.bf16.msra.mxu0 0
      %367 = vmatprep.subr.bf16.mxu0 0
      %368 = vmatpush1.bf16.msra.mxu0 0
      %369 = vmatprep.subr.bf16.mxu0 0
      %370 = vmatpush1.bf16.msra.mxu0 0
      %371 = vmatprep.subr.bf16.mxu0 0
      %372 = vmatpush1.bf16.msra.mxu0 0
      %373 = vmatprep.subr.bf16.mxu0 0
      %374 = vmatpush1.bf16.msra.mxu0 0
      %375 = vmatprep.subr.bf16.mxu0 0
      %376 = vmatpush1.bf16.msra.mxu0 0
      %377 = vmatprep.subr.bf16.mxu0 0
      %378 = vmatpush1.bf16.msra.mxu0 0
      %379 = vmatprep.subr.bf16.mxu0 0
      %380 = vmatpush1.bf16.msra.mxu0 0
      %381 = vmatprep.subr.bf16.mxu0 0
      %382 = vmatpush1.bf16.msra.mxu0 0
      %383 = vmatprep.subr.bf16.mxu0 0
      %384 = vmatpush1.bf16.msra.mxu0 0
      %385 = vmatprep.subr.bf16.mxu0 0
      %386 = vmatpush1.bf16.msra.mxu0 0
      %387 = vmatprep.mubr.bf16.mxu0 0
      %388 = vmatmul.mubr.bf16.gmra.mrb[0].mxu0 %v353
      %v389 = vpop.f32.mrb[0].mxu0
      %v390 = vadd.f32 0.0, %v389
      %v391 = vpop.f32.mrb[0].mxu0
      %v392 = vpop.f32.mrb[0].mxu0
      %v393 = vadd.f32 0.0, %v392
      %v394 = vpop.f32.mrb[0].mxu0
      %395 = vdwg.mxu0
      %396 = vrot.lane.b32.xlu0 %v263, 120
      %v397 = vpop.permute.xlu0 %396
      %398 = vrot.lane.b32.xlu0 %v268, 120
      %v399 = vpop.permute.xlu0 %398
      %v401 = vsel %vm269, %v397, 0
      %v404 = vsel %vm269, %v399, 0
      %406 = vmatprep.subr.bf16.mxu0 0
      %407 = vmatpush1.bf16.xpose.msra.mxu0 %v404
      %408 = vmatprep.subr.bf16.mxu0 0
      %409 = vmatpush1.bf16.xpose.msra.mxu0 0
      %410 = vmatprep.subr.bf16.mxu0 0
      %411 = vmatpush1.bf16.xpose.msra.mxu0 0
      %412 = vmatprep.subr.bf16.mxu0 0
      %413 = vmatpush1.bf16.xpose.msra.mxu0 0
      %414 = vmatprep.subr.bf16.mxu0 0
      %415 = vmatpush1.bf16.xpose.msra.mxu0 0
      %416 = vmatprep.subr.bf16.mxu0 0
      %417 = vmatpush1.bf16.xpose.msra.mxu0 0
      %418 = vmatprep.subr.bf16.mxu0 0
      %419 = vmatpush1.bf16.xpose.msra.mxu0 0
      %420 = vmatprep.subr.bf16.mxu0 0
      %421 = vmatpush1.bf16.xpose.msra.mxu0 0
      %422 = vmatprep.subr.bf16.mxu0 0
      %423 = vmatpush1.bf16.xpose.msra.mxu0 0
      %424 = vmatprep.subr.bf16.mxu0 0
      %425 = vmatpush1.bf16.xpose.msra.mxu0 0
      %426 = vmatprep.subr.bf16.mxu0 0
      %427 = vmatpush1.bf16.xpose.msra.mxu0 0
      %428 = vmatprep.subr.bf16.mxu0 0
      %429 = vmatpush1.bf16.xpose.msra.mxu0 0
      %430 = vmatprep.subr.bf16.mxu0 0
      %431 = vmatpush1.bf16.xpose.msra.mxu0 0
      %432 = vmatprep.subr.bf16.mxu0 0
      %433 = vmatpush1.bf16.xpose.msra.mxu0 0
      %434 = vmatprep.subr.bf16.mxu0 0
      %435 = vmatpush1.bf16.xpose.msra.mxu0 0
      %436 = vmatprep.subr.bf16.mxu0 0
      %437 = vmatpush1.bf16.xpose.msra.mxu0 0
      %438 = vmatprep.mubr.bf16.mxu0 0
      %439 = vmatmul.mubr.bf16.gmra.mrb[0].mxu0 %v401
      %v440 = vpop.f32.mrb[0].mxu0
      %v441 = vadd.f32 0.0, %v440
      %v442 = vpop.f32.mrb[0].mxu0
      %v443 = vpop.f32.mrb[0].mxu0
      %v444 = vadd.f32 0.0, %v443
      %v445 = vpop.f32.mrb[0].mxu0
      %446 = vdwg.mxu0
      %v447 = vmul.f32 %v441, 0.35355338
      %v448 = vmul.f32 %v444, 0.35355338
      %v449 = vsel %vm319, %v447, -1e+30
      %v450 = vsel %vm319, %v448, -1e+30
      %v451 = vsel %vm322, %v449, -inf
      %452 = vmax.xlane.f32.xlu0 %v451
      %v453 = vpop.xlane.xlu0 %452
      %v454 = vsel %vm322, %v450, -inf
      %455 = vmax.xlane.f32.xlu0 %v454
      %v456 = vpop.xlane.xlu0 %455
      %v457 = vsub.f32 %v449, %v453
      %v458 = vsub.f32 %v450, %v456
      %v459 = vmul.f32 %v457, 1.442695
      %v460 = vpow.pop %v459
      %v461 = vmul.f32 %v458, 1.442695
      %v462 = vpow.pop %v461
      %v463 = vsel %vm322, %v460, 0.0
      %464 = vadd.xlane.f32.xlu0 %v463
      %v465 = vpop.xlane.xlu0 %464
      %v466 = vsel %vm322, %v462, 0.0
      %467 = vadd.xlane.f32.xlu0 %v466
      %v468 = vpop.xlane.xlu0 %467
      %v469 = vrcp.pop %v465
      %v470 = vrcp.pop %v468
      %v471 = vmul.f32 %v460, %v469
      %v472 = vmul.f32 %v462, %v470
      %v473 = vpack.c.bf16 %v472, %v471
      %474 = vrot.lane.b32.xlu0 %v350, 120
      %v475 = vpop.permute.xlu0 %474
      %v478 = vsel %vm322, %v473, 0
      %480 = vmatprep.subr.bf16.mxu0 0
      %481 = vmatpush1.bf16.msra.mxu0 %v475
      %482 = vmatprep.subr.bf16.mxu0 0
      %483 = vmatpush1.bf16.msra.mxu0 0
      %484 = vmatprep.subr.bf16.mxu0 0
      %485 = vmatpush1.bf16.msra.mxu0 0
      %486 = vmatprep.subr.bf16.mxu0 0
      %487 = vmatpush1.bf16.msra.mxu0 0
      %488 = vmatprep.subr.bf16.mxu0 0
      %489 = vmatpush1.bf16.msra.mxu0 0
      %490 = vmatprep.subr.bf16.mxu0 0
      %491 = vmatpush1.bf16.msra.mxu0 0
      %492 = vmatprep.subr.bf16.mxu0 0
      %493 = vmatpush1.bf16.msra.mxu0 0
      %494 = vmatprep.subr.bf16.mxu0 0
      %495 = vmatpush1.bf16.msra.mxu0 0
      %496 = vmatprep.subr.bf16.mxu0 0
      %497 = vmatpush1.bf16.msra.mxu0 0
      %498 = vmatprep.subr.bf16.mxu0 0
      %499 = vmatpush1.bf16.msra.mxu0 0
      %500 = vmatprep.subr.bf16.mxu0 0
      %501 = vmatpush1.bf16.msra.mxu0 0
      %502 = vmatprep.subr.bf16.mxu0 0
      %503 = vmatpush1.bf16.msra.mxu0 0
      %504 = vmatprep.subr.bf16.mxu0 0
      %505 = vmatpush1.bf16.msra.mxu0 0
      %506 = vmatprep.subr.bf16.mxu0 0
      %507 = vmatpush1.bf16.msra.mxu0 0
      %508 = vmatprep.subr.bf16.mxu0 0
      %509 = vmatpush1.bf16.msra.mxu0 0
      %510 = vmatprep.subr.bf16.mxu0 0
      %511 = vmatpush1.bf16.msra.mxu0 0
      %512 = vmatprep.mubr.bf16.mxu0 0
      %513 = vmatmul.mubr.bf16.gmra.mrb[0].mxu0 %v478
      %v514 = vpop.f32.mrb[0].mxu0
      %v515 = vadd.f32 0.0, %v514
      %v516 = vpop.f32.mrb[0].mxu0
      %v517 = vpop.f32.mrb[0].mxu0
      %v518 = vadd.f32 0.0, %v517
      %v519 = vpop.f32.mrb[0].mxu0
      %520 = vdwg.mxu0
      %521 = vrot.lane.b32.xlu0 %v263, 112
      %v522 = vpop.permute.xlu0 %521
      %523 = vrot.lane.b32.xlu0 %v268, 112
      %v524 = vpop.permute.xlu0 %523
      %v526 = vsel %vm269, %v522, 0
      %v529 = vsel %vm269, %v524, 0
      %531 = vmatprep.subr.bf16.mxu0 0
      %532 = vmatpush1.bf16.xpose.msra.mxu0 %v529
      %533 = vmatprep.subr.bf16.mxu0 0
      %534 = vmatpush1.bf16.xpose.msra.mxu0 0
      %535 = vmatprep.subr.bf16.mxu0 0
      %536 = vmatpush1.bf16.xpose.msra.mxu0 0
      %537 = vmatprep.subr.bf16.mxu0 0
      %538 = vmatpush1.bf16.xpose.msra.mxu0 0
      %539 = vmatprep.subr.bf16.mxu0 0
      %540 = vmatpush1.bf16.xpose.msra.mxu0 0
      %541 = vmatprep.subr.bf16.mxu0 0
      %542 = vmatpush1.bf16.xpose.msra.mxu0 0
      %543 = vmatprep.subr.bf16.mxu0 0
      %544 = vmatpush1.bf16.xpose.msra.mxu0 0
      %545 = vmatprep.subr.bf16.mxu0 0
      %546 = vmatpush1.bf16.xpose.msra.mxu0 0
      %547 = vmatprep.subr.bf16.mxu0 0
      %548 = vmatpush1.bf16.xpose.msra.mxu0 0
      %549 = vmatprep.subr.bf16.mxu0 0
      %550 = vmatpush1.bf16.xpose.msra.mxu0 0
      %551 = vmatprep.subr.bf16.mxu0 0
      %552 = vmatpush1.bf16.xpose.msra.mxu0 0
      %553 = vmatprep.subr.bf16.mxu0 0
      %554 = vmatpush1.bf16.xpose.msra.mxu0 0
      %555 = vmatprep.subr.bf16.mxu0 0
      %556 = vmatpush1.bf16.xpose.msra.mxu0 0
      %557 = vmatprep.subr.bf16.mxu0 0
      %558 = vmatpush1.bf16.xpose.msra.mxu0 0
      %559 = vmatprep.subr.bf16.mxu0 0
      %560 = vmatpush1.bf16.xpose.msra.mxu0 0
      %561 = vmatprep.subr.bf16.mxu0 0
      %562 = vmatpush1.bf16.xpose.msra.mxu0 0
      %563 = vmatprep.mubr.bf16.mxu0 0
      %564 = vmatmul.mubr.bf16.gmra.mrb[0].mxu0 %v526
      %v565 = vpop.f32.mrb[0].mxu0
      %v566 = vadd.f32 0.0, %v565
      %v567 = vpop.f32.mrb[0].mxu0
      %v568 = vpop.f32.mrb[0].mxu0
      %v569 = vadd.f32 0.0, %v568
      %v570 = vpop.f32.mrb[0].mxu0
      %571 = vdwg.mxu0
      %v572 = vmul.f32 %v566, 0.35355338
      %v573 = vmul.f32 %v569, 0.35355338
      %v574 = vsel %vm319, %v572, -1e+30
      %v575 = vsel %vm319, %v573, -1e+30
      %v576 = vsel %vm322, %v574, -inf
      %577 = vmax.xlane.f32.xlu0 %v576
      %v578 = vpop.xlane.xlu0 %577
      %v579 = vsel %vm322, %v575, -inf
      %580 = vmax.xlane.f32.xlu0 %v579
      %v581 = vpop.xlane.xlu0 %580
      %v582 = vsub.f32 %v574, %v578
      %v583 = vsub.f32 %v575, %v581
      %v584 = vmul.f32 %v582, 1.442695
      %v585 = vpow.pop %v584
      %v586 = vmul.f32 %v583, 1.442695
      %v587 = vpow.pop %v586
      %v588 = vsel %vm322, %v585, 0.0
      %589 = vadd.xlane.f32.xlu0 %v588
      %v590 = vpop.xlane.xlu0 %589
      %v591 = vsel %vm322, %v587, 0.0
      %592 = vadd.xlane.f32.xlu0 %v591
      %v593 = vpop.xlane.xlu0 %592
      %v594 = vrcp.pop %v590
      %v595 = vrcp.pop %v593
      %v596 = vmul.f32 %v585, %v594
      %v597 = vmul.f32 %v587, %v595
      %v598 = vpack.c.bf16 %v597, %v596
      %599 = vrot.lane.b32.xlu0 %v350, 112
      %v600 = vpop.permute.xlu0 %599
      %v603 = vsel %vm322, %v598, 0
      %605 = vmatprep.subr.bf16.mxu0 0
      %606 = vmatpush1.bf16.msra.mxu0 %v600
      %607 = vmatprep.subr.bf16.mxu0 0
      %608 = vmatpush1.bf16.msra.mxu0 0
      %609 = vmatprep.subr.bf16.mxu0 0
      %610 = vmatpush1.bf16.msra.mxu0 0
      %611 = vmatprep.subr.bf16.mxu0 0
      %612 = vmatpush1.bf16.msra.mxu0 0
      %613 = vmatprep.subr.bf16.mxu0 0
      %614 = vmatpush1.bf16.msra.mxu0 0
      %615 = vmatprep.subr.bf16.mxu0 0
      %616 = vmatpush1.bf16.msra.mxu0 0
      %617 = vmatprep.subr.bf16.mxu0 0
      %618 = vmatpush1.bf16.msra.mxu0 0
      %619 = vmatprep.subr.bf16.mxu0 0
      %620 = vmatpush1.bf16.msra.mxu0 0
      %621 = vmatprep.subr.bf16.mxu0 0
      %622 = vmatpush1.bf16.msra.mxu0 0
      %623 = vmatprep.subr.bf16.mxu0 0
      %624 = vmatpush1.bf16.msra.mxu0 0
      %625 = vmatprep.subr.bf16.mxu0 0
      %626 = vmatpush1.bf16.msra.mxu0 0
      %627 = vmatprep.subr.bf16.mxu0 0
      %628 = vmatpush1.bf16.msra.mxu0 0
      %629 = vmatprep.subr.bf16.mxu0 0
      %630 = vmatpush1.bf16.msra.mxu0 0
      %631 = vmatprep.subr.bf16.mxu0 0
      %632 = vmatpush1.bf16.msra.mxu0 0
      %633 = vmatprep.subr.bf16.mxu0 0
      %634 = vmatpush1.bf16.msra.mxu0 0
      %635 = vmatprep.subr.bf16.mxu0 0
      %636 = vmatpush1.bf16.msra.mxu0 0
      %637 = vmatprep.mubr.bf16.mxu0 0
      %638 = vmatmul.mubr.bf16.gmra.mrb[0].mxu0 %v603
      %v639 = vpop.f32.mrb[0].mxu0
      %v640 = vadd.f32 0.0, %v639
      %v641 = vpop.f32.mrb[0].mxu0
      %v642 = vpop.f32.mrb[0].mxu0
      %v643 = vadd.f32 0.0, %v642
      %v644 = vpop.f32.mrb[0].mxu0
      %645 = vdwg.mxu0
      %646 = vrot.lane.b32.xlu0 %v263, 104
      %v647 = vpop.permute.xlu0 %646
      %648 = vrot.lane.b32.xlu0 %v268, 104
      %v649 = vpop.permute.xlu0 %648
      %v651 = vsel %vm269, %v647, 0
      %v654 = vsel %vm269, %v649, 0
      %656 = vmatprep.subr.bf16.mxu0 0
      %657 = vmatpush1.bf16.xpose.msra.mxu0 %v654
      %658 = vmatprep.subr.bf16.mxu0 0
      %659 = vmatpush1.bf16.xpose.msra.mxu0 0
      %660 = vmatprep.subr.bf16.mxu0 0
      %661 = vmatpush1.bf16.xpose.msra.mxu0 0
      %662 = vmatprep.subr.bf16.mxu0 0
      %663 = vmatpush1.bf16.xpose.msra.mxu0 0
      %664 = vmatprep.subr.bf16.mxu0 0
      %665 = vmatpush1.bf16.xpose.msra.mxu0 0
      %666 = vmatprep.subr.bf16.mxu0 0
      %667 = vmatpush1.bf16.xpose.msra.mxu0 0
      %668 = vmatprep.subr.bf16.mxu0 0
      %669 = vmatpush1.bf16.xpose.msra.mxu0 0
      %670 = vmatprep.subr.bf16.mxu0 0
      %671 = vmatpush1.bf16.xpose.msra.mxu0 0
      %672 = vmatprep.subr.bf16.mxu0 0
      %673 = vmatpush1.bf16.xpose.msra.mxu0 0
      %674 = vmatprep.subr.bf16.mxu0 0
      %675 = vmatpush1.bf16.xpose.msra.mxu0 0
      %676 = vmatprep.subr.bf16.mxu0 0
      %677 = vmatpush1.bf16.xpose.msra.mxu0 0
      %678 = vmatprep.subr.bf16.mxu0 0
      %679 = vmatpush1.bf16.xpose.msra.mxu0 0
      %680 = vmatprep.subr.bf16.mxu0 0
      %681 = vmatpush1.bf16.xpose.msra.mxu0 0
      %682 = vmatprep.subr.bf16.mxu0 0
      %683 = vmatpush1.bf16.xpose.msra.mxu0 0
      %684 = vmatprep.subr.bf16.mxu0 0
      %685 = vmatpush1.bf16.xpose.msra.mxu0 0
      %686 = vmatprep.subr.bf16.mxu0 0
      %687 = vmatpush1.bf16.xpose.msra.mxu0 0
      %688 = vmatprep.mubr.bf16.mxu0 0
      %689 = vmatmul.mubr.bf16.gmra.mrb[0].mxu0 %v651
      %v690 = vpop.f32.mrb[0].mxu0
      %v691 = vadd.f32 0.0, %v690
      %v692 = vpop.f32.mrb[0].mxu0
      %v693 = vpop.f32.mrb[0].mxu0
      %v694 = vadd.f32 0.0, %v693
      %v695 = vpop.f32.mrb[0].mxu0
      %696 = vdwg.mxu0
      %v697 = vmul.f32 %v691, 0.35355338
      %v698 = vmul.f32 %v694, 0.35355338
      %v699 = vsel %vm319, %v697, -1e+30
      %v700 = vsel %vm319, %v698, -1e+30
      %v701 = vsel %vm322, %v699, -inf
      %702 = vmax.xlane.f32.xlu0 %v701
      %v703 = vpop.xlane.xlu0 %702
      %v704 = vsel %vm322, %v700, -inf
      %705 = vmax.xlane.f32.xlu0 %v704
      %v706 = vpop.xlane.xlu0 %705
      %v707 = vsub.f32 %v699, %v703
      %v708 = vsub.f32 %v700, %v706
      %v709 = vmul.f32 %v707, 1.442695
      %v710 = vpow.pop %v709
      %v711 = vmul.f32 %v708, 1.442695
      %v712 = vpow.pop %v711
      %v713 = vsel %vm322, %v710, 0.0
      %714 = vadd.xlane.f32.xlu0 %v713
      %v715 = vpop.xlane.xlu0 %714
      %v716 = vsel %vm322, %v712, 0.0
      %717 = vadd.xlane.f32.xlu0 %v716
      %v718 = vpop.xlane.xlu0 %717
      %v719 = vrcp.pop %v715
      %v720 = vrcp.pop %v718
      %v721 = vmul.f32 %v710, %v719
      %v722 = vmul.f32 %v712, %v720
      %v723 = vpack.c.bf16 %v722, %v721
      %724 = vrot.lane.b32.xlu0 %v350, 104
      %v725 = vpop.permute.xlu0 %724
      %v728 = vsel %vm322, %v723, 0
      %730 = vmatprep.subr.bf16.mxu0 0
      %731 = vmatpush1.bf16.msra.mxu0 %v725
      %732 = vmatprep.subr.bf16.mxu0 0
      %733 = vmatpush1.bf16.msra.mxu0 0
      %734 = vmatprep.subr.bf16.mxu0 0
      %735 = vmatpush1.bf16.msra.mxu0 0
      %736 = vmatprep.subr.bf16.mxu0 0
      %737 = vmatpush1.bf16.msra.mxu0 0
      %738 = vmatprep.subr.bf16.mxu0 0
      %739 = vmatpush1.bf16.msra.mxu0 0
      %740 = vmatprep.subr.bf16.mxu0 0
      %741 = vmatpush1.bf16.msra.mxu0 0
      %742 = vmatprep.subr.bf16.mxu0 0
      %743 = vmatpush1.bf16.msra.mxu0 0
      %744 = vmatprep.subr.bf16.mxu0 0
      %745 = vmatpush1.bf16.msra.mxu0 0
      %746 = vmatprep.subr.bf16.mxu0 0
      %747 = vmatpush1.bf16.msra.mxu0 0
      %748 = vmatprep.subr.bf16.mxu0 0
      %749 = vmatpush1.bf16.msra.mxu0 0
      %750 = vmatprep.subr.bf16.mxu0 0
      %751 = vmatpush1.bf16.msra.mxu0 0
      %752 = vmatprep.subr.bf16.mxu0 0
      %753 = vmatpush1.bf16.msra.mxu0 0
      %754 = vmatprep.subr.bf16.mxu0 0
      %755 = vmatpush1.bf16.msra.mxu0 0
      %756 = vmatprep.subr.bf16.mxu0 0
      %757 = vmatpush1.bf16.msra.mxu0 0
      %758 = vmatprep.subr.bf16.mxu0 0
      %759 = vmatpush1.bf16.msra.mxu0 0
      %760 = vmatprep.subr.bf16.mxu0 0
      %761 = vmatpush1.bf16.msra.mxu0 0
      %762 = vmatprep.mubr.bf16.mxu0 0
      %763 = vmatmul.mubr.bf16.gmra.mrb[0].mxu0 %v728
      %v764 = vpop.f32.mrb[0].mxu0
      %v765 = vadd.f32 0.0, %v764
      %v766 = vpop.f32.mrb[0].mxu0
      %v767 = vpop.f32.mrb[0].mxu0
      %v768 = vadd.f32 0.0, %v767
      %v769 = vpop.f32.mrb[0].mxu0
      %770 = vdwg.mxu0
      %773 = vrot.lane.b32.xlu0 %v515, 8
      %v774 = vpop.permute.xlu0 %773
      %775 = vrot.lane.b32.xlu0 %v518, 8
      %v776 = vpop.permute.xlu0 %775
      %781 = vrot.lane.b32.xlu0 %v640, 16
      %v782 = vpop.permute.xlu0 %781
      %783 = vrot.lane.b32.xlu0 %v643, 16
      %v784 = vpop.permute.xlu0 %783
      %789 = vrot.lane.b32.xlu0 %v765, 24
      %v790 = vpop.permute.xlu0 %789
      %791 = vrot.lane.b32.xlu0 %v768, 24
      %v792 = vpop.permute.xlu0 %791
      %v795 = vsel %vm269, %v390, %v774
      %v796 = vsel %vm269, %v393, %v776
      %v797 = vsel %vm322, %v795, %v782
      %v798 = vsel %vm322, %v796, %v784
      %vm799 = vcmask 195584
      %v800 = vsel %vm799, %v797, %v790
      %v801 = vsel %vm799, %v798, %v792
      %v802 = vpack.c.bf16 %v801, %v800
      %v804 = vunpack.c.l.b16 %v802
      %v805 = vunpack.c.h.b16 %v802
      %v806 = vpack.c.b16 %v804, %v804
      %v807 = vpack.c.b16 %v805, %v805
      %vm810 = vcmask 257024
      %811 = vst.msk [vmem:[%s248] sm:$0xf] %vm810, %v806
      %812 = vst.msk [vmem:[%s248 + $0x4] sm:$0xf] %vm810, %v807
      %s813 = smul.u32 2, %s19
      %p814 = scmp.lt.s32.totalorder %s18, 1
      %s815 = scalar_select %p814, %s18, 1
      %p816 = scmp.lt.s32.totalorder %s813, 1
      %s817 = scalar_select %p816, %s813, 1
      %s818 = smul.addr %s815, 2
      %s819 = sadd.s32 %s817, %s818
      %s820 = smul.addr %s819, 4
      %s821 = scalar_lea.vmem %s3, %s820
      // Predicated region
      $region33: #{mplug_owl_vision_encoder_layer.4} parent=31 // pred_check
        %p822 = pneg %p126
      $region34: #{mplug_owl_vision_encoder_layer.4} parent=31 // pred_check_branch
        %824 = sbr.rel (%p822) target = $region36
      $region35: #{mplug_owl_vision_encoder_layer.4} parent=31 // pred_region
        %s825 = smul.u32 2, %s19
      $region36: #{mplug_owl_vision_encoder_layer.4} parent=31 // pred_fallthru
        _
    $region32: #{mplug_owl_vision_encoder_layer.4} parent=5 // pred_fallthru
      _
    %p826 = scmp.le.s32.totalorder 2, %s9
    // Predicated region
    $region37: #{mplug_owl_vision_encoder_layer.4} parent=5 // pred_check
      %p827 = pneg %p826
    $region38: #{mplug_owl_vision_encoder_layer.4} parent=5 // pred_check_branch
      %829 = sbr.rel (%p827) target = $region40
    $region39: #{mplug_owl_vision_encoder_layer.4} parent=5 // pred_region
      %s830 = ssub.s32 %s9, 2
      // Predicated region
      $region41: #{mplug_owl_vision_encoder_layer.4} parent=39 // pred_check
        %p831 = pneg %p132
      $region42: #{mplug_owl_vision_encoder_layer.4} parent=39 // pred_check_branch
        %833 = sbr.rel (%p831) target = $region44
      $region43: #{mplug_owl_vision_encoder_layer.4} parent=39 // pred_region
        %s834 = smul.u32 2, %s21
        %p835 = scmp.lt.s32.totalorder %s20, 1
        %s836 = scalar_select %p835, %s20, 1
        %p837 = scmp.lt.s32.totalorder %s834, 1
        %s838 = scalar_select %p837, %s834, 1
        %s839 = smul.addr %s836, 2
        %s840 = sadd.s32 %s838, %s839
        %s841 = smul.addr %s840, 4
        %s842 = scalar_lea.vmem %s3, %s841
      $region44: #{mplug_owl_vision_encoder_layer.4} parent=39 // pred_fallthru
        _
    $region40: #{mplug_owl_vision_encoder_layer.4} parent=5 // pred_fallthru
      _
  $region6: #{mplug_owl_vision_encoder_layer.4} parent=0 // loop_footer
    %s13 = sadd.s32 1, %s9
  $region7: #{mplug_owl_vision_encoder_layer.4} parent=0 // loop_footer_branch
    %8 = sbr.rel target = $region3
  $region8: #{mplug_owl_vision_encoder_layer.4} parent=0 // loop_exit
    _

// kernel: mplug_owl_vision_encoder_layer.5
$region0: #{mplug_owl_vision_encoder_layer.5}
  #allocation0 [shape = 'u32[]', space=smem, size = 0x4, offset = 0x4, fixed_abs, tag = 'smem constant byte address 0x4 - core index']
  #allocation1 [shape = 'u32[144,128]{1,0:T(1,128)}', space=vmem, size = 0x12000, scoped, tag = 'internal scratch']
  #allocation2 [shape = 'bf16[16,32]{1,0:T(16,128)(2,1)}', space=vmem, size = 0x1000, scoped, tag = 'scratch operand']
  %s0 = inlined_call_operand.vmem [shape: bf16[2,16,32], index: 0, kind: input, shape index: {}]
  %s1 = inlined_call_operand.vmem [shape: f32[2,16,32], index: 1, kind: input, shape index: {}]
  %s2 = inlined_call_operand.vmem [shape: bf16[32,32], index: 2, kind: input, shape index: {}]
  %s3 = inlined_call_operand.vmem [shape: f32[1,32], index: 3, kind: input, shape index: {}]
  %s4 = inlined_call_operand.vmem [shape: f32[1,32], index: 4, kind: input, shape index: {}]
  %s5 = inlined_call_operand.vmem [shape: f32[1,32], index: 5, kind: input, shape index: {}]
  %s6 = inlined_call_operand.vmem [shape: bf16[32,64], index: 6, kind: input, shape index: {}]
  %s7 = inlined_call_operand.vmem [shape: f32[1,64], index: 7, kind: input, shape index: {}]
  %s8 = inlined_call_operand.vmem [shape: bf16[64,32], index: 8, kind: input, shape index: {}]
  %s9 = inlined_call_operand.vmem [shape: f32[1,32], index: 9, kind: input, shape index: {}]
  %s10 = inlined_call_operand.vmem [shape: f32[2,16,32], index: 10, kind: output, shape index: {}]
  %s11 = sld [smem:[#allocation0]]
  $region77: #{mplug_owl_vision_encoder_layer.5} parent=0
    _
  %s13 = ssub.s32 1, %s11
  %s14 = scalar_select 0, %s13, %s11
  loop: start=0, step=1, limit=4
  $region2: #{mplug_owl_vision_encoder_layer.5} parent=0 // loop_pre_header
    _
  $region3: #{mplug_owl_vision_encoder_layer.5} parent=0 // loop_header
    %s16 = sphi 0, %s20
    %p17 = scmp.ge.s32.totalorder %s16, 4
    %s23 = sphi 0, %s42
    %s24 = sphi 0, %s38
    %s25 = sphi 0, %s34
    %s26 = sphi 0, %s23
    %s27 = sphi 0, %s24
    %s28 = sphi 0, %s25
    %s29 = sphi 0, %s26
    %s30 = sphi 0, %s27
    %s31 = sphi 0, %s28
    %s47 = sphi 0, %s49
    %s50 = sphi 0, %s47
    %s51 = sphi 0, %s50
    %s67 = sphi 0, %s51
    %s75 = sphi 0, %s77
    %s78 = sphi 0, %s75
    %s79 = sphi 0, %s78
    %s95 = sphi 0, %s79
    %s99 = sphi 0, %s99
    %s101 = sphi 0, %s99
    %s102 = sphi 0, %s101
    %s116 = sphi 0, %s102
    %s120 = sphi 0, %s120
    %s122 = sphi 0, %s120
    %s123 = sphi 0, %s122
    %s137 = sphi 0, %s123
    %s141 = sphi 0, %s141
    %s143 = sphi 0, %s141
    %s144 = sphi 0, %s143
    %s158 = sphi 0, %s144
    %s162 = sphi 0, %s162
    %s164 = sphi 0, %s162
    %s165 = sphi 0, %s164
    %s179 = sphi 0, %s165
    %s185 = sphi 0, %s187
    %s188 = sphi 0, %s185
    %s189 = sphi 0, %s188
    %s205 = sphi 0, %s189
    %s211 = sphi 0, %s213
    %s214 = sphi 0, %s211
    %s215 = sphi 0, %s214
    %s231 = sphi 0, %s215
    %s237 = sphi 0, %s239
    %s240 = sphi 0, %s237
    %s241 = sphi 0, %s240
    %s257 = sphi 0, %s241
    %s261 = sphi 0, %s261
    %s263 = sphi 0, %s261
    %s264 = sphi 0, %s263
    %s278 = sphi 0, %s264
    %s286 = sphi 0, %s288
    %s289 = sphi 0, %s286
    %s290 = sphi 0, %s289
    %s306 = sphi 0, %s290
  $region4: #{mplug_owl_vision_encoder_layer.5} parent=0 // loop_header_branch
    %19 = sbr.rel (%p17) target = $region8
  $region5: #{mplug_owl_vision_encoder_layer.5} parent=0 // loop_body
    %s21 = ssub.s32 %s16, 1
    %s22 = ssub.s32 %s16, 2
    %s32 = sadd.s32 1, %s25
    %p33 = scmp.ge.s32.totalorder %s32, 1
    %s34 = scalar_select %p33, 0, %s32
    %s35 = sadd.s32 1, %s24
    %s36 = scalar_select %p33, %s35, %s24
    %p37 = scmp.ge.s32.totalorder %s36, 1
    %s38 = scalar_select %p37, 0, %s36
    %s39 = sadd.s32 1, %s23
    %s40 = scalar_select %p37, %s39, %s23
    %p41 = scmp.ge.s32.totalorder %s40, 2
    %s42 = scalar_select %p41, 0, %s40
    %s43 = ssub.s32 %s23, %s42
    %s44 = ssub.s32 %s24, %s38
    %s45 = sor.u32 %s43, %s44
    %p46 = scmp.eq.s32.totalorder %s45, 0
    %s48 = sadd.s32 %s47, 1
    %s49 = scalar_select %p46, %s47, %s48
    %p52 = pneg %p46
    %p53 = scmp.eq.s32.totalorder %s16, 1
    %p54 = por %p52, %p53
    %p55 = scmp.ne.s32.totalorder %s47, %s50
    %p56 = scmp.eq.s32.totalorder %s16, 0
    %p57 = por %p55, %p56
    %p58 = scmp.ne.s32.totalorder %s47, %s50
    %p59 = scmp.eq.s32.totalorder %s21, 1
    %p60 = por %p58, %p59
    %p61 = scmp.ne.s32.totalorder %s50, %s51
    %p62 = scmp.eq.s32.totalorder %s21, 0
    %p63 = por %p61, %p62
    %p64 = scmp.ne.s32.totalorder %s50, %s51
    %p65 = scmp.eq.s32.totalorder %s22, 1
    %p66 = por %p64, %p65
    %p68 = scmp.ne.s32.totalorder %s51, %s67
    %p69 = scmp.eq.s32.totalorder %s22, 0
    %p70 = por %p68, %p69
    %s71 = ssub.s32 %s23, %s42
    %s72 = ssub.s32 %s24, %s38
    %s73 = sor.u32 %s71, %s72
    %p74 = scmp.eq.s32.totalorder %s73, 0
    %s76 = sadd.s32 %s75, 1
    %s77 = scalar_select %p74, %s75, %s76
    %p80 = pneg %p74
    %p81 = scmp.eq.s32.totalorder %s16, 1
    %p82 = por %p80, %p81
    %p83 = scmp.ne.s32.totalorder %s75, %s78
    %p84 = scmp.eq.s32.totalorder %s16, 0
    %p85 = por %p83, %p84
    %p86 = scmp.ne.s32.totalorder %s75, %s78
    %p87 = scmp.eq.s32.totalorder %s21, 1
    %p88 = por %p86, %p87
    %p89 = scmp.ne.s32.totalorder %s78, %s79
    %p90 = scmp.eq.s32.totalorder %s21, 0
    %p91 = por %p89, %p90
    %p92 = scmp.ne.s32.totalorder %s78, %s79
    %p93 = scmp.eq.s32.totalorder %s22, 1
    %p94 = por %p92, %p93
    %p96 = scmp.ne.s32.totalorder %s79, %s95
    %p97 = scmp.eq.s32.totalorder %s22, 0
    %p98 = por %p96, %p97
    %s100 = sadd.s32 %s99, 1
    %p103 = scmp.eq.s32.totalorder %s16, 1
    %p104 = scmp.ne.s32.totalorder %s99, %s101
    %p105 = scmp.eq.s32.totalorder %s16, 0
    %p106 = por %p104, %p105
    %p107 = scmp.ne.s32.totalorder %s99, %s101
    %p108 = scmp.eq.s32.totalorder %s21, 1
    %p109 = por %p107, %p108
    %p110 = scmp.ne.s32.totalorder %s101, %s102
    %p111 = scmp.eq.s32.totalorder %s21, 0
    %p112 = por %p110, %p111
    %p113 = scmp.ne.s32.totalorder %s101, %s102
    %p114 = scmp.eq.s32.totalorder %s22, 1
    %p115 = por %p113, %p114
    %p117 = scmp.ne.s32.totalorder %s102, %s116
    %p118 = scmp.eq.s32.totalorder %s22, 0
    %p119 = por %p117, %p118
    %s121 = sadd.s32 %s120, 1
    %p124 = scmp.eq.s32.totalorder %s16, 1
    %p125 = scmp.ne.s32.totalorder %s120, %s122
    %p126 = scmp.eq.s32.totalorder %s16, 0
    %p127 = por %p125, %p126
    %p128 = scmp.ne.s32.totalorder %s120, %s122
    %p129 = scmp.eq.s32.totalorder %s21, 1
    %p130 = por %p128, %p129
    %p131 = scmp.ne.s32.totalorder %s122, %s123
    %p132 = scmp.eq.s32.totalorder %s21, 0
    %p133 = por %p131, %p132
    %p134 = scmp.ne.s32.totalorder %s122, %s123
    %p135 = scmp.eq.s32.totalorder %s22, 1
    %p136 = por %p134, %p135
    %p138 = scmp.ne.s32.totalorder %s123, %s137
    %p139 = scmp.eq.s32.totalorder %s22, 0
    %p140 = por %p138, %p139
    %s142 = sadd.s32 %s141, 1
    %p145 = scmp.eq.s32.totalorder %s16, 1
    %p146 = scmp.ne.s32.totalorder %s141, %s143
    %p147 = scmp.eq.s32.totalorder %s16, 0
    %p148 = por %p146, %p147
    %p149 = scmp.ne.s32.totalorder %s141, %s143
    %p150 = scmp.eq.s32.totalorder %s21, 1
    %p151 = por %p149, %p150
    %p152 = scmp.ne.s32.totalorder %s143, %s144
    %p153 = scmp.eq.s32.totalorder %s21, 0
    %p154 = por %p152, %p153
    %p155 = scmp.ne.s32.totalorder %s143, %s144
    %p156 = scmp.eq.s32.totalorder %s22, 1
    %p157 = por %p155, %p156
    %p159 = scmp.ne.s32.totalorder %s144, %s158
    %p160 = scmp.eq.s32.totalorder %s22, 0
    %p161 = por %p159, %p160
    %s163 = sadd.s32 %s162, 1
    %p166 = scmp.eq.s32.totalorder %s16, 1
    %p167 = scmp.ne.s32.totalorder %s162, %s164
    %p168 = scmp.eq.s32.totalorder %s16, 0
    %p169 = por %p167, %p168
    %p170 = scmp.ne.s32.totalorder %s162, %s164
    %p171 = scmp.eq.s32.totalorder %s21, 1
    %p172 = por %p170, %p171
    %p173 = scmp.ne.s32.totalorder %s164, %s165
    %p174 = scmp.eq.s32.totalorder %s21, 0
    %p175 = por %p173, %p174
    %p176 = scmp.ne.s32.totalorder %s164, %s165
    %p177 = scmp.eq.s32.totalorder %s22, 1
    %p178 = por %p176, %p177
    %p180 = scmp.ne.s32.totalorder %s165, %s179
    %p181 = scmp.eq.s32.totalorder %s22, 0
    %p182 = por %p180, %p181
    %s183 = ssub.s32 %s25, %s34
    %p184 = scmp.eq.s32.totalorder %s183, 0
    %s186 = sadd.s32 %s185, 1
    %s187 = scalar_select %p184, %s185, %s186
    %p190 = pneg %p184
    %p191 = scmp.eq.s32.totalorder %s16, 1
    %p192 = por %p190, %p191
    %p193 = scmp.ne.s32.totalorder %s185, %s188
    %p194 = scmp.eq.s32.totalorder %s16, 0
    %p195 = por %p193, %p194
    %p196 = scmp.ne.s32.totalorder %s185, %s188
    %p197 = scmp.eq.s32.totalorder %s21, 1
    %p198 = por %p196, %p197
    %p199 = scmp.ne.s32.totalorder %s188, %s189
    %p200 = scmp.eq.s32.totalorder %s21, 0
    %p201 = por %p199, %p200
    %p202 = scmp.ne.s32.totalorder %s188, %s189
    %p203 = scmp.eq.s32.totalorder %s22, 1
    %p204 = por %p202, %p203
    %p206 = scmp.ne.s32.totalorder %s189, %s205
    %p207 = scmp.eq.s32.totalorder %s22, 0
    %p208 = por %p206, %p207
    %s209 = ssub.s32 %s25, %s34
    %p210 = scmp.eq.s32.totalorder %s209, 0
    %s212 = sadd.s32 %s211, 1
    %s213 = scalar_select %p210, %s211, %s212
    %p216 = pneg %p210
    %p217 = scmp.eq.s32.totalorder %s16, 1
    %p218 = por %p216, %p217
    %p219 = scmp.ne.s32.totalorder %s211, %s214
    %p220 = scmp.eq.s32.totalorder %s16, 0
    %p221 = por %p219, %p220
    %p222 = scmp.ne.s32.totalorder %s211, %s214
    %p223 = scmp.eq.s32.totalorder %s21, 1
    %p224 = por %p222, %p223
    %p225 = scmp.ne.s32.totalorder %s214, %s215
    %p226 = scmp.eq.s32.totalorder %s21, 0
    %p227 = por %p225, %p226
    %p228 = scmp.ne.s32.totalorder %s214, %s215
    %p229 = scmp.eq.s32.totalorder %s22, 1
    %p230 = por %p228, %p229
    %p232 = scmp.ne.s32.totalorder %s215, %s231
    %p233 = scmp.eq.s32.totalorder %s22, 0
    %p234 = por %p232, %p233
    %s235 = ssub.s32 %s25, %s34
    %p236 = scmp.eq.s32.totalorder %s235, 0
    %s238 = sadd.s32 %s237, 1
    %s239 = scalar_select %p236, %s237, %s238
    %p242 = pneg %p236
    %p243 = scmp.eq.s32.totalorder %s16, 1
    %p244 = por %p242, %p243
    %p245 = scmp.ne.s32.totalorder %s237, %s240
    %p246 = scmp.eq.s32.totalorder %s16, 0
    %p247 = por %p245, %p246
    %p248 = scmp.ne.s32.totalorder %s237, %s240
    %p249 = scmp.eq.s32.totalorder %s21, 1
    %p250 = por %p248, %p249
    %p251 = scmp.ne.s32.totalorder %s240, %s241
    %p252 = scmp.eq.s32.totalorder %s21, 0
    %p253 = por %p251, %p252
    %p254 = scmp.ne.s32.totalorder %s240, %s241
    %p255 = scmp.eq.s32.totalorder %s22, 1
    %p256 = por %p254, %p255
    %p258 = scmp.ne.s32.totalorder %s241, %s257
    %p259 = scmp.eq.s32.totalorder %s22, 0
    %p260 = por %p258, %p259
    %s262 = sadd.s32 %s261, 1
    %p265 = scmp.eq.s32.totalorder %s16, 1
    %p266 = scmp.ne.s32.totalorder %s261, %s263
    %p267 = scmp.eq.s32.totalorder %s16, 0
    %p268 = por %p266, %p267
    %p269 = scmp.ne.s32.totalorder %s261, %s263
    %p270 = scmp.eq.s32.totalorder %s21, 1
    %p271 = por %p269, %p270
    %p272 = scmp.ne.s32.totalorder %s263, %s264
    %p273 = scmp.eq.s32.totalorder %s21, 0
    %p274 = por %p272, %p273
    %p275 = scmp.ne.s32.totalorder %s263, %s264
    %p276 = scmp.eq.s32.totalorder %s22, 1
    %p277 = por %p275, %p276
    %p279 = scmp.ne.s32.totalorder %s264, %s278
    %p280 = scmp.eq.s32.totalorder %s22, 0
    %p281 = por %p279, %p280
    %s282 = ssub.s32 %s23, %s42
    %s283 = ssub.s32 %s24, %s38
    %s284 = sor.u32 %s282, %s283
    %p285 = scmp.eq.s32.totalorder %s284, 0
    %s287 = sadd.s32 %s286, 1
    %s288 = scalar_select %p285, %s286, %s287
    %p291 = pneg %p285
    %p292 = scmp.eq.s32.totalorder %s16, 1
    %p293 = por %p291, %p292
    %p294 = scmp.ne.s32.totalorder %s286, %s289
    %p295 = scmp.eq.s32.totalorder %s16, 0
    %p296 = por %p294, %p295
    %p297 = scmp.ne.s32.totalorder %s286, %s289
    %p298 = scmp.eq.s32.totalorder %s21, 1
    %p299 = por %p297, %p298
    %p300 = scmp.ne.s32.totalorder %s289, %s290
    %p301 = scmp.eq.s32.totalorder %s21, 0
    %p302 = por %p300, %p301
    %p303 = scmp.ne.s32.totalorder %s289, %s290
    %p304 = scmp.eq.s32.totalorder %s22, 1
    %p305 = por %p303, %p304
    %p307 = scmp.ne.s32.totalorder %s290, %s306
    %p308 = scmp.eq.s32.totalorder %s22, 0
    %p309 = por %p307, %p308
    %p310 = scmp.le.s32.totalorder 1, %s16
    %p311 = scmp.lt.s32.totalorder %s16, 3
    %p312 = pnand %p310, %p311
    %p313 = pneg %p312
    // Predicated region
    $region9: #{mplug_owl_vision_encoder_layer.5} parent=5 // pred_check
      _
    $region10: #{mplug_owl_vision_encoder_layer.5} parent=5 // pred_check_branch
      %315 = sbr.rel (%p312) target = $region12
    $region11: #{mplug_owl_vision_encoder_layer.5} parent=5 // pred_region
      %s316 = ssub.s32 %s16, 1
      // Predicated region
      $region13: #{mplug_owl_vision_encoder_layer.5} parent=11 // pred_check
        %p317 = pneg %p112
      $region14: #{mplug_owl_vision_encoder_layer.5} parent=11 // pred_check_branch
        %319 = sbr.rel (%p317) target = $region16
      $region15: #{mplug_owl_vision_encoder_layer.5} parent=11 // pred_region
        _
      $region16: #{mplug_owl_vision_encoder_layer.5} parent=11 // pred_fallthru
        _
      // Predicated region
      $region17: #{mplug_owl_vision_encoder_layer.5} parent=11 // pred_check
        %p320 = pneg %p133
      $region18: #{mplug_owl_vision_encoder_layer.5} parent=11 // pred_check_branch
        %322 = sbr.rel (%p320) target = $region20
      $region19: #{mplug_owl_vision_encoder_layer.5} parent=11 // pred_region
        _
      $region20: #{mplug_owl_vision_encoder_layer.5} parent=11 // pred_fallthru
        _
      // Predicated region
      $region21: #{mplug_owl_vision_encoder_layer.5} parent=11 // pred_check
        %p323 = pneg %p154
      $region22: #{mplug_owl_vision_encoder_layer.5} parent=11 // pred_check_branch
        %325 = sbr.rel (%p323) target = $region24
      $region23: #{mplug_owl_vision_encoder_layer.5} parent=11 // pred_region
        _
      $region24: #{mplug_owl_vision_encoder_layer.5} parent=11 // pred_fallthru
        _
      // Predicated region
      $region25: #{mplug_owl_vision_encoder_layer.5} parent=11 // pred_check
        %p326 = pneg %p175
      $region26: #{mplug_owl_vision_encoder_layer.5} parent=11 // pred_check_branch
        %328 = sbr.rel (%p326) target = $region28
      $region27: #{mplug_owl_vision_encoder_layer.5} parent=11 // pred_region
        _
      $region28: #{mplug_owl_vision_encoder_layer.5} parent=11 // pred_fallthru
        _
      // Predicated region
      $region29: #{mplug_owl_vision_encoder_layer.5} parent=11 // pred_check
        %p329 = pneg %p201
      $region30: #{mplug_owl_vision_encoder_layer.5} parent=11 // pred_check_branch
        %331 = sbr.rel (%p329) target = $region32
      $region31: #{mplug_owl_vision_encoder_layer.5} parent=11 // pred_region
        %p332 = scmp.lt.s32.totalorder %s28, 0
        %s333 = scalar_select %p332, %s28, 0
        %s334 = smul.addr %s333, 4
        %s335 = scalar_lea.vmem %s6, %s334
      $region32: #{mplug_owl_vision_encoder_layer.5} parent=11 // pred_fallthru
        _
      // Predicated region
      $region33: #{mplug_owl_vision_encoder_layer.5} parent=11 // pred_check
        %p336 = pneg %p227
      $region34: #{mplug_owl_vision_encoder_layer.5} parent=11 // pred_check_branch
        %338 = sbr.rel (%p336) target = $region36
      $region35: #{mplug_owl_vision_encoder_layer.5} parent=11 // pred_region
        %p339 = scmp.lt.s32.totalorder %s28, 0
        %s340 = scalar_select %p339, %s28, 0
        %s341 = scalar_lea.vmem %s7, %s340
      $region36: #{mplug_owl_vision_encoder_layer.5} parent=11 // pred_fallthru
        _
      // Predicated region
      $region37: #{mplug_owl_vision_encoder_layer.5} parent=11 // pred_check
        %p342 = pneg %p253
      $region38: #{mplug_owl_vision_encoder_layer.5} parent=11 // pred_check_branch
        %344 = sbr.rel (%p342) target = $region40
      $region39: #{mplug_owl_vision_encoder_layer.5} parent=11 // pred_region
        %s345 = smul.u32 8, %s28
        %p346 = scmp.lt.s32.totalorder %s345, 7
        %s347 = scalar_select %p346, %s345, 7
        %s348 = smul.addr %s347, 4
        %s349 = scalar_lea.vmem %s8, %s348
        %s350 = smul.u32 8, %s28
      $region40: #{mplug_owl_vision_encoder_layer.5} parent=11 // pred_fallthru
        _
      // Predicated region
      $region41: #{mplug_owl_vision_encoder_layer.5} parent=11 // pred_check
        %p351 = pneg %p274
      $region42: #{mplug_owl_vision_encoder_layer.5} parent=11 // pred_check_branch
        %353 = sbr.rel (%p351) target = $region44
      $region43: #{mplug_owl_vision_encoder_layer.5} parent=11 // pred_region
        _
      $region44: #{mplug_owl_vision_encoder_layer.5} parent=11 // pred_fallthru
        _
    $region12: #{mplug_owl_vision_encoder_layer.5} parent=5 // pred_fallthru
      _
    %p354 = scmp.lt.s32.totalorder %s16, 2
    // Predicated region
    $region45: #{mplug_owl_vision_encoder_layer.5} parent=5 // pred_check
      %p355 = pneg %p354
    $region46: #{mplug_owl_vision_encoder_layer.5} parent=5 // pred_check_branch
      %357 = sbr.rel (%p355) target = $region48
    $region47: #{mplug_owl_vision_encoder_layer.5} parent=5 // pred_region
      // Predicated region
      $region49: #{mplug_owl_vision_encoder_layer.5} parent=47 // pred_check
        %p358 = pneg %p57
      $region50: #{mplug_owl_vision_encoder_layer.5} parent=47 // pred_check_branch
        %360 = sbr.rel (%p358) target = $region52
      $region51: #{mplug_owl_vision_encoder_layer.5} parent=47 // pred_region
        %s361 = smul.u32 2, %s24
        %p362 = scmp.lt.s32.totalorder %s23, 1
        %s363 = scalar_select %p362, %s23, 1
        %p364 = scmp.lt.s32.totalorder %s361, 1
        %s365 = scalar_select %p364, %s361, 1
        %s366 = smul.addr %s363, 2
        %s367 = sadd.s32 %s365, %s366
        %s368 = smul.addr %s367, 4
        %s369 = scalar_lea.vmem %s0, %s368
        %s370 = smul.u32 2, %s24
      $region52: #{mplug_owl_vision_encoder_layer.5} parent=47 // pred_fallthru
        _
      // Predicated region
      $region53: #{mplug_owl_vision_encoder_layer.5} parent=47 // pred_check
        %p371 = pneg %p85
      $region54: #{mplug_owl_vision_encoder_layer.5} parent=47 // pred_check_branch
        %373 = sbr.rel (%p371) target = $region56
      $region55: #{mplug_owl_vision_encoder_layer.5} parent=47 // pred_region
        %s374 = smul.u32 2, %s24
        %p375 = scmp.lt.s32.totalorder %s23, 1
        %s376 = scalar_select %p375, %s23, 1
        %p377 = scmp.lt.s32.totalorder %s374, 1
        %s378 = scalar_select %p377, %s374, 1
        %s379 = smul.addr %s376, 2
        %s380 = sadd.s32 %s378, %s379
        %s381 = smul.addr %s380, 8
        %s382 = scalar_lea.vmem %s1, %s381
        %s383 = smul.u32 2, %s24
      $region56: #{mplug_owl_vision_encoder_layer.5} parent=47 // pred_fallthru
        _
    $region48: #{mplug_owl_vision_encoder_layer.5} parent=5 // pred_fallthru
      _
    %p384 = scmp.le.s32.totalorder 1, %s16
    %p385 = scmp.lt.s32.totalorder %s16, 3
    %p386 = pnand %p384, %p385
    %p387 = pneg %p386
    // Predicated region
    $region57: #{mplug_owl_vision_encoder_layer.5} parent=5 // pred_check
      _
    $region58: #{mplug_owl_vision_encoder_layer.5} parent=5 // pred_check_branch
      %389 = sbr.rel (%p386) target = $region60
    $region59: #{mplug_owl_vision_encoder_layer.5} parent=5 // pred_region
      %s390 = ssub.s32 %s16, 1
      %s391 = smul.u32 2, %s27
      %p392 = scmp.lt.s32.totalorder %s26, 1
      %s393 = scalar_select %p392, %s26, 1
      %p394 = scmp.lt.s32.totalorder %s391, 1
      %s395 = scalar_select %p394, %s391, 1
      %s396 = smul.addr %s393, 2
      %s397 = sadd.s32 %s395, %s396
      %s398 = smul.addr %s397, 4
      %s399 = scalar_lea.vmem %s0, %s398
      %p400 = pneg %p63
      %p401 = pneg %p60
      %s402 = smul.u32 2, %s27
      %p403 = scmp.lt.s32.totalorder %s26, 1
      %s404 = scalar_select %p403, %s26, 1
      %p405 = scmp.lt.s32.totalorder %s402, 1
      %s406 = scalar_select %p405, %s402, 1
      %s407 = smul.addr %s404, 2
      %s408 = sadd.s32 %s406, %s407
      %s409 = smul.addr %s408, 8
      %s410 = scalar_lea.vmem %s1, %s409
      %p411 = pneg %p91
      %p412 = pneg %p88
      %p413 = pneg %p112
      %p414 = pneg %p109
      %p415 = pneg %p133
      %p416 = pneg %p130
      %p417 = pneg %p154
      %p418 = pneg %p151
      %p419 = pneg %p175
      %p420 = pneg %p172
      %p421 = scmp.lt.s32.totalorder %s28, 0
      %s422 = scalar_select %p421, %s28, 0
      %s423 = smul.addr %s422, 4
      %s424 = scalar_lea.vmem %s6, %s423
      %p425 = pneg %p201
      %p426 = pneg %p198
      %p427 = scmp.lt.s32.totalorder %s28, 0
      %s428 = scalar_select %p427, %s28, 0
      %s429 = scalar_lea.vmem %s7, %s428
      %p430 = pneg %p227
      %p431 = pneg %p224
      %s432 = smul.u32 8, %s28
      %p433 = scmp.lt.s32.totalorder %s432, 7
      %s434 = scalar_select %p433, %s432, 7
      %s435 = smul.addr %s434, 4
      %s436 = scalar_lea.vmem %s8, %s435
      %p437 = pneg %p253
      %p438 = pneg %p250
      %p439 = pneg %p274
      %p440 = pneg %p271
      %p441 = pneg %p302
      %p442 = pneg %p299
      %s443 = smul.u32 2, %s27
      %p444 = scmp.lt.s32.totalorder %s26, 1
      %s445 = scalar_select %p444, %s26, 1
      %p446 = scmp.lt.s32.totalorder %s443, 1
      %s447 = scalar_select %p446, %s443, 1
      %s448 = smul.addr %s445, 2
      %s449 = sadd.s32 %s447, %s448
      %s450 = smul.addr %s449, 8
      %s451 = scalar_lea.vmem %s10, %s450
      %s452 = smul.u32 2, %s27
      %p453 = scmp.lt.s32.totalorder %s26, 1
      %s454 = scalar_select %p453, %s26, 1
      %p455 = scmp.lt.s32.totalorder %s452, 1
      %s456 = scalar_select %p455, %s452, 1
      %s457 = smul.addr %s454, 2
      %s458 = sadd.s32 %s456, %s457
      %s459 = smul.addr %s458, 4
      %s460 = scalar_lea.vmem %s0, %s459
      %s461 = smul.u32 2, %s27
      %s462 = smul.u32 2, %s27
      %p463 = scmp.lt.s32.totalorder %s26, 1
      %s464 = scalar_select %p463, %s26, 1
      %p465 = scmp.lt.s32.totalorder %s462, 1
      %s466 = scalar_select %p465, %s462, 1
      %s467 = smul.addr %s464, 2
      %s468 = sadd.s32 %s466, %s467
      %s469 = smul.addr %s468, 8
      %s470 = scalar_lea.vmem %s1, %s469
      %s471 = smul.u32 2, %s27
      %p472 = scmp.lt.s32.totalorder %s28, 0
      %s473 = scalar_select %p472, %s28, 0
      %s474 = smul.addr %s473, 4
      %s475 = scalar_lea.vmem %s6, %s474
      %p476 = scmp.lt.s32.totalorder %s28, 0
      %s477 = scalar_select %p476, %s28, 0
      %s478 = scalar_lea.vmem %s7, %s477
      %s479 = smul.u32 8, %s28
      %p480 = scmp.lt.s32.totalorder %s479, 7
      %s481 = scalar_select %p480, %s479, 7
      %s482 = smul.addr %s481, 4
      %s483 = scalar_lea.vmem %s8, %s482
      %s484 = smul.u32 8, %s28
      %s485 = smul.u32 2, %s27
      %p486 = scmp.lt.s32.totalorder %s26, 1
      %s487 = scalar_select %p486, %s26, 1
      %p488 = scmp.lt.s32.totalorder %s485, 1
      %s489 = scalar_select %p488, %s485, 1
      %s490 = smul.addr %s487, 2
      %s491 = sadd.s32 %s489, %s490
      %s492 = smul.addr %s491, 8
      %s493 = scalar_lea.vmem %s10, %s492
      %s494 = smul.u32 2, %s27
      %p496 = scmp.eq.s32.totalorder %s28, 0
      // Predicated region
      $region61: #{mplug_owl_vision_encoder_layer.5} parent=59 // pred_check
        %p497 = pneg %p496
      $region62: #{mplug_owl_vision_encoder_layer.5} parent=59 // pred_check_branch
        %499 = sbr.rel (%p497) target = $region64
      $region63: #{mplug_owl_vision_encoder_layer.5} parent=59 // pred_region
        %v500 = vld [vmem:[%s460] sm:$0xf]
        %v501 = vld [vmem:[%s460 + $0x4] sm:$0xf]
        %v502 = vld [vmem:[%s2] sm:$0xf]
        %v503 = vld [vmem:[%s2 + $0x4] sm:$0xf]
        %v504 = vld [vmem:[%s2 + $0x8] sm:$0xf]
        %v505 = vld [vmem:[%s2 + $0xc] sm:$0xf]
        %v506 = vld [vmem:[%s3] sm:$0x1]
        %v508 = vlaneseq
        %v509 = vshrl.u32 %v508, 7
        %v510 = vsub.s32 0, %v509
        %v511 = vrot.slane %v506, %v510
        %v515 = vunpack.c.l.b16 %v500
        %v516 = vunpack.c.l.b16 %v501
        %v517 = vpack.c.b16 %v516, %v515
        %v522 = vunpack.c.l.b16 %v502
        %v523 = vunpack.c.l.b16 %v503
        %v524 = vunpack.c.l.b16 %v504
        %v525 = vunpack.c.l.b16 %v505
        %v526 = vpack.c.b16 %v523, %v522
        %v527 = vpack.c.b16 %v525, %v524
        %vm530 = vcmask 261120
        %v532 = vsel %vm530, %v517, 0
        %534 = vmatprep.subr.bf16.mxu0 0
        %535 = vmatpush1.bf16.msra.mxu0 %v526
        %536 = vmatprep.subr.bf16.mxu0 0
        %537 = vmatpush1.bf16.msra.mxu0 %v527
        %538 = vmatprep.subr.bf16.mxu0 0
        %539 = vmatpush1.bf16.msra.mxu0 0
        %540 = vmatprep.subr.bf16.mxu0 0
        %541 = vmatpush1.bf16.msra.mxu0 0
        %542 = vmatprep.subr.bf16.mxu0 0
        %543 = vmatpush1.bf16.msra.mxu0 0
        %544 = vmatprep.subr.bf16.mxu0 0
        %545 = vmatpush1.bf16.msra.mxu0 0
        %546 = vmatprep.subr.bf16.mxu0 0
        %547 = vmatpush1.bf16.msra.mxu0 0
        %548 = vmatprep.subr.bf16.mxu0 0
        %549 = vmatpush1.bf16.msra.mxu0 0
        %550 = vmatprep.subr.bf16.mxu0 0
        %551 = vmatpush1.bf16.msra.mxu0 0
        %552 = vmatprep.subr.bf16.mxu0 0
        %553 = vmatpush1.bf16.msra.mxu0 0
        %554 = vmatprep.subr.bf16.mxu0 0
        %555 = vmatpush1.bf16.msra.mxu0 0
        %556 = vmatprep.subr.bf16.mxu0 0
        %557 = vmatpush1.bf16.msra.mxu0 0
        %558 = vmatprep.subr.bf16.mxu0 0
        %559 = vmatpush1.bf16.msra.mxu0 0
        %560 = vmatprep.subr.bf16.mxu0 0
        %561 = vmatpush1.bf16.msra.mxu0 0
        %562 = vmatprep.subr.bf16.mxu0 0
        %563 = vmatpush1.bf16.msra.mxu0 0
        %564 = vmatprep.subr.bf16.mxu0 0
        %565 = vmatpush1.bf16.msra.mxu0 0
        %566 = vmatprep.mubr.bf16.mxu0 0
        %567 = vmatmul.mubr.bf16.gmra.mrb[0].mxu0 %v532
        %v568 = vpop.f32.mrb[0].mxu0
        %v569 = vadd.f32 %v511, %v568
        %v570 = vpop.f32.mrb[0].mxu0
        %v571 = vpop.f32.mrb[0].mxu0
        %v572 = vadd.f32 %v511, %v571
        %v573 = vpop.f32.mrb[0].mxu0
        %574 = vdwg.mxu0
        %v575 = vld [vmem:[%s470] sm:$0xff]
        %v576 = vld [vmem:[%s470 + $0x8] sm:$0xff]
        %v577 = vadd.f32 %v569, %v575
        %v578 = vadd.f32 %v572, %v576
        %v579 = vsel %vm530, %v577, 0.0
        %580 = vadd.xlane.f32.xlu0 %v579
        %v581 = vpop.xlane.xlu0 %580
        %v582 = vsel %vm530, %v578, 0.0
        %583 = vadd.xlane.f32.xlu0 %v582
        %v584 = vpop.xlane.xlu0 %583
        %v585 = vrcp.pop 32.0
        %v586 = vmul.f32 %v581, %v585
        %v587 = vmul.f32 %v584, %v585
        %v588 = vsub.f32 %v577, %v586
        %v589 = vsub.f32 %v578, %v587
        %v590 = vmul.f32 %v588, %v588
        %v591 = vmul.f32 %v589, %v589
        %v592 = vsel %vm530, %v590, 0.0
        %593 = vadd.xlane.f32.xlu0 %v592
        %v594 = vpop.xlane.xlu0 %593
        %v595 = vsel %vm530, %v591, 0.0
        %596 = vadd.xlane.f32.xlu0 %v595
        %v597 = vpop.xlane.xlu0 %596
        %v598 = vmul.f32 %v594, %v585
        %v599 = vmul.f32 %v597, %v585
        %v600 = vadd.f32 %v598, 1e-06
        %v601 = vadd.f32 %v599, 1e-06
        %v602 = vrsqrt.pop %v600
        %v603 = vrsqrt.pop %v601
        %v604 = vmul.f32 %v588, %v602
        %v605 = vmul.f32 %v589, %v603
        %v606 = vld [vmem:[%s4] sm:$0x1]
        %v608 = vlaneseq
        %v609 = vshrl.u32 %v608, 7
        %v610 = vsub.s32 0, %v609
        %v611 = vrot.slane %v606, %v610
        %v613 = vmul.f32 %v604, %v611
        %v614 = vmul.f32 %v605, %v611
        %v615 = vld [vmem:[%s5] sm:$0x1]
        %v617 = vlaneseq
        %v618 = vshrl.u32 %v617, 7
        %v619 = vsub.s32 0, %v618
        %v620 = vrot.slane %v615, %v619
        %v622 = vadd.f32 %v613, %v620
        %v623 = vadd.f32 %v614, %v620
        %v624 = vpack.c.bf16 %v623, %v622
        %625 = vst.msk [vmem:[#allocation2] sm:$0xff] %vm530, %v624
        %v626 = vld [vmem:[%s9] sm:$0x1]
        %v628 = vlaneseq
        %v629 = vshrl.u32 %v628, 7
        %v630 = vsub.s32 0, %v629
        %v631 = vrot.slane %v626, %v630
        %v633 = vadd.f32 %v577, %v631
        %v634 = vadd.f32 %v578, %v631
        %635 = vst.msk [vmem:[%s493] sm:$0xff] %vm530, %v633
        %636 = vst.msk [vmem:[%s493 + $0x8] sm:$0xff] %vm530, %v634
      $region64: #{mplug_owl_vision_encoder_layer.5} parent=59 // pred_fallthru
        _
      %v637 = vld [vmem:[#allocation2] sm:$0xff]
      %v638 = vld [vmem:[%s475] sm:$0xf]
      %v639 = vld [vmem:[%s475 + $0x4] sm:$0xf]
      %v640 = vld [vmem:[%s475 + $0x8] sm:$0xf]
      %v641 = vld [vmem:[%s475 + $0xc] sm:$0xf]
      %v642 = vld [vmem:[%s478] sm:$0x1]
      %v644 = vlaneseq
      %v645 = vshrl.u32 %v644, 7
      %v646 = vsub.s32 0, %v645
      %v647 = vrot.slane %v642, %v646
      %v653 = vunpack.c.l.b16 %v638
      %v654 = vunpack.c.l.b16 %v639
      %v655 = vunpack.c.l.b16 %v640
      %v656 = vunpack.c.l.b16 %v641
      %v657 = vpack.c.b16 %v654, %v653
      %v658 = vpack.c.b16 %v656, %v655
      %vm661 = vcmask 261120
      %v663 = vsel %vm661, %v637, 0
      %665 = vmatprep.subr.bf16.mxu0 0
      %666 = vmatpush1.bf16.msra.mxu0 %v657
      %667 = vmatprep.subr.bf16.mxu0 0
      %668 = vmatpush1.bf16.msra.mxu0 %v658
      %669 = vmatprep.subr.bf16.mxu0 0
      %670 = vmatpush1.bf16.msra.mxu0 0
      %671 = vmatprep.subr.bf16.mxu0 0
      %672 = vmatpush1.bf16.msra.mxu0 0
      %673 = vmatprep.subr.bf16.mxu0 0
      %674 = vmatpush1.bf16.msra.mxu0 0
      %675 = vmatprep.subr.bf16.mxu0 0
      %676 = vmatpush1.bf16.msra.mxu0 0
      %677 = vmatprep.subr.bf16.mxu0 0
      %678 = vmatpush1.bf16.msra.mxu0 0
      %679 = vmatprep.subr.bf16.mxu0 0
      %680 = vmatpush1.bf16.msra.mxu0 0
      %681 = vmatprep.subr.bf16.mxu0 0
      %682 = vmatpush1.bf16.msra.mxu0 0
      %683 = vmatprep.subr.bf16.mxu0 0
      %684 = vmatpush1.bf16.msra.mxu0 0
      %685 = vmatprep.subr.bf16.mxu0 0
      %686 = vmatpush1.bf16.msra.mxu0 0
      %687 = vmatprep.subr.bf16.mxu0 0
      %688 = vmatpush1.bf16.msra.mxu0 0
      %689 = vmatprep.subr.bf16.mxu0 0
      %690 = vmatpush1.bf16.msra.mxu0 0
      %691 = vmatprep.subr.bf16.mxu0 0
      %692 = vmatpush1.bf16.msra.mxu0 0
      %693 = vmatprep.subr.bf16.mxu0 0
      %694 = vmatpush1.bf16.msra.mxu0 0
      %695 = vmatprep.subr.bf16.mxu0 0
      %696 = vmatpush1.bf16.msra.mxu0 0
      %697 = vmatprep.mubr.bf16.mxu0 0
      %698 = vmatmul.mubr.bf16.gmra.mrb[0].mxu0 %v663
      %v699 = vpop.f32.mrb[0].mxu0
      %v700 = vadd.f32 %v647, %v699
      %v701 = vpop.f32.mrb[0].mxu0
      %v702 = vpop.f32.mrb[0].mxu0
      %v703 = vadd.f32 %v647, %v702
      %v704 = vpop.f32.mrb[0].mxu0
      %705 = vdwg.mxu0
      %v706 = vmul.f32 %v700, 1.702
      %v707 = vmul.f32 %v703, 1.702
      %v708 = vxor.u32 %v706, 2147483648
      %v709 = vxor.u32 %v707, 2147483648
      %v710 = vmul.f32 %v708, 1.442695
      %v711 = vpow.pop %v710
      %v712 = vmul.f32 %v709, 1.442695
      %v713 = vpow.pop %v712
      %v714 = vadd.f32 %v711, 1.0
      %v715 = vadd.f32 %v713, 1.0
      %v716 = vrcp.pop %v714
      %v717 = vmul.f32 1.0, %v716
      %v718 = vrcp.pop %v715
      %v719 = vmul.f32 1.0, %v718
      %v720 = vmul.f32 %v700, %v717
      %v721 = vmul.f32 %v703, %v719
      %v722 = vld [vmem:[%s493] sm:$0xff]
      %v723 = vld [vmem:[%s493 + $0x8] sm:$0xff]
      %v724 = vpack.c.bf16 %v721, %v720
      %v725 = vld [vmem:[%s483] sm:$0xf]
      %v726 = vld [vmem:[%s483 + $0x4] sm:$0xf]
      %v727 = vld [vmem:[%s483 + $0x8] sm:$0xf]
      %v728 = vld [vmem:[%s483 + $0xc] sm:$0xf]
      %v729 = vld [vmem:[%s483 + $0x10] sm:$0xf]
      %v730 = vld [vmem:[%s483 + $0x14] sm:$0xf]
      %v731 = vld [vmem:[%s483 + $0x18] sm:$0xf]
      %v732 = vld [vmem:[%s483 + $0x1c] sm:$0xf]
      %v741 = vunpack.c.l.b16 %v725
      %v742 = vunpack.c.l.b16 %v726
      %v743 = vunpack.c.l.b16 %v727
      %v744 = vunpack.c.l.b16 %v728
      %v745 = vunpack.c.l.b16 %v729
      %v746 = vunpack.c.l.b16 %v730
      %v747 = vunpack.c.l.b16 %v731
      %v748 = vunpack.c.l.b16 %v732
      %v749 = vpack.c.b16 %v742, %v741
      %v750 = vpack.c.b16 %v744, %v743
      %v751 = vpack.c.b16 %v746, %v745
      %v752 = vpack.c.b16 %v748, %v747
      %vm757 = vcmask 523264
      %v759 = vsel %vm757, %v724, 0
      %761 = vmatprep.subr.bf16.mxu0 0
      %762 = vmatpush1.bf16.msra.mxu0 %v749
      %763 = vmatprep.subr.bf16.mxu0 0
      %764 = vmatpush1.bf16.msra.mxu0 %v750
      %765 = vmatprep.subr.bf16.mxu0 0
      %766 = vmatpush1.bf16.msra.mxu0 %v751
      %767 = vmatprep.subr.bf16.mxu0 0
      %768 = vmatpush1.bf16.msra.mxu0 %v752
      %769 = vmatprep.subr.bf16.mxu0 0
      %770 = vmatpush1.bf16.msra.mxu0 0
      %771 = vmatprep.subr.bf16.mxu0 0
      %772 = vmatpush1.bf16.msra.mxu0 0
      %773 = vmatprep.subr.bf16.mxu0 0
      %774 = vmatpush1.bf16.msra.mxu0 0
      %775 = vmatprep.subr.bf16.mxu0 0
      %776 = vmatpush1.bf16.msra.mxu0 0
      %777 = vmatprep.subr.bf16.mxu0 0
      %778 = vmatpush1.bf16.msra.mxu0 0
      %779 = vmatprep.subr.bf16.mxu0 0
      %780 = vmatpush1.bf16.msra.mxu0 0
      %781 = vmatprep.subr.bf16.mxu0 0
      %782 = vmatpush1.bf16.msra.mxu0 0
      %783 = vmatprep.subr.bf16.mxu0 0
      %784 = vmatpush1.bf16.msra.mxu0 0
      %785 = vmatprep.subr.bf16.mxu0 0
      %786 = vmatpush1.bf16.msra.mxu0 0
      %787 = vmatprep.subr.bf16.mxu0 0
      %788 = vmatpush1.bf16.msra.mxu0 0
      %789 = vmatprep.subr.bf16.mxu0 0
      %790 = vmatpush1.bf16.msra.mxu0 0
      %791 = vmatprep.subr.bf16.mxu0 0
      %792 = vmatpush1.bf16.msra.mxu0 0
      %793 = vmatprep.mubr.bf16.mxu0 0
      %794 = vmatmul.mubr.bf16.gmra.mrb[0].mxu0 %v759
      %v795 = vpop.f32.mrb[0].mxu0
      %v796 = vadd.f32 0.0, %v795
      %v797 = vpop.f32.mrb[0].mxu0
      %v798 = vpop.f32.mrb[0].mxu0
      %v799 = vadd.f32 0.0, %v798
      %v800 = vpop.f32.mrb[0].mxu0
      %801 = vdwg.mxu0
      %v802 = vadd.f32 %v722, %v796
      %v803 = vadd.f32 %v723, %v799
      %804 = vst.msk [vmem:[%s493] sm:$0xff] %vm661, %v802
      %805 = vst.msk [vmem:[%s493 + $0x8] sm:$0xff] %vm661, %v803
      %s806 = smul.u32 2, %s27
      %p807 = scmp.lt.s32.totalorder %s26, 1
      %s808 = scalar_select %p807, %s26, 1
      %p809 = scmp.lt.s32.totalorder %s806, 1
      %s810 = scalar_select %p809, %s806, 1
      %s811 = smul.addr %s808, 2
      %s812 = sadd.s32 %s810, %s811
      %s813 = smul.addr %s812, 8
      %s814 = scalar_lea.vmem %s10, %s813
      // Predicated region
      $region65: #{mplug_owl_vision_encoder_layer.5} parent=59 // pred_check
        %p815 = pneg %p299
      $region66: #{mplug_owl_vision_encoder_layer.5} parent=59 // pred_check_branch
        %817 = sbr.rel (%p815) target = $region68
      $region67: #{mplug_owl_vision_encoder_layer.5} parent=59 // pred_region
        %s818 = smul.u32 2, %s27
      $region68: #{mplug_owl_vision_encoder_layer.5} parent=59 // pred_fallthru
        _
    $region60: #{mplug_owl_vision_encoder_layer.5} parent=5 // pred_fallthru
      _
    %p819 = scmp.le.s32.totalorder 2, %s16
    // Predicated region
    $region69: #{mplug_owl_vision_encoder_layer.5} parent=5 // pred_check
      %p820 = pneg %p819
    $region70: #{mplug_owl_vision_encoder_layer.5} parent=5 // pred_check_branch
      %822 = sbr.rel (%p820) target = $region72
    $region71: #{mplug_owl_vision_encoder_layer.5} parent=5 // pred_region
      %s823 = ssub.s32 %s16, 2
      // Predicated region
      $region73: #{mplug_owl_vision_encoder_layer.5} parent=71 // pred_check
        %p824 = pneg %p305
      $region74: #{mplug_owl_vision_encoder_layer.5} parent=71 // pred_check_branch
        %826 = sbr.rel (%p824) target = $region76
      $region75: #{mplug_owl_vision_encoder_layer.5} parent=71 // pred_region
        %s827 = smul.u32 2, %s30
        %p828 = scmp.lt.s32.totalorder %s29, 1
        %s829 = scalar_select %p828, %s29, 1
        %p830 = scmp.lt.s32.totalorder %s827, 1
        %s831 = scalar_select %p830, %s827, 1
        %s832 = smul.addr %s829, 2
        %s833 = sadd.s32 %s831, %s832
        %s834 = smul.addr %s833, 8
        %s835 = scalar_lea.vmem %s10, %s834
      $region76: #{mplug_owl_vision_encoder_layer.5} parent=71 // pred_fallthru
        _
    $region72: #{mplug_owl_vision_encoder_layer.5} parent=5 // pred_fallthru
      _
  $region6: #{mplug_owl_vision_encoder_layer.5} parent=0 // loop_footer
    %s20 = sadd.s32 1, %s16
  $region7: #{mplug_owl_vision_encoder_layer.5} parent=0 // loop_footer_branch
    %15 = sbr.rel target = $region3
  $region8: #{mplug_owl_vision_encoder_layer.5} parent=0 // loop_exit
    _

</llo_original>
